<compile_context>
chip_gen: v6e
topology: v6e:2x2x1
jax: 0.10.0
libtpu: 0.0.40
codegen_flags: <defaults>
</compile_context>

<pallas_src>
import jax
import jax.numpy as jnp
from jax import lax
from jax.experimental import pallas as pl
from jax.experimental.pallas import tpu as pltpu

DIM = 32            # feature dim of the FeedForward module
MULT = 4
HID = DIM * MULT    # 128
EPS = 1e-5
LANES = 128


def ffn_kernel(x_ref, stat_ref, w1_ref, b1_ref, w2_ref, b2_ref, o_ref):
    f32 = jnp.float32
    lw = x_ref.shape[-1]                                   # P*D = 128 packed lane width
    x = x_ref[...].astype(f32)                             # (tmp, 128) packed logical rows

    # Single-pass bf16 matmuls by default; HIGHEST only on the f32 validation path.
    mm_prec = (lax.Precision.HIGHEST if w1_ref.dtype == jnp.float32
               else lax.Precision.DEFAULT)

    # --- LayerNorm stats: one K=2*lw MXU dot -> [mean | E[x^2]] broadcast per
    # --- 32-lane logical-row segment (block-diagonal segment-mean matrix).
    stats_in = jnp.concatenate([x, x * x], axis=-1).astype(stat_ref.dtype)
    stats = jnp.dot(stats_in, stat_ref[...],
                    preferred_element_type=f32, precision=mm_prec)
    mean = stats[:, :lw]
    meansq = stats[:, lw:]
    var = jnp.maximum(meansq - mean * mean, 0.0)           # guard tiny negative cancellation
    y = (x - mean) * lax.rsqrt(var + EPS)                  # gamma/beta folded into W1/b1

    # --- Linear(dim -> dim*mult) + SiLU (block-diagonal packed weights) ---
    h = jnp.dot(y.astype(w1_ref.dtype), w1_ref[...],
                preferred_element_type=f32, precision=mm_prec) + b1_ref[...]
    # SiLU via tanh: sigmoid(h) = 0.5*tanh(0.5*h) + 0.5 -> one EUP push per element.
    h = h * (0.5 * jnp.tanh(0.5 * h) + 0.5)

    # Dropout(p=0.0) is identity at inference; omitted.

    # --- Linear(dim*mult -> dim) ---
    out = jnp.dot(h.astype(w2_ref.dtype), w2_ref[...],
                  preferred_element_type=f32, precision=mm_prec) + b2_ref[...]
    o_ref[...] = out.astype(o_ref.dtype)


def _pack_params(gamma, beta, w1, b1, w2, b2, P, mm_dtype):
    """Fold LN affine into W1/b1; build block-diagonal packed weights and the
    merged [mean | E[x^2]] segment-reduction matrix."""
    D, HIDDEN = w1.shape
    g = gamma.reshape(D).astype(jnp.float32)
    bt = beta.reshape(D).astype(jnp.float32)
    w1f32 = w1.astype(jnp.float32)
    w2f32 = w2.astype(jnp.float32)
    w1f = g[:, None] * w1f32                               # diag(gamma) @ W1
    b1f = bt @ w1f32 + b1.reshape(HIDDEN).astype(jnp.float32)  # beta @ W1 + b1
    eyeP = jnp.eye(P, dtype=jnp.float32)
    w1_blk = jnp.kron(eyeP, w1f).astype(mm_dtype)          # (P*D, P*HID)
    w2_blk = jnp.kron(eyeP, w2f32).astype(mm_dtype)        # (P*HID, P*D)
    b1_blk = jnp.tile(b1f, P).reshape(1, P * HIDDEN).astype(jnp.float32)
    b2_blk = jnp.tile(b2.reshape(D).astype(jnp.float32), P).reshape(1, P * D)
    seg = jnp.kron(eyeP, jnp.full((D, D), 1.0 / D, jnp.float32))   # (P*D, P*D)
    stat_rhs = jnp.kron(jnp.eye(2, dtype=jnp.float32), seg).astype(mm_dtype)  # (2*P*D, 2*P*D)
    return stat_rhs, w1_blk, b1_blk, w2_blk, b2_blk


def feed_forward(x, gamma, beta, w1, b1, w2, b2, *, target_packed_rows=1024, use_bf16=True):
    B, S, D = x.shape
    HIDDEN = w1.shape[1]
    assert LANES % D == 0, "feature dim must divide 128 for lane packing"
    P = LANES // D                                         # logical rows per vreg row (4)
    LW = P * D                                             # packed lane width (128)

    mm_dtype = jnp.bfloat16 if use_bf16 else jnp.float32
    stat_rhs, w1_blk, b1_blk, w2_blk, b2_blk = _pack_params(
        gamma, beta, w1, b1, w2, b2, P, mm_dtype)

    M = B * S
    M_p = pl.cdiv(M, P) * P                                # only pad to a multiple of P
    x2 = x.reshape(M, D)
    if M_p != M:
        x2 = jnp.pad(x2, ((0, M_p - M), (0, 0)))
    mp = M_p // P                                          # packed rows
    xp = x2.reshape(mp, LW)                                # lane-dense packed rows

    # Tile selection: single full-extent tile when tiny; otherwise >= 4 grid
    # steps (>= 2 per v7x TensorCore for pipelined overlap), sublane-aligned,
    # capped at target_packed_rows (~0.5 MiB x + 0.5 MiB out per step).
    if mp < 32:
        tmp = mp
    else:
        quarter = max(8, ((mp // 4) // 8) * 8)
        tmp = min(target_packed_rows, quarter)
    grid = (pl.cdiv(mp, tmp),)                             # ragged tail blocks are masked

    out = pl.pallas_call(
        ffn_kernel,
        out_shape=jax.ShapeDtypeStruct((mp, LW), x.dtype),
        grid_spec=pl.GridSpec(
            grid=grid,
            in_specs=[
                pl.BlockSpec((tmp, LW), lambda i: (i, 0)),             # x (packed rows)
                pl.BlockSpec((2 * LW, 2 * LW), lambda i: (0, 0)),      # merged stats matrix
                pl.BlockSpec((LW, P * HIDDEN), lambda i: (0, 0)),      # W1 block-diag (LN folded)
                pl.BlockSpec((1, P * HIDDEN), lambda i: (0, 0)),       # b1'
                pl.BlockSpec((P * HIDDEN, LW), lambda i: (0, 0)),      # W2 block-diag
                pl.BlockSpec((1, LW), lambda i: (0, 0)),               # b2
            ],
            out_specs=pl.BlockSpec((tmp, LW), lambda i: (i, 0)),
        ),
        compiler_params=pltpu.CompilerParams(
            dimension_semantics=("parallel",),
        ),
    )(xp, stat_rhs, w1_blk, b1_blk, w2_blk, b2_blk)

    out = out.reshape(M_p, D)
    if M_p != M:
        out = out[:M]
    return out.reshape(B, S, D)


def reference(x, gamma, beta, w1, b1, w2, b2):
    mean = jnp.mean(x, axis=-1, keepdims=True)
    var = jnp.mean((x - mean) ** 2, axis=-1, keepdims=True)
    y = (x - mean) * lax.rsqrt(var + EPS) * gamma + beta
    h = jnp.dot(y, w1, precision=lax.Precision.HIGHEST) + b1
    h = h * jax.nn.sigmoid(h)
    return jnp.dot(h, w2, precision=lax.Precision.HIGHEST) + b2


if __name__ == "__main__":
    key = jax.random.PRNGKey(0)
    kx, kg, kb, k1, k2, k3, k4, kx2 = jax.random.split(key, 8)

    # Primary small shape, matching the module's (batch, seq, dim) contract.
    B, S = 2, 8
    x = jax.random.normal(kx, (B, S, DIM), dtype=jnp.float32)

    gamma = 1.0 + 0.1 * jax.random.normal(kg, (DIM,), jnp.float32)
    beta = 0.1 * jax.random.normal(kb, (DIM,), jnp.float32)
    # PyTorch nn.Linear stores weight as (out, in); we keep (in, out) for x @ W.
    w1 = jax.random.normal(k1, (DIM, HID), jnp.float32) * (1.0 / jnp.sqrt(DIM))
    b1 = 0.01 * jax.random.normal(k2, (HID,), jnp.float32)
    w2 = jax.random.normal(k3, (HID, DIM), jnp.float32) * (1.0 / jnp.sqrt(HID))
    b2 = 0.01 * jax.random.normal(k4, (DIM,), jnp.float32)

    ref = reference(x, gamma, beta, w1, b1, w2, b2)

    # f32 validation path (HIGHEST precision in-kernel): tight tolerance.
    out_f32 = jax.block_until_ready(
        feed_forward(x, gamma, beta, w1, b1, w2, b2, use_bf16=False))
    assert out_f32.shape == (B, S, DIM)
    assert jnp.allclose(out_f32, ref, atol=2e-4, rtol=2e-4), "f32 kernel mismatch vs reference"

    # Default (bf16, single-pass MXU) path on the same shape.
    out_bf = jax.block_until_ready(feed_forward(x, gamma, beta, w1, b1, w2, b2))
    assert jnp.allclose(out_bf, ref, atol=5e-2, rtol=5e-2), "bf16 kernel mismatch"

    # Larger shape exercising the P-pad, multi-step grid and ragged tail block.
    B2, S2 = 3, 50  # M=150 -> pad to 152 rows, 38 packed rows, 5 grid steps (ragged tail)
    xl = jax.random.normal(kx2, (B2, S2, DIM), dtype=jnp.float32)
    refl = reference(xl, gamma, beta, w1, b1, w2, b2)
    outl_f32 = jax.block_until_ready(
        feed_forward(xl, gamma, beta, w1, b1, w2, b2, use_bf16=False))
    assert jnp.allclose(outl_f32, refl, atol=2e-4, rtol=2e-4), "multi-tile f32 kernel mismatch"
    outl_bf = jax.block_until_ready(feed_forward(xl, gamma, beta, w1, b1, w2, b2))
    assert jnp.allclose(outl_bf, refl, atol=5e-2, rtol=5e-2), "multi-tile bf16 kernel mismatch"

    print("KERNEL_OK")
</pallas_src>

<mosaic_0001>
module attributes {stable_mosaic.version = 11 : i64} {
  func.func @ffn_kernel(%arg0: i32, %arg1: memref<4x128xf32, #tpu.memory_space<vmem>>, %arg2: memref<256x256xf32, #tpu.memory_space<vmem>>, %arg3: memref<128x512xf32, #tpu.memory_space<vmem>>, %arg4: memref<1x512xf32, #tpu.memory_space<vmem>>, %arg5: memref<512x128xf32, #tpu.memory_space<vmem>>, %arg6: memref<1x128xf32, #tpu.memory_space<vmem>>, %arg7: memref<4x128xf32, #tpu.memory_space<vmem>>) attributes {dimension_semantics = [#tpu.dimension_semantics<parallel>], iteration_bounds = array<i64: 1>, scalar_prefetch = 0 : i64, scratch_operands = 0 : i64, tpu.core_type = #tpu.core_type<tc>, window_params = [{transform_indices = @transform_0, window_bounds = array<i64: 4, 128>}, {pipeline_mode = #tpu.pipeline_mode<synchronous>, transform_indices = @transform_1, window_bounds = array<i64: 256, 256>}, {pipeline_mode = #tpu.pipeline_mode<synchronous>, transform_indices = @transform_2, window_bounds = array<i64: 128, 512>}, {pipeline_mode = #tpu.pipeline_mode<synchronous>, transform_indices = @transform_3, window_bounds = array<i64: 1, 512>}, {pipeline_mode = #tpu.pipeline_mode<synchronous>, transform_indices = @transform_4, window_bounds = array<i64: 512, 128>}, {pipeline_mode = #tpu.pipeline_mode<synchronous>, transform_indices = @transform_5, window_bounds = array<i64: 1, 128>}, {transform_indices = @transform_6, window_bounds = array<i64: 4, 128>}]} {
    %c0 = arith.constant 0 : index
    %c0_0 = arith.constant 0 : index
    %0 = vector.load %arg1[%c0, %c0_0] : memref<4x128xf32, #tpu.memory_space<vmem>>, vector<4x128xf32>
    %1 = arith.mulf %0, %0 : vector<4x128xf32>
    %2 = tpu.concatenate %0, %1 in 1 : vector<4x128xf32>, vector<4x128xf32> -> vector<4x256xf32>
    %c0_1 = arith.constant 0 : index
    %c0_2 = arith.constant 0 : index
    %3 = vector.load %arg2[%c0_1, %c0_2] : memref<256x256xf32, #tpu.memory_space<vmem>>, vector<256x256xf32>
    %cst = arith.constant dense<0.000000e+00> : vector<4x256xf32>
    %4 = tpu.matmul %2, %3, %cst {dimension_numbers = #tpu.dot_dimension_numbers<[1], [0], [0], [1], [0, 0, 1, 1], [], []>, precision = #tpu.contract_precision<fp32>} : vector<4x256xf32>, vector<256x256xf32>, vector<4x256xf32> -> vector<4x256xf32>
    %5 = vector.extract_strided_slice %4 {offsets = [0, 0], sizes = [4, 128], strides = [1, 1]} : vector<4x256xf32> to vector<4x128xf32>
    %6 = vector.extract_strided_slice %4 {offsets = [0, 128], sizes = [4, 128], strides = [1, 1]} : vector<4x256xf32> to vector<4x128xf32>
    %7 = arith.mulf %5, %5 : vector<4x128xf32>
    %8 = arith.subf %6, %7 : vector<4x128xf32>
    %cst_3 = arith.constant 0.000000e+00 : f32
    %9 = vector.broadcast %cst_3 : f32 to vector<4x128xf32>
    %10 = arith.maximumf %8, %9 : vector<4x128xf32>
    %11 = arith.subf %0, %5 : vector<4x128xf32>
    %cst_4 = arith.constant 9.99999974E-6 : f32
    %12 = vector.broadcast %cst_4 : f32 to vector<4x128xf32>
    %13 = arith.addf %10, %12 : vector<4x128xf32>
    %14 = math.rsqrt %13 : vector<4x128xf32>
    %15 = arith.mulf %11, %14 : vector<4x128xf32>
    %c0_5 = arith.constant 0 : index
    %c0_6 = arith.constant 0 : index
    %16 = vector.load %arg3[%c0_5, %c0_6] : memref<128x512xf32, #tpu.memory_space<vmem>>, vector<128x512xf32>
    %cst_7 = arith.constant dense<0.000000e+00> : vector<4x512xf32>
    %17 = tpu.matmul %15, %16, %cst_7 {dimension_numbers = #tpu.dot_dimension_numbers<[1], [0], [0], [1], [0, 0, 1, 1], [], []>, precision = #tpu.contract_precision<fp32>} : vector<4x128xf32>, vector<128x512xf32>, vector<4x512xf32> -> vector<4x512xf32>
    %c0_8 = arith.constant 0 : index
    %c0_9 = arith.constant 0 : index
    %18 = vector.load %arg4[%c0_8, %c0_9] : memref<1x512xf32, #tpu.memory_space<vmem>>, vector<1x512xf32>
    %19 = vector.broadcast %18 : vector<1x512xf32> to vector<4x512xf32>
    %20 = arith.addf %17, %19 : vector<4x512xf32>
    %cst_10 = arith.constant 5.000000e-01 : f32
    %21 = vector.broadcast %cst_10 : f32 to vector<4x512xf32>
    %22 = arith.mulf %21, %20 : vector<4x512xf32>
    %23 = math.tanh %22 : vector<4x512xf32>
    %cst_11 = arith.constant 5.000000e-01 : f32
    %24 = vector.broadcast %cst_11 : f32 to vector<4x512xf32>
    %25 = arith.mulf %24, %23 : vector<4x512xf32>
    %cst_12 = arith.constant 5.000000e-01 : f32
    %26 = vector.broadcast %cst_12 : f32 to vector<4x512xf32>
    %27 = arith.addf %25, %26 : vector<4x512xf32>
    %28 = arith.mulf %20, %27 : vector<4x512xf32>
    %c0_13 = arith.constant 0 : index
    %c0_14 = arith.constant 0 : index
    %29 = vector.load %arg5[%c0_13, %c0_14] : memref<512x128xf32, #tpu.memory_space<vmem>>, vector<512x128xf32>
    %cst_15 = arith.constant dense<0.000000e+00> : vector<4x128xf32>
    %30 = tpu.matmul %28, %29, %cst_15 {dimension_numbers = #tpu.dot_dimension_numbers<[1], [0], [0], [1], [0, 0, 1, 1], [], []>, precision = #tpu.contract_precision<fp32>} : vector<4x512xf32>, vector<512x128xf32>, vector<4x128xf32> -> vector<4x128xf32>
    %c0_16 = arith.constant 0 : index
    %c0_17 = arith.constant 0 : index
    %31 = vector.load %arg6[%c0_16, %c0_17] : memref<1x128xf32, #tpu.memory_space<vmem>>, vector<1x128xf32>
    %32 = vector.broadcast %31 : vector<1x128xf32> to vector<4x128xf32>
    %33 = arith.addf %30, %32 : vector<4x128xf32>
    %c0_18 = arith.constant 0 : index
    %c0_19 = arith.constant 0 : index
    %34 = vector.load %arg7[%c0_18, %c0_19] : memref<4x128xf32, #tpu.memory_space<vmem>>, vector<4x128xf32>
    tpu.vector_store %arg7[%c0_18, %c0_19], %33 {strides = array<i32>} : memref<4x128xf32, #tpu.memory_space<vmem>>, vector<4x128xf32>,
    return
  }
  func.func @transform_0(%arg0: i32) -> (i32, i32) {
    %c0_i32 = arith.constant 0 : i32
    %c0_i32_0 = arith.constant 0 : i32
    return %arg0, %c0_i32 : i32, i32
  }
  func.func @transform_1(%arg0: i32) -> (i32, i32) {
    %c0_i32 = arith.constant 0 : i32
    %c0_i32_0 = arith.constant 0 : i32
    %c0_i32_1 = arith.constant 0 : i32
    return %c0_i32, %c0_i32_0 : i32, i32
  }
  func.func @transform_2(%arg0: i32) -> (i32, i32) {
    %c0_i32 = arith.constant 0 : i32
    %c0_i32_0 = arith.constant 0 : i32
    %c0_i32_1 = arith.constant 0 : i32
    return %c0_i32, %c0_i32_0 : i32, i32
  }
  func.func @transform_3(%arg0: i32) -> (i32, i32) {
    %c0_i32 = arith.constant 0 : i32
    %c0_i32_0 = arith.constant 0 : i32
    %c0_i32_1 = arith.constant 0 : i32
    return %c0_i32, %c0_i32_0 : i32, i32
  }
  func.func @transform_4(%arg0: i32) -> (i32, i32) {
    %c0_i32 = arith.constant 0 : i32
    %c0_i32_0 = arith.constant 0 : i32
    %c0_i32_1 = arith.constant 0 : i32
    return %c0_i32, %c0_i32_0 : i32, i32
  }
  func.func @transform_5(%arg0: i32) -> (i32, i32) {
    %c0_i32 = arith.constant 0 : i32
    %c0_i32_0 = arith.constant 0 : i32
    %c0_i32_1 = arith.constant 0 : i32
    return %c0_i32, %c0_i32_0 : i32, i32
  }
  func.func @transform_6(%arg0: i32) -> (i32, i32) {
    %c0_i32 = arith.constant 0 : i32
    %c0_i32_0 = arith.constant 0 : i32
    return %arg0, %c0_i32 : i32, i32
  }
}

</mosaic_0001>

<llo_original>
// kernel: tpu_custom_call.1
$region0: #{tpu_custom_call.1}
  #allocation0 [shape = 'u32[]', space=smem, size = 0x4, offset = 0x4, fixed_abs, tag = 'smem constant byte address 0x4 - core index']
  #allocation1 [shape = 'u32[144,128]{1,0:T(1,128)}', space=vmem, size = 0x12000, scoped, tag = 'internal scratch']
  %s0 = inlined_call_operand.hbm [shape: f32[4,128], index: 0, kind: input, shape index: {}]
  %s1 = inlined_call_operand.hbm [shape: f32[256,256], index: 1, kind: input, shape index: {}]
  %s2 = inlined_call_operand.hbm [shape: f32[128,512], index: 2, kind: input, shape index: {}]
  %s3 = inlined_call_operand.vmem [shape: f32[1,512], index: 3, kind: input, shape index: {}]
  %s4 = inlined_call_operand.hbm [shape: f32[512,128], index: 4, kind: input, shape index: {}]
  %s5 = inlined_call_operand.vmem [shape: f32[1,128], index: 5, kind: input, shape index: {}]
  %s6 = inlined_call_operand.hbm [shape: f32[4,128], index: 6, kind: output, shape index: {}]
  %s7 = sld [smem:[#allocation0]]
  $region50: #{tpu_custom_call.1} parent=0
    _
  %s9 = ssub.s32 1, %s7
  %s10 = scalar_select 0, %s9, %s7
  $region1: #{tpu_custom_call.1} parent=0
    #allocation2 [shape = 'u8[2048]{0}', space=vmem, size = 0x800, scoped, tag = 'input window, operand 0, single buffered']
    #allocation3 [shape = 's32[1]{0}', space=sflag, size = 0x4, scoped, tag = 'scoped memory for tpu_custom_call.1']
    #allocation4 [shape = 's32[1]{0}', space=sflag, size = 0x4, scoped, tag = 'scoped memory for tpu_custom_call.1']
    #allocation5 [shape = 'u8[262144]{0}', space=vmem, size = 0x40000, scoped, tag = 'input window, operand 1, single buffered']
    #allocation6 [shape = 's32[1]{0}', space=sflag, size = 0x4, scoped, tag = 'scoped memory for tpu_custom_call.1']
    #allocation7 [shape = 'u8[262144]{0}', space=vmem, size = 0x40000, scoped, tag = 'input window, operand 2, single buffered']
    #allocation8 [shape = 'u8[262144]{0}', space=vmem, size = 0x40000, scoped, tag = 'input window, operand 4, single buffered']
    #allocation9 [shape = 's32[1]{0}', space=sflag, size = 0x4, scoped, tag = 'scoped memory for tpu_custom_call.1']
    #allocation10 [shape = 'u8[2048]{0}', space=vmem, size = 0x800, scoped, tag = 'output window, operand 0, single buffered']
    %11 = vsyncpa [#allocation3], 0
    %12 = vsyncpa [#allocation6], 0
    %13 = vsyncpa [#allocation9], 0
    %14 = vsyncpa [#allocation4], 0
    // Predicated region
    $region2: #{tpu_custom_call.1} parent=1 // pred_check
      _
    $region3: #{tpu_custom_call.1} parent=1 // pred_check_branch
      %16 = sbr.rel (0) target = $region5
    $region4: #{tpu_custom_call.1} parent=1 // pred_region
      %s18 = ssub.s32 64, 64
      %19 = vsyncadd [#allocation3], %s18
      %s21 = sshll.u32 [#allocation2], 4
      %s22 = int_to_ptr.vmem [resolvable:$true] %s21
      %24 = dma.hbm_to_vmem [thread:$0]  %s0, 64, %s22, [#allocation3]
    $region5: #{tpu_custom_call.1} parent=1 // pred_fallthru
      _
    // Predicated region
    $region6: #{tpu_custom_call.1} parent=1 // pred_check
      _
    $region7: #{tpu_custom_call.1} parent=1 // pred_check_branch
      %26 = sbr.rel (0) target = $region9
    $region8: #{tpu_custom_call.1} parent=1 // pred_region
      %s28 = ssub.s32 8192, 8192
      %29 = vsyncadd [#allocation6], %s28
      %s30 = sshll.u32 [#allocation5], 4
      %s31 = int_to_ptr.vmem [resolvable:$true] %s30
      %36 = dma.hbm_to_vmem [thread:$0]  %s1, 8192, %s31, [#allocation6], 256, 256, 16
    $region9: #{tpu_custom_call.1} parent=1 // pred_fallthru
      _
    // Predicated region
    $region10: #{tpu_custom_call.1} parent=1 // pred_check
      _
    $region11: #{tpu_custom_call.1} parent=1 // pred_check_branch
      %38 = sbr.rel (0) target = $region13
    $region12: #{tpu_custom_call.1} parent=1 // pred_region
      %s40 = ssub.s32 8192, 8192
      %41 = vsyncadd [#allocation6], %s40
      %s42 = sshll.u32 [#allocation7], 4
      %s43 = int_to_ptr.vmem [resolvable:$true] %s42
      %48 = dma.hbm_to_vmem [thread:$0]  %s2, 8192, %s43, [#allocation6], 512, 512, 32
    $region13: #{tpu_custom_call.1} parent=1 // pred_fallthru
      _
    // Predicated region
    $region14: #{tpu_custom_call.1} parent=1 // pred_check
      _
    $region15: #{tpu_custom_call.1} parent=1 // pred_check_branch
      %50 = sbr.rel (0) target = $region17
    $region16: #{tpu_custom_call.1} parent=1 // pred_region
      _
    $region17: #{tpu_custom_call.1} parent=1 // pred_fallthru
      _
    // Predicated region
    $region18: #{tpu_custom_call.1} parent=1 // pred_check
      _
    $region19: #{tpu_custom_call.1} parent=1 // pred_check_branch
      %52 = sbr.rel (0) target = $region21
    $region20: #{tpu_custom_call.1} parent=1 // pred_region
      %s54 = ssub.s32 8192, 8192
      %55 = vsyncadd [#allocation9], %s54
      %s56 = sshll.u32 [#allocation8], 4
      %s57 = int_to_ptr.vmem [resolvable:$true] %s56
      %62 = dma.hbm_to_vmem [thread:$0]  %s4, 8192, %s57, [#allocation9], 128, 128, 8
    $region21: #{tpu_custom_call.1} parent=1 // pred_fallthru
      _
    // Predicated region
    $region22: #{tpu_custom_call.1} parent=1 // pred_check
      _
    $region23: #{tpu_custom_call.1} parent=1 // pred_check_branch
      %64 = sbr.rel (0) target = $region25
    $region24: #{tpu_custom_call.1} parent=1 // pred_region
      _
    $region25: #{tpu_custom_call.1} parent=1 // pred_fallthru
      _
    // Predicated region
    $region26: #{tpu_custom_call.1} parent=1 // pred_check
      _
    $region27: #{tpu_custom_call.1} parent=1 // pred_check_branch
      %66 = sbr.rel (0) target = $region29
    $region28: #{tpu_custom_call.1} parent=1 // pred_region
      %67 = dma.done [#allocation3], 64
    $region29: #{tpu_custom_call.1} parent=1 // pred_fallthru
      _
    // Predicated region
    $region30: #{tpu_custom_call.1} parent=1 // pred_check
      _
    $region31: #{tpu_custom_call.1} parent=1 // pred_check_branch
      %69 = sbr.rel (0) target = $region33
    $region32: #{tpu_custom_call.1} parent=1 // pred_region
      %70 = dma.done [#allocation6], 8192
    $region33: #{tpu_custom_call.1} parent=1 // pred_fallthru
      _
    // Predicated region
    $region34: #{tpu_custom_call.1} parent=1 // pred_check
      _
    $region35: #{tpu_custom_call.1} parent=1 // pred_check_branch
      %72 = sbr.rel (0) target = $region37
    $region36: #{tpu_custom_call.1} parent=1 // pred_region
      %73 = dma.done [#allocation6], 8192
    $region37: #{tpu_custom_call.1} parent=1 // pred_fallthru
      _
    // Predicated region
    $region38: #{tpu_custom_call.1} parent=1 // pred_check
      _
    $region39: #{tpu_custom_call.1} parent=1 // pred_check_branch
      %75 = sbr.rel (0) target = $region41
    $region40: #{tpu_custom_call.1} parent=1 // pred_region
      %76 = dma.done [#allocation9], 8192
    $region41: #{tpu_custom_call.1} parent=1 // pred_fallthru
      _
    %v77 = vld [vmem:[#allocation2] sm:$0xf]
    %v78 = vmul.f32 %v77, %v77
    %v79 = vld [vmem:[#allocation5] sm:$0xff]
    %v80 = vld [vmem:[#allocation5 + $0x8] sm:$0xff]
    %v81 = vld [vmem:[#allocation5 + $0x10] sm:$0xff]
    %v82 = vld [vmem:[#allocation5 + $0x18] sm:$0xff]
    %v83 = vld [vmem:[#allocation5 + $0x20] sm:$0xff]
    %v84 = vld [vmem:[#allocation5 + $0x28] sm:$0xff]
    %v85 = vld [vmem:[#allocation5 + $0x30] sm:$0xff]
    %v86 = vld [vmem:[#allocation5 + $0x38] sm:$0xff]
    %v87 = vld [vmem:[#allocation5 + $0x40] sm:$0xff]
    %v88 = vld [vmem:[#allocation5 + $0x48] sm:$0xff]
    %v89 = vld [vmem:[#allocation5 + $0x50] sm:$0xff]
    %v90 = vld [vmem:[#allocation5 + $0x58] sm:$0xff]
    %v91 = vld [vmem:[#allocation5 + $0x60] sm:$0xff]
    %v92 = vld [vmem:[#allocation5 + $0x68] sm:$0xff]
    %v93 = vld [vmem:[#allocation5 + $0x70] sm:$0xff]
    %v94 = vld [vmem:[#allocation5 + $0x78] sm:$0xff]
    %v95 = vld [vmem:[#allocation5 + $0x80] sm:$0xff]
    %v96 = vld [vmem:[#allocation5 + $0x88] sm:$0xff]
    %v97 = vld [vmem:[#allocation5 + $0x90] sm:$0xff]
    %v98 = vld [vmem:[#allocation5 + $0x98] sm:$0xff]
    %v99 = vld [vmem:[#allocation5 + $0xa0] sm:$0xff]
    %v100 = vld [vmem:[#allocation5 + $0xa8] sm:$0xff]
    %v101 = vld [vmem:[#allocation5 + $0xb0] sm:$0xff]
    %v102 = vld [vmem:[#allocation5 + $0xb8] sm:$0xff]
    %v103 = vld [vmem:[#allocation5 + $0xc0] sm:$0xff]
    %v104 = vld [vmem:[#allocation5 + $0xc8] sm:$0xff]
    %v105 = vld [vmem:[#allocation5 + $0xd0] sm:$0xff]
    %v106 = vld [vmem:[#allocation5 + $0xd8] sm:$0xff]
    %v107 = vld [vmem:[#allocation5 + $0xe0] sm:$0xff]
    %v108 = vld [vmem:[#allocation5 + $0xe8] sm:$0xff]
    %v109 = vld [vmem:[#allocation5 + $0xf0] sm:$0xff]
    %v110 = vld [vmem:[#allocation5 + $0xf8] sm:$0xff]
    %v111 = vld [vmem:[#allocation5 + $0x100] sm:$0xff]
    %v112 = vld [vmem:[#allocation5 + $0x108] sm:$0xff]
    %v113 = vld [vmem:[#allocation5 + $0x110] sm:$0xff]
    %v114 = vld [vmem:[#allocation5 + $0x118] sm:$0xff]
    %v115 = vld [vmem:[#allocation5 + $0x120] sm:$0xff]
    %v116 = vld [vmem:[#allocation5 + $0x128] sm:$0xff]
    %v117 = vld [vmem:[#allocation5 + $0x130] sm:$0xff]
    %v118 = vld [vmem:[#allocation5 + $0x138] sm:$0xff]
    %v119 = vld [vmem:[#allocation5 + $0x140] sm:$0xff]
    %v120 = vld [vmem:[#allocation5 + $0x148] sm:$0xff]
    %v121 = vld [vmem:[#allocation5 + $0x150] sm:$0xff]
    %v122 = vld [vmem:[#allocation5 + $0x158] sm:$0xff]
    %v123 = vld [vmem:[#allocation5 + $0x160] sm:$0xff]
    %v124 = vld [vmem:[#allocation5 + $0x168] sm:$0xff]
    %v125 = vld [vmem:[#allocation5 + $0x170] sm:$0xff]
    %v126 = vld [vmem:[#allocation5 + $0x178] sm:$0xff]
    %v127 = vld [vmem:[#allocation5 + $0x180] sm:$0xff]
    %v128 = vld [vmem:[#allocation5 + $0x188] sm:$0xff]
    %v129 = vld [vmem:[#allocation5 + $0x190] sm:$0xff]
    %v130 = vld [vmem:[#allocation5 + $0x198] sm:$0xff]
    %v131 = vld [vmem:[#allocation5 + $0x1a0] sm:$0xff]
    %v132 = vld [vmem:[#allocation5 + $0x1a8] sm:$0xff]
    %v133 = vld [vmem:[#allocation5 + $0x1b0] sm:$0xff]
    %v134 = vld [vmem:[#allocation5 + $0x1b8] sm:$0xff]
    %v135 = vld [vmem:[#allocation5 + $0x1c0] sm:$0xff]
    %v136 = vld [vmem:[#allocation5 + $0x1c8] sm:$0xff]
    %v137 = vld [vmem:[#allocation5 + $0x1d0] sm:$0xff]
    %v138 = vld [vmem:[#allocation5 + $0x1d8] sm:$0xff]
    %v139 = vld [vmem:[#allocation5 + $0x1e0] sm:$0xff]
    %v140 = vld [vmem:[#allocation5 + $0x1e8] sm:$0xff]
    %v141 = vld [vmem:[#allocation5 + $0x1f0] sm:$0xff]
    %v142 = vld [vmem:[#allocation5 + $0x1f8] sm:$0xff]
    %v143 = vand.u32 %v110, 4294901760
    %144 = vmatprep.subr.mxu0 %v143
    %v145 = vand.u32 %v109, 4294901760
    %146 = vmatpush1.msra.mxu0 %v145
    %v147 = vand.u32 %v108, 4294901760
    %148 = vmatprep.subr.mxu0 %v147
    %v149 = vand.u32 %v107, 4294901760
    %150 = vmatpush1.msra.mxu0 %v149
    %v151 = vand.u32 %v106, 4294901760
    %152 = vmatprep.subr.mxu0 %v151
    %v153 = vand.u32 %v105, 4294901760
    %154 = vmatpush1.msra.mxu0 %v153
    %v155 = vand.u32 %v104, 4294901760
    %156 = vmatprep.subr.mxu0 %v155
    %v157 = vand.u32 %v103, 4294901760
    %158 = vmatpush1.msra.mxu0 %v157
    %v159 = vand.u32 %v102, 4294901760
    %160 = vmatprep.subr.mxu0 %v159
    %v161 = vand.u32 %v101, 4294901760
    %162 = vmatpush1.msra.mxu0 %v161
    %v163 = vand.u32 %v100, 4294901760
    %164 = vmatprep.subr.mxu0 %v163
    %v165 = vand.u32 %v99, 4294901760
    %166 = vmatpush1.msra.mxu0 %v165
    %v167 = vand.u32 %v98, 4294901760
    %168 = vmatprep.subr.mxu0 %v167
    %v169 = vand.u32 %v97, 4294901760
    %170 = vmatpush1.msra.mxu0 %v169
    %v171 = vand.u32 %v96, 4294901760
    %172 = vmatprep.subr.mxu0 %v171
    %v173 = vand.u32 %v95, 4294901760
    %174 = vmatpush1.msra.mxu0 %v173
    %v175 = vand.u32 %v94, 4294901760
    %176 = vmatprep.subr.mxu0 %v175
    %v177 = vand.u32 %v93, 4294901760
    %178 = vmatpush1.msra.mxu0 %v177
    %v179 = vand.u32 %v92, 4294901760
    %180 = vmatprep.subr.mxu0 %v179
    %v181 = vand.u32 %v91, 4294901760
    %182 = vmatpush1.msra.mxu0 %v181
    %v183 = vand.u32 %v90, 4294901760
    %184 = vmatprep.subr.mxu0 %v183
    %v185 = vand.u32 %v89, 4294901760
    %186 = vmatpush1.msra.mxu0 %v185
    %v187 = vand.u32 %v88, 4294901760
    %188 = vmatprep.subr.mxu0 %v187
    %v189 = vand.u32 %v87, 4294901760
    %190 = vmatpush1.msra.mxu0 %v189
    %v191 = vand.u32 %v86, 4294901760
    %192 = vmatprep.subr.mxu0 %v191
    %v193 = vand.u32 %v85, 4294901760
    %194 = vmatpush1.msra.mxu0 %v193
    %v195 = vand.u32 %v84, 4294901760
    %196 = vmatprep.subr.mxu0 %v195
    %v197 = vand.u32 %v83, 4294901760
    %198 = vmatpush1.msra.mxu0 %v197
    %v199 = vand.u32 %v82, 4294901760
    %200 = vmatprep.subr.mxu0 %v199
    %v201 = vand.u32 %v81, 4294901760
    %202 = vmatpush1.msra.mxu0 %v201
    %v203 = vand.u32 %v80, 4294901760
    %204 = vmatprep.subr.mxu0 %v203
    %v205 = vand.u32 %v79, 4294901760
    %206 = vmatpush1.msra.mxu0 %v205
    %v207 = vand.u32 %v142, 4294901760
    %208 = vmatprep.subr.mxu0 %v207
    %v209 = vand.u32 %v141, 4294901760
    %210 = vmatpush2.msra.mxu0 %v209
    %v211 = vand.u32 %v140, 4294901760
    %212 = vmatprep.subr.mxu0 %v211
    %v213 = vand.u32 %v139, 4294901760
    %214 = vmatpush2.msra.mxu0 %v213
    %v215 = vand.u32 %v138, 4294901760
    %216 = vmatprep.subr.mxu0 %v215
    %v217 = vand.u32 %v137, 4294901760
    %218 = vmatpush2.msra.mxu0 %v217
    %v219 = vand.u32 %v136, 4294901760
    %220 = vmatprep.subr.mxu0 %v219
    %v221 = vand.u32 %v135, 4294901760
    %222 = vmatpush2.msra.mxu0 %v221
    %v223 = vand.u32 %v134, 4294901760
    %224 = vmatprep.subr.mxu0 %v223
    %v225 = vand.u32 %v133, 4294901760
    %226 = vmatpush2.msra.mxu0 %v225
    %v227 = vand.u32 %v132, 4294901760
    %228 = vmatprep.subr.mxu0 %v227
    %v229 = vand.u32 %v131, 4294901760
    %230 = vmatpush2.msra.mxu0 %v229
    %v231 = vand.u32 %v130, 4294901760
    %232 = vmatprep.subr.mxu0 %v231
    %v233 = vand.u32 %v129, 4294901760
    %234 = vmatpush2.msra.mxu0 %v233
    %v235 = vand.u32 %v128, 4294901760
    %236 = vmatprep.subr.mxu0 %v235
    %v237 = vand.u32 %v127, 4294901760
    %238 = vmatpush2.msra.mxu0 %v237
    %v239 = vand.u32 %v126, 4294901760
    %240 = vmatprep.subr.mxu0 %v239
    %v241 = vand.u32 %v125, 4294901760
    %242 = vmatpush2.msra.mxu0 %v241
    %v243 = vand.u32 %v124, 4294901760
    %244 = vmatprep.subr.mxu0 %v243
    %v245 = vand.u32 %v123, 4294901760
    %246 = vmatpush2.msra.mxu0 %v245
    %v247 = vand.u32 %v122, 4294901760
    %248 = vmatprep.subr.mxu0 %v247
    %v249 = vand.u32 %v121, 4294901760
    %250 = vmatpush2.msra.mxu0 %v249
    %v251 = vand.u32 %v120, 4294901760
    %252 = vmatprep.subr.mxu0 %v251
    %v253 = vand.u32 %v119, 4294901760
    %254 = vmatpush2.msra.mxu0 %v253
    %v255 = vand.u32 %v118, 4294901760
    %256 = vmatprep.subr.mxu0 %v255
    %v257 = vand.u32 %v117, 4294901760
    %258 = vmatpush2.msra.mxu0 %v257
    %v259 = vand.u32 %v116, 4294901760
    %260 = vmatprep.subr.mxu0 %v259
    %v261 = vand.u32 %v115, 4294901760
    %262 = vmatpush2.msra.mxu0 %v261
    %v263 = vand.u32 %v114, 4294901760
    %264 = vmatprep.subr.mxu0 %v263
    %v265 = vand.u32 %v113, 4294901760
    %266 = vmatpush2.msra.mxu0 %v265
    %v267 = vand.u32 %v112, 4294901760
    %268 = vmatprep.subr.mxu0 %v267
    %v269 = vand.u32 %v111, 4294901760
    %270 = vmatpush2.msra.mxu0 %v269
    %v271 = vand.u32 %v78, 4294901760
    %v272 = vsub.f32 %v78, %v271
    %v273 = vand.u32 %v272, 4294901760
    %v274 = vsub.f32 %v272, %v273
    %v275 = vand.u32 %v274, 4294901760
    %276 = vmatprep.mubr.f32.mxu0 %v275
    %v277 = vand.u32 %v77, 4294901760
    %v278 = vsub.f32 %v77, %v277
    %v279 = vand.u32 %v278, 4294901760
    %v280 = vsub.f32 %v278, %v279
    %v281 = vand.u32 %v280, 4294901760
    %282 = vmatmul.mubr.f32.gmra.mxu0 %v281
    %v283 = vpop.f32.mrf.mxu0
    %v284 = vadd.f32 0.0, %v283
    %v285 = vpop.f32.mrf.mxu0
    %v286 = vadd.f32 0.0, %v285
    %287 = vdwg.mxu0
    %v288 = vand.u32 %v110, 4294901760
    %v289 = vsub.f32 %v110, %v288
    %v290 = vand.u32 %v289, 4294901760
    %v291 = vsub.f32 %v289, %v290
    %v292 = vand.u32 %v291, 4294901760
    %293 = vmatprep.subr.mxu0 %v292
    %v294 = vand.u32 %v109, 4294901760
    %v295 = vsub.f32 %v109, %v294
    %v296 = vand.u32 %v295, 4294901760
    %v297 = vsub.f32 %v295, %v296
    %v298 = vand.u32 %v297, 4294901760
    %299 = vmatpush1.msra.mxu0 %v298
    %v300 = vand.u32 %v108, 4294901760
    %v301 = vsub.f32 %v108, %v300
    %v302 = vand.u32 %v301, 4294901760
    %v303 = vsub.f32 %v301, %v302
    %v304 = vand.u32 %v303, 4294901760
    %305 = vmatprep.subr.mxu0 %v304
    %v306 = vand.u32 %v107, 4294901760
    %v307 = vsub.f32 %v107, %v306
    %v308 = vand.u32 %v307, 4294901760
    %v309 = vsub.f32 %v307, %v308
    %v310 = vand.u32 %v309, 4294901760
    %311 = vmatpush1.msra.mxu0 %v310
    %v312 = vand.u32 %v106, 4294901760
    %v313 = vsub.f32 %v106, %v312
    %v314 = vand.u32 %v313, 4294901760
    %v315 = vsub.f32 %v313, %v314
    %v316 = vand.u32 %v315, 4294901760
    %317 = vmatprep.subr.mxu0 %v316
    %v318 = vand.u32 %v105, 4294901760
    %v319 = vsub.f32 %v105, %v318
    %v320 = vand.u32 %v319, 4294901760
    %v321 = vsub.f32 %v319, %v320
    %v322 = vand.u32 %v321, 4294901760
    %323 = vmatpush1.msra.mxu0 %v322
    %v324 = vand.u32 %v104, 4294901760
    %v325 = vsub.f32 %v104, %v324
    %v326 = vand.u32 %v325, 4294901760
    %v327 = vsub.f32 %v325, %v326
    %v328 = vand.u32 %v327, 4294901760
    %329 = vmatprep.subr.mxu0 %v328
    %v330 = vand.u32 %v103, 4294901760
    %v331 = vsub.f32 %v103, %v330
    %v332 = vand.u32 %v331, 4294901760
    %v333 = vsub.f32 %v331, %v332
    %v334 = vand.u32 %v333, 4294901760
    %335 = vmatpush1.msra.mxu0 %v334
    %v336 = vand.u32 %v102, 4294901760
    %v337 = vsub.f32 %v102, %v336
    %v338 = vand.u32 %v337, 4294901760
    %v339 = vsub.f32 %v337, %v338
    %v340 = vand.u32 %v339, 4294901760
    %341 = vmatprep.subr.mxu0 %v340
    %v342 = vand.u32 %v101, 4294901760
    %v343 = vsub.f32 %v101, %v342
    %v344 = vand.u32 %v343, 4294901760
    %v345 = vsub.f32 %v343, %v344
    %v346 = vand.u32 %v345, 4294901760
    %347 = vmatpush1.msra.mxu0 %v346
    %v348 = vand.u32 %v100, 4294901760
    %v349 = vsub.f32 %v100, %v348
    %v350 = vand.u32 %v349, 4294901760
    %v351 = vsub.f32 %v349, %v350
    %v352 = vand.u32 %v351, 4294901760
    %353 = vmatprep.subr.mxu0 %v352
    %v354 = vand.u32 %v99, 4294901760
    %v355 = vsub.f32 %v99, %v354
    %v356 = vand.u32 %v355, 4294901760
    %v357 = vsub.f32 %v355, %v356
    %v358 = vand.u32 %v357, 4294901760
    %359 = vmatpush1.msra.mxu0 %v358
    %v360 = vand.u32 %v98, 4294901760
    %v361 = vsub.f32 %v98, %v360
    %v362 = vand.u32 %v361, 4294901760
    %v363 = vsub.f32 %v361, %v362
    %v364 = vand.u32 %v363, 4294901760
    %365 = vmatprep.subr.mxu0 %v364
    %v366 = vand.u32 %v97, 4294901760
    %v367 = vsub.f32 %v97, %v366
    %v368 = vand.u32 %v367, 4294901760
    %v369 = vsub.f32 %v367, %v368
    %v370 = vand.u32 %v369, 4294901760
    %371 = vmatpush1.msra.mxu0 %v370
    %v372 = vand.u32 %v96, 4294901760
    %v373 = vsub.f32 %v96, %v372
    %v374 = vand.u32 %v373, 4294901760
    %v375 = vsub.f32 %v373, %v374
    %v376 = vand.u32 %v375, 4294901760
    %377 = vmatprep.subr.mxu0 %v376
    %v378 = vand.u32 %v95, 4294901760
    %v379 = vsub.f32 %v95, %v378
    %v380 = vand.u32 %v379, 4294901760
    %v381 = vsub.f32 %v379, %v380
    %v382 = vand.u32 %v381, 4294901760
    %383 = vmatpush1.msra.mxu0 %v382
    %v384 = vand.u32 %v94, 4294901760
    %v385 = vsub.f32 %v94, %v384
    %v386 = vand.u32 %v385, 4294901760
    %v387 = vsub.f32 %v385, %v386
    %v388 = vand.u32 %v387, 4294901760
    %389 = vmatprep.subr.mxu0 %v388
    %v390 = vand.u32 %v93, 4294901760
    %v391 = vsub.f32 %v93, %v390
    %v392 = vand.u32 %v391, 4294901760
    %v393 = vsub.f32 %v391, %v392
    %v394 = vand.u32 %v393, 4294901760
    %395 = vmatpush1.msra.mxu0 %v394
    %v396 = vand.u32 %v92, 4294901760
    %v397 = vsub.f32 %v92, %v396
    %v398 = vand.u32 %v397, 4294901760
    %v399 = vsub.f32 %v397, %v398
    %v400 = vand.u32 %v399, 4294901760
    %401 = vmatprep.subr.mxu0 %v400
    %v402 = vand.u32 %v91, 4294901760
    %v403 = vsub.f32 %v91, %v402
    %v404 = vand.u32 %v403, 4294901760
    %v405 = vsub.f32 %v403, %v404
    %v406 = vand.u32 %v405, 4294901760
    %407 = vmatpush1.msra.mxu0 %v406
    %v408 = vand.u32 %v90, 4294901760
    %v409 = vsub.f32 %v90, %v408
    %v410 = vand.u32 %v409, 4294901760
    %v411 = vsub.f32 %v409, %v410
    %v412 = vand.u32 %v411, 4294901760
    %413 = vmatprep.subr.mxu0 %v412
    %v414 = vand.u32 %v89, 4294901760
    %v415 = vsub.f32 %v89, %v414
    %v416 = vand.u32 %v415, 4294901760
    %v417 = vsub.f32 %v415, %v416
    %v418 = vand.u32 %v417, 4294901760
    %419 = vmatpush1.msra.mxu0 %v418
    %v420 = vand.u32 %v88, 4294901760
    %v421 = vsub.f32 %v88, %v420
    %v422 = vand.u32 %v421, 4294901760
    %v423 = vsub.f32 %v421, %v422
    %v424 = vand.u32 %v423, 4294901760
    %425 = vmatprep.subr.mxu0 %v424
    %v426 = vand.u32 %v87, 4294901760
    %v427 = vsub.f32 %v87, %v426
    %v428 = vand.u32 %v427, 4294901760
    %v429 = vsub.f32 %v427, %v428
    %v430 = vand.u32 %v429, 4294901760
    %431 = vmatpush1.msra.mxu0 %v430
    %v432 = vand.u32 %v86, 4294901760
    %v433 = vsub.f32 %v86, %v432
    %v434 = vand.u32 %v433, 4294901760
    %v435 = vsub.f32 %v433, %v434
    %v436 = vand.u32 %v435, 4294901760
    %437 = vmatprep.subr.mxu0 %v436
    %v438 = vand.u32 %v85, 4294901760
    %v439 = vsub.f32 %v85, %v438
    %v440 = vand.u32 %v439, 4294901760
    %v441 = vsub.f32 %v439, %v440
    %v442 = vand.u32 %v441, 4294901760
    %443 = vmatpush1.msra.mxu0 %v442
    %v444 = vand.u32 %v84, 4294901760
    %v445 = vsub.f32 %v84, %v444
    %v446 = vand.u32 %v445, 4294901760
    %v447 = vsub.f32 %v445, %v446
    %v448 = vand.u32 %v447, 4294901760
    %449 = vmatprep.subr.mxu0 %v448
    %v450 = vand.u32 %v83, 4294901760
    %v451 = vsub.f32 %v83, %v450
    %v452 = vand.u32 %v451, 4294901760
    %v453 = vsub.f32 %v451, %v452
    %v454 = vand.u32 %v453, 4294901760
    %455 = vmatpush1.msra.mxu0 %v454
    %v456 = vand.u32 %v82, 4294901760
    %v457 = vsub.f32 %v82, %v456
    %v458 = vand.u32 %v457, 4294901760
    %v459 = vsub.f32 %v457, %v458
    %v460 = vand.u32 %v459, 4294901760
    %461 = vmatprep.subr.mxu0 %v460
    %v462 = vand.u32 %v81, 4294901760
    %v463 = vsub.f32 %v81, %v462
    %v464 = vand.u32 %v463, 4294901760
    %v465 = vsub.f32 %v463, %v464
    %v466 = vand.u32 %v465, 4294901760
    %467 = vmatpush1.msra.mxu0 %v466
    %v468 = vand.u32 %v80, 4294901760
    %v469 = vsub.f32 %v80, %v468
    %v470 = vand.u32 %v469, 4294901760
    %v471 = vsub.f32 %v469, %v470
    %v472 = vand.u32 %v471, 4294901760
    %473 = vmatprep.subr.mxu0 %v472
    %v474 = vand.u32 %v79, 4294901760
    %v475 = vsub.f32 %v79, %v474
    %v476 = vand.u32 %v475, 4294901760
    %v477 = vsub.f32 %v475, %v476
    %v478 = vand.u32 %v477, 4294901760
    %479 = vmatpush1.msra.mxu0 %v478
    %v480 = vand.u32 %v142, 4294901760
    %v481 = vsub.f32 %v142, %v480
    %v482 = vand.u32 %v481, 4294901760
    %v483 = vsub.f32 %v481, %v482
    %v484 = vand.u32 %v483, 4294901760
    %485 = vmatprep.subr.mxu0 %v484
    %v486 = vand.u32 %v141, 4294901760
    %v487 = vsub.f32 %v141, %v486
    %v488 = vand.u32 %v487, 4294901760
    %v489 = vsub.f32 %v487, %v488
    %v490 = vand.u32 %v489, 4294901760
    %491 = vmatpush2.msra.mxu0 %v490
    %v492 = vand.u32 %v140, 4294901760
    %v493 = vsub.f32 %v140, %v492
    %v494 = vand.u32 %v493, 4294901760
    %v495 = vsub.f32 %v493, %v494
    %v496 = vand.u32 %v495, 4294901760
    %497 = vmatprep.subr.mxu0 %v496
    %v498 = vand.u32 %v139, 4294901760
    %v499 = vsub.f32 %v139, %v498
    %v500 = vand.u32 %v499, 4294901760
    %v501 = vsub.f32 %v499, %v500
    %v502 = vand.u32 %v501, 4294901760
    %503 = vmatpush2.msra.mxu0 %v502
    %v504 = vand.u32 %v138, 4294901760
    %v505 = vsub.f32 %v138, %v504
    %v506 = vand.u32 %v505, 4294901760
    %v507 = vsub.f32 %v505, %v506
    %v508 = vand.u32 %v507, 4294901760
    %509 = vmatprep.subr.mxu0 %v508
    %v510 = vand.u32 %v137, 4294901760
    %v511 = vsub.f32 %v137, %v510
    %v512 = vand.u32 %v511, 4294901760
    %v513 = vsub.f32 %v511, %v512
    %v514 = vand.u32 %v513, 4294901760
    %515 = vmatpush2.msra.mxu0 %v514
    %v516 = vand.u32 %v136, 4294901760
    %v517 = vsub.f32 %v136, %v516
    %v518 = vand.u32 %v517, 4294901760
    %v519 = vsub.f32 %v517, %v518
    %v520 = vand.u32 %v519, 4294901760
    %521 = vmatprep.subr.mxu0 %v520
    %v522 = vand.u32 %v135, 4294901760
    %v523 = vsub.f32 %v135, %v522
    %v524 = vand.u32 %v523, 4294901760
    %v525 = vsub.f32 %v523, %v524
    %v526 = vand.u32 %v525, 4294901760
    %527 = vmatpush2.msra.mxu0 %v526
    %v528 = vand.u32 %v134, 4294901760
    %v529 = vsub.f32 %v134, %v528
    %v530 = vand.u32 %v529, 4294901760
    %v531 = vsub.f32 %v529, %v530
    %v532 = vand.u32 %v531, 4294901760
    %533 = vmatprep.subr.mxu0 %v532
    %v534 = vand.u32 %v133, 4294901760
    %v535 = vsub.f32 %v133, %v534
    %v536 = vand.u32 %v535, 4294901760
    %v537 = vsub.f32 %v535, %v536
    %v538 = vand.u32 %v537, 4294901760
    %539 = vmatpush2.msra.mxu0 %v538
    %v540 = vand.u32 %v132, 4294901760
    %v541 = vsub.f32 %v132, %v540
    %v542 = vand.u32 %v541, 4294901760
    %v543 = vsub.f32 %v541, %v542
    %v544 = vand.u32 %v543, 4294901760
    %545 = vmatprep.subr.mxu0 %v544
    %v546 = vand.u32 %v131, 4294901760
    %v547 = vsub.f32 %v131, %v546
    %v548 = vand.u32 %v547, 4294901760
    %v549 = vsub.f32 %v547, %v548
    %v550 = vand.u32 %v549, 4294901760
    %551 = vmatpush2.msra.mxu0 %v550
    %v552 = vand.u32 %v130, 4294901760
    %v553 = vsub.f32 %v130, %v552
    %v554 = vand.u32 %v553, 4294901760
    %v555 = vsub.f32 %v553, %v554
    %v556 = vand.u32 %v555, 4294901760
    %557 = vmatprep.subr.mxu0 %v556
    %v558 = vand.u32 %v129, 4294901760
    %v559 = vsub.f32 %v129, %v558
    %v560 = vand.u32 %v559, 4294901760
    %v561 = vsub.f32 %v559, %v560
    %v562 = vand.u32 %v561, 4294901760
    %563 = vmatpush2.msra.mxu0 %v562
    %v564 = vand.u32 %v128, 4294901760
    %v565 = vsub.f32 %v128, %v564
    %v566 = vand.u32 %v565, 4294901760
    %v567 = vsub.f32 %v565, %v566
    %v568 = vand.u32 %v567, 4294901760
    %569 = vmatprep.subr.mxu0 %v568
    %v570 = vand.u32 %v127, 4294901760
    %v571 = vsub.f32 %v127, %v570
    %v572 = vand.u32 %v571, 4294901760
    %v573 = vsub.f32 %v571, %v572
    %v574 = vand.u32 %v573, 4294901760
    %575 = vmatpush2.msra.mxu0 %v574
    %v576 = vand.u32 %v126, 4294901760
    %v577 = vsub.f32 %v126, %v576
    %v578 = vand.u32 %v577, 4294901760
    %v579 = vsub.f32 %v577, %v578
    %v580 = vand.u32 %v579, 4294901760
    %581 = vmatprep.subr.mxu0 %v580
    %v582 = vand.u32 %v125, 4294901760
    %v583 = vsub.f32 %v125, %v582
    %v584 = vand.u32 %v583, 4294901760
    %v585 = vsub.f32 %v583, %v584
    %v586 = vand.u32 %v585, 4294901760
    %587 = vmatpush2.msra.mxu0 %v586
    %v588 = vand.u32 %v124, 4294901760
    %v589 = vsub.f32 %v124, %v588
    %v590 = vand.u32 %v589, 4294901760
    %v591 = vsub.f32 %v589, %v590
    %v592 = vand.u32 %v591, 4294901760
    %593 = vmatprep.subr.mxu0 %v592
    %v594 = vand.u32 %v123, 4294901760
    %v595 = vsub.f32 %v123, %v594
    %v596 = vand.u32 %v595, 4294901760
    %v597 = vsub.f32 %v595, %v596
    %v598 = vand.u32 %v597, 4294901760
    %599 = vmatpush2.msra.mxu0 %v598
    %v600 = vand.u32 %v122, 4294901760
    %v601 = vsub.f32 %v122, %v600
    %v602 = vand.u32 %v601, 4294901760
    %v603 = vsub.f32 %v601, %v602
    %v604 = vand.u32 %v603, 4294901760
    %605 = vmatprep.subr.mxu0 %v604
    %v606 = vand.u32 %v121, 4294901760
    %v607 = vsub.f32 %v121, %v606
    %v608 = vand.u32 %v607, 4294901760
    %v609 = vsub.f32 %v607, %v608
    %v610 = vand.u32 %v609, 4294901760
    %611 = vmatpush2.msra.mxu0 %v610
    %v612 = vand.u32 %v120, 4294901760
    %v613 = vsub.f32 %v120, %v612
    %v614 = vand.u32 %v613, 4294901760
    %v615 = vsub.f32 %v613, %v614
    %v616 = vand.u32 %v615, 4294901760
    %617 = vmatprep.subr.mxu0 %v616
    %v618 = vand.u32 %v119, 4294901760
    %v619 = vsub.f32 %v119, %v618
    %v620 = vand.u32 %v619, 4294901760
    %v621 = vsub.f32 %v619, %v620
    %v622 = vand.u32 %v621, 4294901760
    %623 = vmatpush2.msra.mxu0 %v622
    %v624 = vand.u32 %v118, 4294901760
    %v625 = vsub.f32 %v118, %v624
    %v626 = vand.u32 %v625, 4294901760
    %v627 = vsub.f32 %v625, %v626
    %v628 = vand.u32 %v627, 4294901760
    %629 = vmatprep.subr.mxu0 %v628
    %v630 = vand.u32 %v117, 4294901760
    %v631 = vsub.f32 %v117, %v630
    %v632 = vand.u32 %v631, 4294901760
    %v633 = vsub.f32 %v631, %v632
    %v634 = vand.u32 %v633, 4294901760
    %635 = vmatpush2.msra.mxu0 %v634
    %v636 = vand.u32 %v116, 4294901760
    %v637 = vsub.f32 %v116, %v636
    %v638 = vand.u32 %v637, 4294901760
    %v639 = vsub.f32 %v637, %v638
    %v640 = vand.u32 %v639, 4294901760
    %641 = vmatprep.subr.mxu0 %v640
    %v642 = vand.u32 %v115, 4294901760
    %v643 = vsub.f32 %v115, %v642
    %v644 = vand.u32 %v643, 4294901760
    %v645 = vsub.f32 %v643, %v644
    %v646 = vand.u32 %v645, 4294901760
    %647 = vmatpush2.msra.mxu0 %v646
    %v648 = vand.u32 %v114, 4294901760
    %v649 = vsub.f32 %v114, %v648
    %v650 = vand.u32 %v649, 4294901760
    %v651 = vsub.f32 %v649, %v650
    %v652 = vand.u32 %v651, 4294901760
    %653 = vmatprep.subr.mxu0 %v652
    %v654 = vand.u32 %v113, 4294901760
    %v655 = vsub.f32 %v113, %v654
    %v656 = vand.u32 %v655, 4294901760
    %v657 = vsub.f32 %v655, %v656
    %v658 = vand.u32 %v657, 4294901760
    %659 = vmatpush2.msra.mxu0 %v658
    %v660 = vand.u32 %v112, 4294901760
    %v661 = vsub.f32 %v112, %v660
    %v662 = vand.u32 %v661, 4294901760
    %v663 = vsub.f32 %v661, %v662
    %v664 = vand.u32 %v663, 4294901760
    %665 = vmatprep.subr.mxu0 %v664
    %v666 = vand.u32 %v111, 4294901760
    %v667 = vsub.f32 %v111, %v666
    %v668 = vand.u32 %v667, 4294901760
    %v669 = vsub.f32 %v667, %v668
    %v670 = vand.u32 %v669, 4294901760
    %671 = vmatpush2.msra.mxu0 %v670
    %v672 = vand.u32 %v78, 4294901760
    %673 = vmatprep.mubr.f32.mxu0 %v672
    %v674 = vand.u32 %v77, 4294901760
    %675 = vmatmul.mubr.f32.gmra.mxu0 %v674
    %v676 = vpop.f32.mrf.mxu0
    %v677 = vadd.f32 %v284, %v676
    %v678 = vpop.f32.mrf.mxu0
    %v679 = vadd.f32 %v286, %v678
    %680 = vdwg.mxu0
    %v681 = vand.u32 %v110, 4294901760
    %v682 = vsub.f32 %v110, %v681
    %683 = vmatprep.subr.mxu0 %v682
    %v684 = vand.u32 %v109, 4294901760
    %v685 = vsub.f32 %v109, %v684
    %686 = vmatpush1.msra.mxu0 %v685
    %v687 = vand.u32 %v108, 4294901760
    %v688 = vsub.f32 %v108, %v687
    %689 = vmatprep.subr.mxu0 %v688
    %v690 = vand.u32 %v107, 4294901760
    %v691 = vsub.f32 %v107, %v690
    %692 = vmatpush1.msra.mxu0 %v691
    %v693 = vand.u32 %v106, 4294901760
    %v694 = vsub.f32 %v106, %v693
    %695 = vmatprep.subr.mxu0 %v694
    %v696 = vand.u32 %v105, 4294901760
    %v697 = vsub.f32 %v105, %v696
    %698 = vmatpush1.msra.mxu0 %v697
    %v699 = vand.u32 %v104, 4294901760
    %v700 = vsub.f32 %v104, %v699
    %701 = vmatprep.subr.mxu0 %v700
    %v702 = vand.u32 %v103, 4294901760
    %v703 = vsub.f32 %v103, %v702
    %704 = vmatpush1.msra.mxu0 %v703
    %v705 = vand.u32 %v102, 4294901760
    %v706 = vsub.f32 %v102, %v705
    %707 = vmatprep.subr.mxu0 %v706
    %v708 = vand.u32 %v101, 4294901760
    %v709 = vsub.f32 %v101, %v708
    %710 = vmatpush1.msra.mxu0 %v709
    %v711 = vand.u32 %v100, 4294901760
    %v712 = vsub.f32 %v100, %v711
    %713 = vmatprep.subr.mxu0 %v712
    %v714 = vand.u32 %v99, 4294901760
    %v715 = vsub.f32 %v99, %v714
    %716 = vmatpush1.msra.mxu0 %v715
    %v717 = vand.u32 %v98, 4294901760
    %v718 = vsub.f32 %v98, %v717
    %719 = vmatprep.subr.mxu0 %v718
    %v720 = vand.u32 %v97, 4294901760
    %v721 = vsub.f32 %v97, %v720
    %722 = vmatpush1.msra.mxu0 %v721
    %v723 = vand.u32 %v96, 4294901760
    %v724 = vsub.f32 %v96, %v723
    %725 = vmatprep.subr.mxu0 %v724
    %v726 = vand.u32 %v95, 4294901760
    %v727 = vsub.f32 %v95, %v726
    %728 = vmatpush1.msra.mxu0 %v727
    %v729 = vand.u32 %v94, 4294901760
    %v730 = vsub.f32 %v94, %v729
    %731 = vmatprep.subr.mxu0 %v730
    %v732 = vand.u32 %v93, 4294901760
    %v733 = vsub.f32 %v93, %v732
    %734 = vmatpush1.msra.mxu0 %v733
    %v735 = vand.u32 %v92, 4294901760
    %v736 = vsub.f32 %v92, %v735
    %737 = vmatprep.subr.mxu0 %v736
    %v738 = vand.u32 %v91, 4294901760
    %v739 = vsub.f32 %v91, %v738
    %740 = vmatpush1.msra.mxu0 %v739
    %v741 = vand.u32 %v90, 4294901760
    %v742 = vsub.f32 %v90, %v741
    %743 = vmatprep.subr.mxu0 %v742
    %v744 = vand.u32 %v89, 4294901760
    %v745 = vsub.f32 %v89, %v744
    %746 = vmatpush1.msra.mxu0 %v745
    %v747 = vand.u32 %v88, 4294901760
    %v748 = vsub.f32 %v88, %v747
    %749 = vmatprep.subr.mxu0 %v748
    %v750 = vand.u32 %v87, 4294901760
    %v751 = vsub.f32 %v87, %v750
    %752 = vmatpush1.msra.mxu0 %v751
    %v753 = vand.u32 %v86, 4294901760
    %v754 = vsub.f32 %v86, %v753
    %755 = vmatprep.subr.mxu0 %v754
    %v756 = vand.u32 %v85, 4294901760
    %v757 = vsub.f32 %v85, %v756
    %758 = vmatpush1.msra.mxu0 %v757
    %v759 = vand.u32 %v84, 4294901760
    %v760 = vsub.f32 %v84, %v759
    %761 = vmatprep.subr.mxu0 %v760
    %v762 = vand.u32 %v83, 4294901760
    %v763 = vsub.f32 %v83, %v762
    %764 = vmatpush1.msra.mxu0 %v763
    %v765 = vand.u32 %v82, 4294901760
    %v766 = vsub.f32 %v82, %v765
    %767 = vmatprep.subr.mxu0 %v766
    %v768 = vand.u32 %v81, 4294901760
    %v769 = vsub.f32 %v81, %v768
    %770 = vmatpush1.msra.mxu0 %v769
    %v771 = vand.u32 %v80, 4294901760
    %v772 = vsub.f32 %v80, %v771
    %773 = vmatprep.subr.mxu0 %v772
    %v774 = vand.u32 %v79, 4294901760
    %v775 = vsub.f32 %v79, %v774
    %776 = vmatpush1.msra.mxu0 %v775
    %v777 = vand.u32 %v142, 4294901760
    %v778 = vsub.f32 %v142, %v777
    %779 = vmatprep.subr.mxu0 %v778
    %v780 = vand.u32 %v141, 4294901760
    %v781 = vsub.f32 %v141, %v780
    %782 = vmatpush2.msra.mxu0 %v781
    %v783 = vand.u32 %v140, 4294901760
    %v784 = vsub.f32 %v140, %v783
    %785 = vmatprep.subr.mxu0 %v784
    %v786 = vand.u32 %v139, 4294901760
    %v787 = vsub.f32 %v139, %v786
    %788 = vmatpush2.msra.mxu0 %v787
    %v789 = vand.u32 %v138, 4294901760
    %v790 = vsub.f32 %v138, %v789
    %791 = vmatprep.subr.mxu0 %v790
    %v792 = vand.u32 %v137, 4294901760
    %v793 = vsub.f32 %v137, %v792
    %794 = vmatpush2.msra.mxu0 %v793
    %v795 = vand.u32 %v136, 4294901760
    %v796 = vsub.f32 %v136, %v795
    %797 = vmatprep.subr.mxu0 %v796
    %v798 = vand.u32 %v135, 4294901760
    %v799 = vsub.f32 %v135, %v798
    %800 = vmatpush2.msra.mxu0 %v799
    %v801 = vand.u32 %v134, 4294901760
    %v802 = vsub.f32 %v134, %v801
    %803 = vmatprep.subr.mxu0 %v802
    %v804 = vand.u32 %v133, 4294901760
    %v805 = vsub.f32 %v133, %v804
    %806 = vmatpush2.msra.mxu0 %v805
    %v807 = vand.u32 %v132, 4294901760
    %v808 = vsub.f32 %v132, %v807
    %809 = vmatprep.subr.mxu0 %v808
    %v810 = vand.u32 %v131, 4294901760
    %v811 = vsub.f32 %v131, %v810
    %812 = vmatpush2.msra.mxu0 %v811
    %v813 = vand.u32 %v130, 4294901760
    %v814 = vsub.f32 %v130, %v813
    %815 = vmatprep.subr.mxu0 %v814
    %v816 = vand.u32 %v129, 4294901760
    %v817 = vsub.f32 %v129, %v816
    %818 = vmatpush2.msra.mxu0 %v817
    %v819 = vand.u32 %v128, 4294901760
    %v820 = vsub.f32 %v128, %v819
    %821 = vmatprep.subr.mxu0 %v820
    %v822 = vand.u32 %v127, 4294901760
    %v823 = vsub.f32 %v127, %v822
    %824 = vmatpush2.msra.mxu0 %v823
    %v825 = vand.u32 %v126, 4294901760
    %v826 = vsub.f32 %v126, %v825
    %827 = vmatprep.subr.mxu0 %v826
    %v828 = vand.u32 %v125, 4294901760
    %v829 = vsub.f32 %v125, %v828
    %830 = vmatpush2.msra.mxu0 %v829
    %v831 = vand.u32 %v124, 4294901760
    %v832 = vsub.f32 %v124, %v831
    %833 = vmatprep.subr.mxu0 %v832
    %v834 = vand.u32 %v123, 4294901760
    %v835 = vsub.f32 %v123, %v834
    %836 = vmatpush2.msra.mxu0 %v835
    %v837 = vand.u32 %v122, 4294901760
    %v838 = vsub.f32 %v122, %v837
    %839 = vmatprep.subr.mxu0 %v838
    %v840 = vand.u32 %v121, 4294901760
    %v841 = vsub.f32 %v121, %v840
    %842 = vmatpush2.msra.mxu0 %v841
    %v843 = vand.u32 %v120, 4294901760
    %v844 = vsub.f32 %v120, %v843
    %845 = vmatprep.subr.mxu0 %v844
    %v846 = vand.u32 %v119, 4294901760
    %v847 = vsub.f32 %v119, %v846
    %848 = vmatpush2.msra.mxu0 %v847
    %v849 = vand.u32 %v118, 4294901760
    %v850 = vsub.f32 %v118, %v849
    %851 = vmatprep.subr.mxu0 %v850
    %v852 = vand.u32 %v117, 4294901760
    %v853 = vsub.f32 %v117, %v852
    %854 = vmatpush2.msra.mxu0 %v853
    %v855 = vand.u32 %v116, 4294901760
    %v856 = vsub.f32 %v116, %v855
    %857 = vmatprep.subr.mxu0 %v856
    %v858 = vand.u32 %v115, 4294901760
    %v859 = vsub.f32 %v115, %v858
    %860 = vmatpush2.msra.mxu0 %v859
    %v861 = vand.u32 %v114, 4294901760
    %v862 = vsub.f32 %v114, %v861
    %863 = vmatprep.subr.mxu0 %v862
    %v864 = vand.u32 %v113, 4294901760
    %v865 = vsub.f32 %v113, %v864
    %866 = vmatpush2.msra.mxu0 %v865
    %v867 = vand.u32 %v112, 4294901760
    %v868 = vsub.f32 %v112, %v867
    %869 = vmatprep.subr.mxu0 %v868
    %v870 = vand.u32 %v111, 4294901760
    %v871 = vsub.f32 %v111, %v870
    %872 = vmatpush2.msra.mxu0 %v871
    %v873 = vand.u32 %v78, 4294901760
    %v874 = vsub.f32 %v78, %v873
    %875 = vmatprep.mubr.f32.mxu0 %v874
    %v876 = vand.u32 %v77, 4294901760
    %v877 = vsub.f32 %v77, %v876
    %878 = vmatmul.mubr.f32.gmra.mxu0 %v877
    %v879 = vpop.f32.mrf.mxu0
    %v880 = vadd.f32 %v677, %v879
    %v881 = vpop.f32.mrf.mxu0
    %v882 = vadd.f32 %v679, %v881
    %883 = vdwg.mxu0
    %v884 = vand.u32 %v110, 4294901760
    %885 = vmatprep.subr.mxu0 %v884
    %v886 = vand.u32 %v109, 4294901760
    %887 = vmatpush1.msra.mxu0 %v886
    %v888 = vand.u32 %v108, 4294901760
    %889 = vmatprep.subr.mxu0 %v888
    %v890 = vand.u32 %v107, 4294901760
    %891 = vmatpush1.msra.mxu0 %v890
    %v892 = vand.u32 %v106, 4294901760
    %893 = vmatprep.subr.mxu0 %v892
    %v894 = vand.u32 %v105, 4294901760
    %895 = vmatpush1.msra.mxu0 %v894
    %v896 = vand.u32 %v104, 4294901760
    %897 = vmatprep.subr.mxu0 %v896
    %v898 = vand.u32 %v103, 4294901760
    %899 = vmatpush1.msra.mxu0 %v898
    %v900 = vand.u32 %v102, 4294901760
    %901 = vmatprep.subr.mxu0 %v900
    %v902 = vand.u32 %v101, 4294901760
    %903 = vmatpush1.msra.mxu0 %v902
    %v904 = vand.u32 %v100, 4294901760
    %905 = vmatprep.subr.mxu0 %v904
    %v906 = vand.u32 %v99, 4294901760
    %907 = vmatpush1.msra.mxu0 %v906
    %v908 = vand.u32 %v98, 4294901760
    %909 = vmatprep.subr.mxu0 %v908
    %v910 = vand.u32 %v97, 4294901760
    %911 = vmatpush1.msra.mxu0 %v910
    %v912 = vand.u32 %v96, 4294901760
    %913 = vmatprep.subr.mxu0 %v912
    %v914 = vand.u32 %v95, 4294901760
    %915 = vmatpush1.msra.mxu0 %v914
    %v916 = vand.u32 %v94, 4294901760
    %917 = vmatprep.subr.mxu0 %v916
    %v918 = vand.u32 %v93, 4294901760
    %919 = vmatpush1.msra.mxu0 %v918
    %v920 = vand.u32 %v92, 4294901760
    %921 = vmatprep.subr.mxu0 %v920
    %v922 = vand.u32 %v91, 4294901760
    %923 = vmatpush1.msra.mxu0 %v922
    %v924 = vand.u32 %v90, 4294901760
    %925 = vmatprep.subr.mxu0 %v924
    %v926 = vand.u32 %v89, 4294901760
    %927 = vmatpush1.msra.mxu0 %v926
    %v928 = vand.u32 %v88, 4294901760
    %929 = vmatprep.subr.mxu0 %v928
    %v930 = vand.u32 %v87, 4294901760
    %931 = vmatpush1.msra.mxu0 %v930
    %v932 = vand.u32 %v86, 4294901760
    %933 = vmatprep.subr.mxu0 %v932
    %v934 = vand.u32 %v85, 4294901760
    %935 = vmatpush1.msra.mxu0 %v934
    %v936 = vand.u32 %v84, 4294901760
    %937 = vmatprep.subr.mxu0 %v936
    %v938 = vand.u32 %v83, 4294901760
    %939 = vmatpush1.msra.mxu0 %v938
    %v940 = vand.u32 %v82, 4294901760
    %941 = vmatprep.subr.mxu0 %v940
    %v942 = vand.u32 %v81, 4294901760
    %943 = vmatpush1.msra.mxu0 %v942
    %v944 = vand.u32 %v80, 4294901760
    %945 = vmatprep.subr.mxu0 %v944
    %v946 = vand.u32 %v79, 4294901760
    %947 = vmatpush1.msra.mxu0 %v946
    %v948 = vand.u32 %v142, 4294901760
    %949 = vmatprep.subr.mxu0 %v948
    %v950 = vand.u32 %v141, 4294901760
    %951 = vmatpush2.msra.mxu0 %v950
    %v952 = vand.u32 %v140, 4294901760
    %953 = vmatprep.subr.mxu0 %v952
    %v954 = vand.u32 %v139, 4294901760
    %955 = vmatpush2.msra.mxu0 %v954
    %v956 = vand.u32 %v138, 4294901760
    %957 = vmatprep.subr.mxu0 %v956
    %v958 = vand.u32 %v137, 4294901760
    %959 = vmatpush2.msra.mxu0 %v958
    %v960 = vand.u32 %v136, 4294901760
    %961 = vmatprep.subr.mxu0 %v960
    %v962 = vand.u32 %v135, 4294901760
    %963 = vmatpush2.msra.mxu0 %v962
    %v964 = vand.u32 %v134, 4294901760
    %965 = vmatprep.subr.mxu0 %v964
    %v966 = vand.u32 %v133, 4294901760
    %967 = vmatpush2.msra.mxu0 %v966
    %v968 = vand.u32 %v132, 4294901760
    %969 = vmatprep.subr.mxu0 %v968
    %v970 = vand.u32 %v131, 4294901760
    %971 = vmatpush2.msra.mxu0 %v970
    %v972 = vand.u32 %v130, 4294901760
    %973 = vmatprep.subr.mxu0 %v972
    %v974 = vand.u32 %v129, 4294901760
    %975 = vmatpush2.msra.mxu0 %v974
    %v976 = vand.u32 %v128, 4294901760
    %977 = vmatprep.subr.mxu0 %v976
    %v978 = vand.u32 %v127, 4294901760
    %979 = vmatpush2.msra.mxu0 %v978
    %v980 = vand.u32 %v126, 4294901760
    %981 = vmatprep.subr.mxu0 %v980
    %v982 = vand.u32 %v125, 4294901760
    %983 = vmatpush2.msra.mxu0 %v982
    %v984 = vand.u32 %v124, 4294901760
    %985 = vmatprep.subr.mxu0 %v984
    %v986 = vand.u32 %v123, 4294901760
    %987 = vmatpush2.msra.mxu0 %v986
    %v988 = vand.u32 %v122, 4294901760
    %989 = vmatprep.subr.mxu0 %v988
    %v990 = vand.u32 %v121, 4294901760
    %991 = vmatpush2.msra.mxu0 %v990
    %v992 = vand.u32 %v120, 4294901760
    %993 = vmatprep.subr.mxu0 %v992
    %v994 = vand.u32 %v119, 4294901760
    %995 = vmatpush2.msra.mxu0 %v994
    %v996 = vand.u32 %v118, 4294901760
    %997 = vmatprep.subr.mxu0 %v996
    %v998 = vand.u32 %v117, 4294901760
    %999 = vmatpush2.msra.mxu0 %v998
    %v1000 = vand.u32 %v116, 4294901760
    %1001 = vmatprep.subr.mxu0 %v1000
    %v1002 = vand.u32 %v115, 4294901760
    %1003 = vmatpush2.msra.mxu0 %v1002
    %v1004 = vand.u32 %v114, 4294901760
    %1005 = vmatprep.subr.mxu0 %v1004
    %v1006 = vand.u32 %v113, 4294901760
    %1007 = vmatpush2.msra.mxu0 %v1006
    %v1008 = vand.u32 %v112, 4294901760
    %1009 = vmatprep.subr.mxu0 %v1008
    %v1010 = vand.u32 %v111, 4294901760
    %1011 = vmatpush2.msra.mxu0 %v1010
    %v1012 = vand.u32 %v78, 4294901760
    %v1013 = vsub.f32 %v78, %v1012
    %v1014 = vand.u32 %v1013, 4294901760
    %1015 = vmatprep.mubr.f32.mxu0 %v1014
    %v1016 = vand.u32 %v77, 4294901760
    %v1017 = vsub.f32 %v77, %v1016
    %v1018 = vand.u32 %v1017, 4294901760
    %1019 = vmatmul.mubr.f32.gmra.mxu0 %v1018
    %v1020 = vpop.f32.mrf.mxu0
    %v1021 = vadd.f32 %v880, %v1020
    %v1022 = vpop.f32.mrf.mxu0
    %v1023 = vadd.f32 %v882, %v1022
    %1024 = vdwg.mxu0
    %v1025 = vand.u32 %v110, 4294901760
    %v1026 = vsub.f32 %v110, %v1025
    %v1027 = vand.u32 %v1026, 4294901760
    %1028 = vmatprep.subr.mxu0 %v1027
    %v1029 = vand.u32 %v109, 4294901760
    %v1030 = vsub.f32 %v109, %v1029
    %v1031 = vand.u32 %v1030, 4294901760
    %1032 = vmatpush1.msra.mxu0 %v1031
    %v1033 = vand.u32 %v108, 4294901760
    %v1034 = vsub.f32 %v108, %v1033
    %v1035 = vand.u32 %v1034, 4294901760
    %1036 = vmatprep.subr.mxu0 %v1035
    %v1037 = vand.u32 %v107, 4294901760
    %v1038 = vsub.f32 %v107, %v1037
    %v1039 = vand.u32 %v1038, 4294901760
    %1040 = vmatpush1.msra.mxu0 %v1039
    %v1041 = vand.u32 %v106, 4294901760
    %v1042 = vsub.f32 %v106, %v1041
    %v1043 = vand.u32 %v1042, 4294901760
    %1044 = vmatprep.subr.mxu0 %v1043
    %v1045 = vand.u32 %v105, 4294901760
    %v1046 = vsub.f32 %v105, %v1045
    %v1047 = vand.u32 %v1046, 4294901760
    %1048 = vmatpush1.msra.mxu0 %v1047
    %v1049 = vand.u32 %v104, 4294901760
    %v1050 = vsub.f32 %v104, %v1049
    %v1051 = vand.u32 %v1050, 4294901760
    %1052 = vmatprep.subr.mxu0 %v1051
    %v1053 = vand.u32 %v103, 4294901760
    %v1054 = vsub.f32 %v103, %v1053
    %v1055 = vand.u32 %v1054, 4294901760
    %1056 = vmatpush1.msra.mxu0 %v1055
    %v1057 = vand.u32 %v102, 4294901760
    %v1058 = vsub.f32 %v102, %v1057
    %v1059 = vand.u32 %v1058, 4294901760
    %1060 = vmatprep.subr.mxu0 %v1059
    %v1061 = vand.u32 %v101, 4294901760
    %v1062 = vsub.f32 %v101, %v1061
    %v1063 = vand.u32 %v1062, 4294901760
    %1064 = vmatpush1.msra.mxu0 %v1063
    %v1065 = vand.u32 %v100, 4294901760
    %v1066 = vsub.f32 %v100, %v1065
    %v1067 = vand.u32 %v1066, 4294901760
    %1068 = vmatprep.subr.mxu0 %v1067
    %v1069 = vand.u32 %v99, 4294901760
    %v1070 = vsub.f32 %v99, %v1069
    %v1071 = vand.u32 %v1070, 4294901760
    %1072 = vmatpush1.msra.mxu0 %v1071
    %v1073 = vand.u32 %v98, 4294901760
    %v1074 = vsub.f32 %v98, %v1073
    %v1075 = vand.u32 %v1074, 4294901760
    %1076 = vmatprep.subr.mxu0 %v1075
    %v1077 = vand.u32 %v97, 4294901760
    %v1078 = vsub.f32 %v97, %v1077
    %v1079 = vand.u32 %v1078, 4294901760
    %1080 = vmatpush1.msra.mxu0 %v1079
    %v1081 = vand.u32 %v96, 4294901760
    %v1082 = vsub.f32 %v96, %v1081
    %v1083 = vand.u32 %v1082, 4294901760
    %1084 = vmatprep.subr.mxu0 %v1083
    %v1085 = vand.u32 %v95, 4294901760
    %v1086 = vsub.f32 %v95, %v1085
    %v1087 = vand.u32 %v1086, 4294901760
    %1088 = vmatpush1.msra.mxu0 %v1087
    %v1089 = vand.u32 %v94, 4294901760
    %v1090 = vsub.f32 %v94, %v1089
    %v1091 = vand.u32 %v1090, 4294901760
    %1092 = vmatprep.subr.mxu0 %v1091
    %v1093 = vand.u32 %v93, 4294901760
    %v1094 = vsub.f32 %v93, %v1093
    %v1095 = vand.u32 %v1094, 4294901760
    %1096 = vmatpush1.msra.mxu0 %v1095
    %v1097 = vand.u32 %v92, 4294901760
    %v1098 = vsub.f32 %v92, %v1097
    %v1099 = vand.u32 %v1098, 4294901760
    %1100 = vmatprep.subr.mxu0 %v1099
    %v1101 = vand.u32 %v91, 4294901760
    %v1102 = vsub.f32 %v91, %v1101
    %v1103 = vand.u32 %v1102, 4294901760
    %1104 = vmatpush1.msra.mxu0 %v1103
    %v1105 = vand.u32 %v90, 4294901760
    %v1106 = vsub.f32 %v90, %v1105
    %v1107 = vand.u32 %v1106, 4294901760
    %1108 = vmatprep.subr.mxu0 %v1107
    %v1109 = vand.u32 %v89, 4294901760
    %v1110 = vsub.f32 %v89, %v1109
    %v1111 = vand.u32 %v1110, 4294901760
    %1112 = vmatpush1.msra.mxu0 %v1111
    %v1113 = vand.u32 %v88, 4294901760
    %v1114 = vsub.f32 %v88, %v1113
    %v1115 = vand.u32 %v1114, 4294901760
    %1116 = vmatprep.subr.mxu0 %v1115
    %v1117 = vand.u32 %v87, 4294901760
    %v1118 = vsub.f32 %v87, %v1117
    %v1119 = vand.u32 %v1118, 4294901760
    %1120 = vmatpush1.msra.mxu0 %v1119
    %v1121 = vand.u32 %v86, 4294901760
    %v1122 = vsub.f32 %v86, %v1121
    %v1123 = vand.u32 %v1122, 4294901760
    %1124 = vmatprep.subr.mxu0 %v1123
    %v1125 = vand.u32 %v85, 4294901760
    %v1126 = vsub.f32 %v85, %v1125
    %v1127 = vand.u32 %v1126, 4294901760
    %1128 = vmatpush1.msra.mxu0 %v1127
    %v1129 = vand.u32 %v84, 4294901760
    %v1130 = vsub.f32 %v84, %v1129
    %v1131 = vand.u32 %v1130, 4294901760
    %1132 = vmatprep.subr.mxu0 %v1131
    %v1133 = vand.u32 %v83, 4294901760
    %v1134 = vsub.f32 %v83, %v1133
    %v1135 = vand.u32 %v1134, 4294901760
    %1136 = vmatpush1.msra.mxu0 %v1135
    %v1137 = vand.u32 %v82, 4294901760
    %v1138 = vsub.f32 %v82, %v1137
    %v1139 = vand.u32 %v1138, 4294901760
    %1140 = vmatprep.subr.mxu0 %v1139
    %v1141 = vand.u32 %v81, 4294901760
    %v1142 = vsub.f32 %v81, %v1141
    %v1143 = vand.u32 %v1142, 4294901760
    %1144 = vmatpush1.msra.mxu0 %v1143
    %v1145 = vand.u32 %v80, 4294901760
    %v1146 = vsub.f32 %v80, %v1145
    %v1147 = vand.u32 %v1146, 4294901760
    %1148 = vmatprep.subr.mxu0 %v1147
    %v1149 = vand.u32 %v79, 4294901760
    %v1150 = vsub.f32 %v79, %v1149
    %v1151 = vand.u32 %v1150, 4294901760
    %1152 = vmatpush1.msra.mxu0 %v1151
    %v1153 = vand.u32 %v142, 4294901760
    %v1154 = vsub.f32 %v142, %v1153
    %v1155 = vand.u32 %v1154, 4294901760
    %1156 = vmatprep.subr.mxu0 %v1155
    %v1157 = vand.u32 %v141, 4294901760
    %v1158 = vsub.f32 %v141, %v1157
    %v1159 = vand.u32 %v1158, 4294901760
    %1160 = vmatpush2.msra.mxu0 %v1159
    %v1161 = vand.u32 %v140, 4294901760
    %v1162 = vsub.f32 %v140, %v1161
    %v1163 = vand.u32 %v1162, 4294901760
    %1164 = vmatprep.subr.mxu0 %v1163
    %v1165 = vand.u32 %v139, 4294901760
    %v1166 = vsub.f32 %v139, %v1165
    %v1167 = vand.u32 %v1166, 4294901760
    %1168 = vmatpush2.msra.mxu0 %v1167
    %v1169 = vand.u32 %v138, 4294901760
    %v1170 = vsub.f32 %v138, %v1169
    %v1171 = vand.u32 %v1170, 4294901760
    %1172 = vmatprep.subr.mxu0 %v1171
    %v1173 = vand.u32 %v137, 4294901760
    %v1174 = vsub.f32 %v137, %v1173
    %v1175 = vand.u32 %v1174, 4294901760
    %1176 = vmatpush2.msra.mxu0 %v1175
    %v1177 = vand.u32 %v136, 4294901760
    %v1178 = vsub.f32 %v136, %v1177
    %v1179 = vand.u32 %v1178, 4294901760
    %1180 = vmatprep.subr.mxu0 %v1179
    %v1181 = vand.u32 %v135, 4294901760
    %v1182 = vsub.f32 %v135, %v1181
    %v1183 = vand.u32 %v1182, 4294901760
    %1184 = vmatpush2.msra.mxu0 %v1183
    %v1185 = vand.u32 %v134, 4294901760
    %v1186 = vsub.f32 %v134, %v1185
    %v1187 = vand.u32 %v1186, 4294901760
    %1188 = vmatprep.subr.mxu0 %v1187
    %v1189 = vand.u32 %v133, 4294901760
    %v1190 = vsub.f32 %v133, %v1189
    %v1191 = vand.u32 %v1190, 4294901760
    %1192 = vmatpush2.msra.mxu0 %v1191
    %v1193 = vand.u32 %v132, 4294901760
    %v1194 = vsub.f32 %v132, %v1193
    %v1195 = vand.u32 %v1194, 4294901760
    %1196 = vmatprep.subr.mxu0 %v1195
    %v1197 = vand.u32 %v131, 4294901760
    %v1198 = vsub.f32 %v131, %v1197
    %v1199 = vand.u32 %v1198, 4294901760
    %1200 = vmatpush2.msra.mxu0 %v1199
    %v1201 = vand.u32 %v130, 4294901760
    %v1202 = vsub.f32 %v130, %v1201
    %v1203 = vand.u32 %v1202, 4294901760
    %1204 = vmatprep.subr.mxu0 %v1203
    %v1205 = vand.u32 %v129, 4294901760
    %v1206 = vsub.f32 %v129, %v1205
    %v1207 = vand.u32 %v1206, 4294901760
    %1208 = vmatpush2.msra.mxu0 %v1207
    %v1209 = vand.u32 %v128, 4294901760
    %v1210 = vsub.f32 %v128, %v1209
    %v1211 = vand.u32 %v1210, 4294901760
    %1212 = vmatprep.subr.mxu0 %v1211
    %v1213 = vand.u32 %v127, 4294901760
    %v1214 = vsub.f32 %v127, %v1213
    %v1215 = vand.u32 %v1214, 4294901760
    %1216 = vmatpush2.msra.mxu0 %v1215
    %v1217 = vand.u32 %v126, 4294901760
    %v1218 = vsub.f32 %v126, %v1217
    %v1219 = vand.u32 %v1218, 4294901760
    %1220 = vmatprep.subr.mxu0 %v1219
    %v1221 = vand.u32 %v125, 4294901760
    %v1222 = vsub.f32 %v125, %v1221
    %v1223 = vand.u32 %v1222, 4294901760
    %1224 = vmatpush2.msra.mxu0 %v1223
    %v1225 = vand.u32 %v124, 4294901760
    %v1226 = vsub.f32 %v124, %v1225
    %v1227 = vand.u32 %v1226, 4294901760
    %1228 = vmatprep.subr.mxu0 %v1227
    %v1229 = vand.u32 %v123, 4294901760
    %v1230 = vsub.f32 %v123, %v1229
    %v1231 = vand.u32 %v1230, 4294901760
    %1232 = vmatpush2.msra.mxu0 %v1231
    %v1233 = vand.u32 %v122, 4294901760
    %v1234 = vsub.f32 %v122, %v1233
    %v1235 = vand.u32 %v1234, 4294901760
    %1236 = vmatprep.subr.mxu0 %v1235
    %v1237 = vand.u32 %v121, 4294901760
    %v1238 = vsub.f32 %v121, %v1237
    %v1239 = vand.u32 %v1238, 4294901760
    %1240 = vmatpush2.msra.mxu0 %v1239
    %v1241 = vand.u32 %v120, 4294901760
    %v1242 = vsub.f32 %v120, %v1241
    %v1243 = vand.u32 %v1242, 4294901760
    %1244 = vmatprep.subr.mxu0 %v1243
    %v1245 = vand.u32 %v119, 4294901760
    %v1246 = vsub.f32 %v119, %v1245
    %v1247 = vand.u32 %v1246, 4294901760
    %1248 = vmatpush2.msra.mxu0 %v1247
    %v1249 = vand.u32 %v118, 4294901760
    %v1250 = vsub.f32 %v118, %v1249
    %v1251 = vand.u32 %v1250, 4294901760
    %1252 = vmatprep.subr.mxu0 %v1251
    %v1253 = vand.u32 %v117, 4294901760
    %v1254 = vsub.f32 %v117, %v1253
    %v1255 = vand.u32 %v1254, 4294901760
    %1256 = vmatpush2.msra.mxu0 %v1255
    %v1257 = vand.u32 %v116, 4294901760
    %v1258 = vsub.f32 %v116, %v1257
    %v1259 = vand.u32 %v1258, 4294901760
    %1260 = vmatprep.subr.mxu0 %v1259
    %v1261 = vand.u32 %v115, 4294901760
    %v1262 = vsub.f32 %v115, %v1261
    %v1263 = vand.u32 %v1262, 4294901760
    %1264 = vmatpush2.msra.mxu0 %v1263
    %v1265 = vand.u32 %v114, 4294901760
    %v1266 = vsub.f32 %v114, %v1265
    %v1267 = vand.u32 %v1266, 4294901760
    %1268 = vmatprep.subr.mxu0 %v1267
    %v1269 = vand.u32 %v113, 4294901760
    %v1270 = vsub.f32 %v113, %v1269
    %v1271 = vand.u32 %v1270, 4294901760
    %1272 = vmatpush2.msra.mxu0 %v1271
    %v1273 = vand.u32 %v112, 4294901760
    %v1274 = vsub.f32 %v112, %v1273
    %v1275 = vand.u32 %v1274, 4294901760
    %1276 = vmatprep.subr.mxu0 %v1275
    %v1277 = vand.u32 %v111, 4294901760
    %v1278 = vsub.f32 %v111, %v1277
    %v1279 = vand.u32 %v1278, 4294901760
    %1280 = vmatpush2.msra.mxu0 %v1279
    %v1281 = vand.u32 %v78, 4294901760
    %1282 = vmatprep.mubr.f32.mxu0 %v1281
    %v1283 = vand.u32 %v77, 4294901760
    %1284 = vmatmul.mubr.f32.gmra.mxu0 %v1283
    %v1285 = vpop.f32.mrf.mxu0
    %v1286 = vadd.f32 %v1021, %v1285
    %v1287 = vpop.f32.mrf.mxu0
    %v1288 = vadd.f32 %v1023, %v1287
    %1289 = vdwg.mxu0
    %v1290 = vand.u32 %v110, 4294901760
    %1291 = vmatprep.subr.mxu0 %v1290
    %v1292 = vand.u32 %v109, 4294901760
    %1293 = vmatpush1.msra.mxu0 %v1292
    %v1294 = vand.u32 %v108, 4294901760
    %1295 = vmatprep.subr.mxu0 %v1294
    %v1296 = vand.u32 %v107, 4294901760
    %1297 = vmatpush1.msra.mxu0 %v1296
    %v1298 = vand.u32 %v106, 4294901760
    %1299 = vmatprep.subr.mxu0 %v1298
    %v1300 = vand.u32 %v105, 4294901760
    %1301 = vmatpush1.msra.mxu0 %v1300
    %v1302 = vand.u32 %v104, 4294901760
    %1303 = vmatprep.subr.mxu0 %v1302
    %v1304 = vand.u32 %v103, 4294901760
    %1305 = vmatpush1.msra.mxu0 %v1304
    %v1306 = vand.u32 %v102, 4294901760
    %1307 = vmatprep.subr.mxu0 %v1306
    %v1308 = vand.u32 %v101, 4294901760
    %1309 = vmatpush1.msra.mxu0 %v1308
    %v1310 = vand.u32 %v100, 4294901760
    %1311 = vmatprep.subr.mxu0 %v1310
    %v1312 = vand.u32 %v99, 4294901760
    %1313 = vmatpush1.msra.mxu0 %v1312
    %v1314 = vand.u32 %v98, 4294901760
    %1315 = vmatprep.subr.mxu0 %v1314
    %v1316 = vand.u32 %v97, 4294901760
    %1317 = vmatpush1.msra.mxu0 %v1316
    %v1318 = vand.u32 %v96, 4294901760
    %1319 = vmatprep.subr.mxu0 %v1318
    %v1320 = vand.u32 %v95, 4294901760
    %1321 = vmatpush1.msra.mxu0 %v1320
    %v1322 = vand.u32 %v94, 4294901760
    %1323 = vmatprep.subr.mxu0 %v1322
    %v1324 = vand.u32 %v93, 4294901760
    %1325 = vmatpush1.msra.mxu0 %v1324
    %v1326 = vand.u32 %v92, 4294901760
    %1327 = vmatprep.subr.mxu0 %v1326
    %v1328 = vand.u32 %v91, 4294901760
    %1329 = vmatpush1.msra.mxu0 %v1328
    %v1330 = vand.u32 %v90, 4294901760
    %1331 = vmatprep.subr.mxu0 %v1330
    %v1332 = vand.u32 %v89, 4294901760
    %1333 = vmatpush1.msra.mxu0 %v1332
    %v1334 = vand.u32 %v88, 4294901760
    %1335 = vmatprep.subr.mxu0 %v1334
    %v1336 = vand.u32 %v87, 4294901760
    %1337 = vmatpush1.msra.mxu0 %v1336
    %v1338 = vand.u32 %v86, 4294901760
    %1339 = vmatprep.subr.mxu0 %v1338
    %v1340 = vand.u32 %v85, 4294901760
    %1341 = vmatpush1.msra.mxu0 %v1340
    %v1342 = vand.u32 %v84, 4294901760
    %1343 = vmatprep.subr.mxu0 %v1342
    %v1344 = vand.u32 %v83, 4294901760
    %1345 = vmatpush1.msra.mxu0 %v1344
    %v1346 = vand.u32 %v82, 4294901760
    %1347 = vmatprep.subr.mxu0 %v1346
    %v1348 = vand.u32 %v81, 4294901760
    %1349 = vmatpush1.msra.mxu0 %v1348
    %v1350 = vand.u32 %v80, 4294901760
    %1351 = vmatprep.subr.mxu0 %v1350
    %v1352 = vand.u32 %v79, 4294901760
    %1353 = vmatpush1.msra.mxu0 %v1352
    %v1354 = vand.u32 %v142, 4294901760
    %1355 = vmatprep.subr.mxu0 %v1354
    %v1356 = vand.u32 %v141, 4294901760
    %1357 = vmatpush2.msra.mxu0 %v1356
    %v1358 = vand.u32 %v140, 4294901760
    %1359 = vmatprep.subr.mxu0 %v1358
    %v1360 = vand.u32 %v139, 4294901760
    %1361 = vmatpush2.msra.mxu0 %v1360
    %v1362 = vand.u32 %v138, 4294901760
    %1363 = vmatprep.subr.mxu0 %v1362
    %v1364 = vand.u32 %v137, 4294901760
    %1365 = vmatpush2.msra.mxu0 %v1364
    %v1366 = vand.u32 %v136, 4294901760
    %1367 = vmatprep.subr.mxu0 %v1366
    %v1368 = vand.u32 %v135, 4294901760
    %1369 = vmatpush2.msra.mxu0 %v1368
    %v1370 = vand.u32 %v134, 4294901760
    %1371 = vmatprep.subr.mxu0 %v1370
    %v1372 = vand.u32 %v133, 4294901760
    %1373 = vmatpush2.msra.mxu0 %v1372
    %v1374 = vand.u32 %v132, 4294901760
    %1375 = vmatprep.subr.mxu0 %v1374
    %v1376 = vand.u32 %v131, 4294901760
    %1377 = vmatpush2.msra.mxu0 %v1376
    %v1378 = vand.u32 %v130, 4294901760
    %1379 = vmatprep.subr.mxu0 %v1378
    %v1380 = vand.u32 %v129, 4294901760
    %1381 = vmatpush2.msra.mxu0 %v1380
    %v1382 = vand.u32 %v128, 4294901760
    %1383 = vmatprep.subr.mxu0 %v1382
    %v1384 = vand.u32 %v127, 4294901760
    %1385 = vmatpush2.msra.mxu0 %v1384
    %v1386 = vand.u32 %v126, 4294901760
    %1387 = vmatprep.subr.mxu0 %v1386
    %v1388 = vand.u32 %v125, 4294901760
    %1389 = vmatpush2.msra.mxu0 %v1388
    %v1390 = vand.u32 %v124, 4294901760
    %1391 = vmatprep.subr.mxu0 %v1390
    %v1392 = vand.u32 %v123, 4294901760
    %1393 = vmatpush2.msra.mxu0 %v1392
    %v1394 = vand.u32 %v122, 4294901760
    %1395 = vmatprep.subr.mxu0 %v1394
    %v1396 = vand.u32 %v121, 4294901760
    %1397 = vmatpush2.msra.mxu0 %v1396
    %v1398 = vand.u32 %v120, 4294901760
    %1399 = vmatprep.subr.mxu0 %v1398
    %v1400 = vand.u32 %v119, 4294901760
    %1401 = vmatpush2.msra.mxu0 %v1400
    %v1402 = vand.u32 %v118, 4294901760
    %1403 = vmatprep.subr.mxu0 %v1402
    %v1404 = vand.u32 %v117, 4294901760
    %1405 = vmatpush2.msra.mxu0 %v1404
    %v1406 = vand.u32 %v116, 4294901760
    %1407 = vmatprep.subr.mxu0 %v1406
    %v1408 = vand.u32 %v115, 4294901760
    %1409 = vmatpush2.msra.mxu0 %v1408
    %v1410 = vand.u32 %v114, 4294901760
    %1411 = vmatprep.subr.mxu0 %v1410
    %v1412 = vand.u32 %v113, 4294901760
    %1413 = vmatpush2.msra.mxu0 %v1412
    %v1414 = vand.u32 %v112, 4294901760
    %1415 = vmatprep.subr.mxu0 %v1414
    %v1416 = vand.u32 %v111, 4294901760
    %1417 = vmatpush2.msra.mxu0 %v1416
    %v1418 = vand.u32 %v78, 4294901760
    %1419 = vmatprep.mubr.f32.mxu0 %v1418
    %v1420 = vand.u32 %v77, 4294901760
    %1421 = vmatmul.mubr.f32.gmra.mxu0 %v1420
    %v1422 = vpop.f32.mrf.mxu0
    %v1423 = vadd.f32 %v1286, %v1422
    %v1424 = vpop.f32.mrf.mxu0
    %v1425 = vadd.f32 %v1288, %v1424
    %1426 = vdwg.mxu0
    %v1427 = vmul.f32 %v1423, %v1423
    %v1428 = vsub.f32 %v1425, %v1427
    %v1429 = vmax.f32 %v1428, 0.0
    %v1430 = vsub.f32 %v77, %v1423
    %v1431 = vadd.f32 %v1429, 1e-05
    %v1432 = vrsqrt.pop %v1431
    %v1433 = vmul.f32 %v1430, %v1432
    %v1434 = vld [vmem:[#allocation7] sm:$0xff]
    %v1435 = vld [vmem:[#allocation7 + $0x8] sm:$0xff]
    %v1436 = vld [vmem:[#allocation7 + $0x10] sm:$0xff]
    %v1437 = vld [vmem:[#allocation7 + $0x18] sm:$0xff]
    %v1438 = vld [vmem:[#allocation7 + $0x20] sm:$0xff]
    %v1439 = vld [vmem:[#allocation7 + $0x28] sm:$0xff]
    %v1440 = vld [vmem:[#allocation7 + $0x30] sm:$0xff]
    %v1441 = vld [vmem:[#allocation7 + $0x38] sm:$0xff]
    %v1442 = vld [vmem:[#allocation7 + $0x40] sm:$0xff]
    %v1443 = vld [vmem:[#allocation7 + $0x48] sm:$0xff]
    %v1444 = vld [vmem:[#allocation7 + $0x50] sm:$0xff]
    %v1445 = vld [vmem:[#allocation7 + $0x58] sm:$0xff]
    %v1446 = vld [vmem:[#allocation7 + $0x60] sm:$0xff]
    %v1447 = vld [vmem:[#allocation7 + $0x68] sm:$0xff]
    %v1448 = vld [vmem:[#allocation7 + $0x70] sm:$0xff]
    %v1449 = vld [vmem:[#allocation7 + $0x78] sm:$0xff]
    %v1450 = vld [vmem:[#allocation7 + $0x80] sm:$0xff]
    %v1451 = vld [vmem:[#allocation7 + $0x88] sm:$0xff]
    %v1452 = vld [vmem:[#allocation7 + $0x90] sm:$0xff]
    %v1453 = vld [vmem:[#allocation7 + $0x98] sm:$0xff]
    %v1454 = vld [vmem:[#allocation7 + $0xa0] sm:$0xff]
    %v1455 = vld [vmem:[#allocation7 + $0xa8] sm:$0xff]
    %v1456 = vld [vmem:[#allocation7 + $0xb0] sm:$0xff]
    %v1457 = vld [vmem:[#allocation7 + $0xb8] sm:$0xff]
    %v1458 = vld [vmem:[#allocation7 + $0xc0] sm:$0xff]
    %v1459 = vld [vmem:[#allocation7 + $0xc8] sm:$0xff]
    %v1460 = vld [vmem:[#allocation7 + $0xd0] sm:$0xff]
    %v1461 = vld [vmem:[#allocation7 + $0xd8] sm:$0xff]
    %v1462 = vld [vmem:[#allocation7 + $0xe0] sm:$0xff]
    %v1463 = vld [vmem:[#allocation7 + $0xe8] sm:$0xff]
    %v1464 = vld [vmem:[#allocation7 + $0xf0] sm:$0xff]
    %v1465 = vld [vmem:[#allocation7 + $0xf8] sm:$0xff]
    %v1466 = vld [vmem:[#allocation7 + $0x100] sm:$0xff]
    %v1467 = vld [vmem:[#allocation7 + $0x108] sm:$0xff]
    %v1468 = vld [vmem:[#allocation7 + $0x110] sm:$0xff]
    %v1469 = vld [vmem:[#allocation7 + $0x118] sm:$0xff]
    %v1470 = vld [vmem:[#allocation7 + $0x120] sm:$0xff]
    %v1471 = vld [vmem:[#allocation7 + $0x128] sm:$0xff]
    %v1472 = vld [vmem:[#allocation7 + $0x130] sm:$0xff]
    %v1473 = vld [vmem:[#allocation7 + $0x138] sm:$0xff]
    %v1474 = vld [vmem:[#allocation7 + $0x140] sm:$0xff]
    %v1475 = vld [vmem:[#allocation7 + $0x148] sm:$0xff]
    %v1476 = vld [vmem:[#allocation7 + $0x150] sm:$0xff]
    %v1477 = vld [vmem:[#allocation7 + $0x158] sm:$0xff]
    %v1478 = vld [vmem:[#allocation7 + $0x160] sm:$0xff]
    %v1479 = vld [vmem:[#allocation7 + $0x168] sm:$0xff]
    %v1480 = vld [vmem:[#allocation7 + $0x170] sm:$0xff]
    %v1481 = vld [vmem:[#allocation7 + $0x178] sm:$0xff]
    %v1482 = vld [vmem:[#allocation7 + $0x180] sm:$0xff]
    %v1483 = vld [vmem:[#allocation7 + $0x188] sm:$0xff]
    %v1484 = vld [vmem:[#allocation7 + $0x190] sm:$0xff]
    %v1485 = vld [vmem:[#allocation7 + $0x198] sm:$0xff]
    %v1486 = vld [vmem:[#allocation7 + $0x1a0] sm:$0xff]
    %v1487 = vld [vmem:[#allocation7 + $0x1a8] sm:$0xff]
    %v1488 = vld [vmem:[#allocation7 + $0x1b0] sm:$0xff]
    %v1489 = vld [vmem:[#allocation7 + $0x1b8] sm:$0xff]
    %v1490 = vld [vmem:[#allocation7 + $0x1c0] sm:$0xff]
    %v1491 = vld [vmem:[#allocation7 + $0x1c8] sm:$0xff]
    %v1492 = vld [vmem:[#allocation7 + $0x1d0] sm:$0xff]
    %v1493 = vld [vmem:[#allocation7 + $0x1d8] sm:$0xff]
    %v1494 = vld [vmem:[#allocation7 + $0x1e0] sm:$0xff]
    %v1495 = vld [vmem:[#allocation7 + $0x1e8] sm:$0xff]
    %v1496 = vld [vmem:[#allocation7 + $0x1f0] sm:$0xff]
    %v1497 = vld [vmem:[#allocation7 + $0x1f8] sm:$0xff]
    %v1498 = vld [vmem:[%s3] sm:$0xf]
    %v1500 = vlaneseq
    %v1501 = vshrl.u32 %v1500, 7
    %v1502 = vsub.s32 0, %v1501
    %v1503 = vrot.slane %v1498, %v1502
    %v1504 = vlaneseq
    %v1505 = vshrl.u32 %v1504, 7
    %v1506 = vsub.s32 1, %v1505
    %v1507 = vrot.slane %v1498, %v1506
    %v1508 = vlaneseq
    %v1509 = vshrl.u32 %v1508, 7
    %v1510 = vsub.s32 2, %v1509
    %v1511 = vrot.slane %v1498, %v1510
    %v1512 = vlaneseq
    %v1513 = vshrl.u32 %v1512, 7
    %v1514 = vsub.s32 3, %v1513
    %v1515 = vrot.slane %v1498, %v1514
    %v1520 = vand.u32 %v1495, 4294901760
    %1521 = vmatprep.subr.mxu0 %v1520
    %v1522 = vand.u32 %v1494, 4294901760
    %1523 = vmatpush1.msra.mxu0 %v1522
    %v1524 = vand.u32 %v1491, 4294901760
    %1525 = vmatprep.subr.mxu0 %v1524
    %v1526 = vand.u32 %v1490, 4294901760
    %1527 = vmatpush1.msra.mxu0 %v1526
    %v1528 = vand.u32 %v1487, 4294901760
    %1529 = vmatprep.subr.mxu0 %v1528
    %v1530 = vand.u32 %v1486, 4294901760
    %1531 = vmatpush1.msra.mxu0 %v1530
    %v1532 = vand.u32 %v1483, 4294901760
    %1533 = vmatprep.subr.mxu0 %v1532
    %v1534 = vand.u32 %v1482, 4294901760
    %1535 = vmatpush1.msra.mxu0 %v1534
    %v1536 = vand.u32 %v1479, 4294901760
    %1537 = vmatprep.subr.mxu0 %v1536
    %v1538 = vand.u32 %v1478, 4294901760
    %1539 = vmatpush1.msra.mxu0 %v1538
    %v1540 = vand.u32 %v1475, 4294901760
    %1541 = vmatprep.subr.mxu0 %v1540
    %v1542 = vand.u32 %v1474, 4294901760
    %1543 = vmatpush1.msra.mxu0 %v1542
    %v1544 = vand.u32 %v1471, 4294901760
    %1545 = vmatprep.subr.mxu0 %v1544
    %v1546 = vand.u32 %v1470, 4294901760
    %1547 = vmatpush1.msra.mxu0 %v1546
    %v1548 = vand.u32 %v1467, 4294901760
    %1549 = vmatprep.subr.mxu0 %v1548
    %v1550 = vand.u32 %v1466, 4294901760
    %1551 = vmatpush1.msra.mxu0 %v1550
    %v1552 = vand.u32 %v1463, 4294901760
    %1553 = vmatprep.subr.mxu0 %v1552
    %v1554 = vand.u32 %v1462, 4294901760
    %1555 = vmatpush1.msra.mxu0 %v1554
    %v1556 = vand.u32 %v1459, 4294901760
    %1557 = vmatprep.subr.mxu0 %v1556
    %v1558 = vand.u32 %v1458, 4294901760
    %1559 = vmatpush1.msra.mxu0 %v1558
    %v1560 = vand.u32 %v1455, 4294901760
    %1561 = vmatprep.subr.mxu0 %v1560
    %v1562 = vand.u32 %v1454, 4294901760
    %1563 = vmatpush1.msra.mxu0 %v1562
    %v1564 = vand.u32 %v1451, 4294901760
    %1565 = vmatprep.subr.mxu0 %v1564
    %v1566 = vand.u32 %v1450, 4294901760
    %1567 = vmatpush1.msra.mxu0 %v1566
    %v1568 = vand.u32 %v1447, 4294901760
    %1569 = vmatprep.subr.mxu0 %v1568
    %v1570 = vand.u32 %v1446, 4294901760
    %1571 = vmatpush1.msra.mxu0 %v1570
    %v1572 = vand.u32 %v1443, 4294901760
    %1573 = vmatprep.subr.mxu0 %v1572
    %v1574 = vand.u32 %v1442, 4294901760
    %1575 = vmatpush1.msra.mxu0 %v1574
    %v1576 = vand.u32 %v1439, 4294901760
    %1577 = vmatprep.subr.mxu0 %v1576
    %v1578 = vand.u32 %v1438, 4294901760
    %1579 = vmatpush1.msra.mxu0 %v1578
    %v1580 = vand.u32 %v1435, 4294901760
    %1581 = vmatprep.subr.mxu0 %v1580
    %v1582 = vand.u32 %v1434, 4294901760
    %1583 = vmatpush1.msra.mxu0 %v1582
    %1584 = vmatprep.subr.mxu0 0.0
    %1585 = vmatpush2.msra.mxu0 0.0
    %1586 = vmatprep.subr.mxu0 0.0
    %1587 = vmatpush2.msra.mxu0 0.0
    %1588 = vmatprep.subr.mxu0 0.0
    %1589 = vmatpush2.msra.mxu0 0.0
    %1590 = vmatprep.subr.mxu0 0.0
    %1591 = vmatpush2.msra.mxu0 0.0
    %1592 = vmatprep.subr.mxu0 0.0
    %1593 = vmatpush2.msra.mxu0 0.0
    %1594 = vmatprep.subr.mxu0 0.0
    %1595 = vmatpush2.msra.mxu0 0.0
    %1596 = vmatprep.subr.mxu0 0.0
    %1597 = vmatpush2.msra.mxu0 0.0
    %1598 = vmatprep.subr.mxu0 0.0
    %1599 = vmatpush2.msra.mxu0 0.0
    %1600 = vmatprep.subr.mxu0 0.0
    %1601 = vmatpush2.msra.mxu0 0.0
    %1602 = vmatprep.subr.mxu0 0.0
    %1603 = vmatpush2.msra.mxu0 0.0
    %1604 = vmatprep.subr.mxu0 0.0
    %1605 = vmatpush2.msra.mxu0 0.0
    %1606 = vmatprep.subr.mxu0 0.0
    %1607 = vmatpush2.msra.mxu0 0.0
    %1608 = vmatprep.subr.mxu0 0.0
    %1609 = vmatpush2.msra.mxu0 0.0
    %1610 = vmatprep.subr.mxu0 0.0
    %1611 = vmatpush2.msra.mxu0 0.0
    %1612 = vmatprep.subr.mxu0 0.0
    %1613 = vmatpush2.msra.mxu0 0.0
    %1614 = vmatprep.subr.mxu0 0.0
    %1615 = vmatpush2.msra.mxu0 0.0
    %1616 = vmatprep.mubr.f32.mxu0 0.0
    %v1617 = vand.u32 %v1433, 4294901760
    %v1618 = vsub.f32 %v1433, %v1617
    %v1619 = vand.u32 %v1618, 4294901760
    %v1620 = vsub.f32 %v1618, %v1619
    %v1621 = vand.u32 %v1620, 4294901760
    %1622 = vmatmul.mubr.f32.gmra.mxu0 %v1621
    %v1623 = vpop.f32.mrf.mxu0
    %v1624 = vadd.f32 %v1503, %v1623
    %v1625 = vpop.f32.mrf.mxu0
    %v1626 = vadd.f32 %v1507, %v1625
    %1627 = vdwg.mxu0
    %v1628 = vand.u32 %v1495, 4294901760
    %v1629 = vsub.f32 %v1495, %v1628
    %v1630 = vand.u32 %v1629, 4294901760
    %v1631 = vsub.f32 %v1629, %v1630
    %v1632 = vand.u32 %v1631, 4294901760
    %1633 = vmatprep.subr.mxu0 %v1632
    %v1634 = vand.u32 %v1494, 4294901760
    %v1635 = vsub.f32 %v1494, %v1634
    %v1636 = vand.u32 %v1635, 4294901760
    %v1637 = vsub.f32 %v1635, %v1636
    %v1638 = vand.u32 %v1637, 4294901760
    %1639 = vmatpush1.msra.mxu0 %v1638
    %v1640 = vand.u32 %v1491, 4294901760
    %v1641 = vsub.f32 %v1491, %v1640
    %v1642 = vand.u32 %v1641, 4294901760
    %v1643 = vsub.f32 %v1641, %v1642
    %v1644 = vand.u32 %v1643, 4294901760
    %1645 = vmatprep.subr.mxu0 %v1644
    %v1646 = vand.u32 %v1490, 4294901760
    %v1647 = vsub.f32 %v1490, %v1646
    %v1648 = vand.u32 %v1647, 4294901760
    %v1649 = vsub.f32 %v1647, %v1648
    %v1650 = vand.u32 %v1649, 4294901760
    %1651 = vmatpush1.msra.mxu0 %v1650
    %v1652 = vand.u32 %v1487, 4294901760
    %v1653 = vsub.f32 %v1487, %v1652
    %v1654 = vand.u32 %v1653, 4294901760
    %v1655 = vsub.f32 %v1653, %v1654
    %v1656 = vand.u32 %v1655, 4294901760
    %1657 = vmatprep.subr.mxu0 %v1656
    %v1658 = vand.u32 %v1486, 4294901760
    %v1659 = vsub.f32 %v1486, %v1658
    %v1660 = vand.u32 %v1659, 4294901760
    %v1661 = vsub.f32 %v1659, %v1660
    %v1662 = vand.u32 %v1661, 4294901760
    %1663 = vmatpush1.msra.mxu0 %v1662
    %v1664 = vand.u32 %v1483, 4294901760
    %v1665 = vsub.f32 %v1483, %v1664
    %v1666 = vand.u32 %v1665, 4294901760
    %v1667 = vsub.f32 %v1665, %v1666
    %v1668 = vand.u32 %v1667, 4294901760
    %1669 = vmatprep.subr.mxu0 %v1668
    %v1670 = vand.u32 %v1482, 4294901760
    %v1671 = vsub.f32 %v1482, %v1670
    %v1672 = vand.u32 %v1671, 4294901760
    %v1673 = vsub.f32 %v1671, %v1672
    %v1674 = vand.u32 %v1673, 4294901760
    %1675 = vmatpush1.msra.mxu0 %v1674
    %v1676 = vand.u32 %v1479, 4294901760
    %v1677 = vsub.f32 %v1479, %v1676
    %v1678 = vand.u32 %v1677, 4294901760
    %v1679 = vsub.f32 %v1677, %v1678
    %v1680 = vand.u32 %v1679, 4294901760
    %1681 = vmatprep.subr.mxu0 %v1680
    %v1682 = vand.u32 %v1478, 4294901760
    %v1683 = vsub.f32 %v1478, %v1682
    %v1684 = vand.u32 %v1683, 4294901760
    %v1685 = vsub.f32 %v1683, %v1684
    %v1686 = vand.u32 %v1685, 4294901760
    %1687 = vmatpush1.msra.mxu0 %v1686
    %v1688 = vand.u32 %v1475, 4294901760
    %v1689 = vsub.f32 %v1475, %v1688
    %v1690 = vand.u32 %v1689, 4294901760
    %v1691 = vsub.f32 %v1689, %v1690
    %v1692 = vand.u32 %v1691, 4294901760
    %1693 = vmatprep.subr.mxu0 %v1692
    %v1694 = vand.u32 %v1474, 4294901760
    %v1695 = vsub.f32 %v1474, %v1694
    %v1696 = vand.u32 %v1695, 4294901760
    %v1697 = vsub.f32 %v1695, %v1696
    %v1698 = vand.u32 %v1697, 4294901760
    %1699 = vmatpush1.msra.mxu0 %v1698
    %v1700 = vand.u32 %v1471, 4294901760
    %v1701 = vsub.f32 %v1471, %v1700
    %v1702 = vand.u32 %v1701, 4294901760
    %v1703 = vsub.f32 %v1701, %v1702
    %v1704 = vand.u32 %v1703, 4294901760
    %1705 = vmatprep.subr.mxu0 %v1704
    %v1706 = vand.u32 %v1470, 4294901760
    %v1707 = vsub.f32 %v1470, %v1706
    %v1708 = vand.u32 %v1707, 4294901760
    %v1709 = vsub.f32 %v1707, %v1708
    %v1710 = vand.u32 %v1709, 4294901760
    %1711 = vmatpush1.msra.mxu0 %v1710
    %v1712 = vand.u32 %v1467, 4294901760
    %v1713 = vsub.f32 %v1467, %v1712
    %v1714 = vand.u32 %v1713, 4294901760
    %v1715 = vsub.f32 %v1713, %v1714
    %v1716 = vand.u32 %v1715, 4294901760
    %1717 = vmatprep.subr.mxu0 %v1716
    %v1718 = vand.u32 %v1466, 4294901760
    %v1719 = vsub.f32 %v1466, %v1718
    %v1720 = vand.u32 %v1719, 4294901760
    %v1721 = vsub.f32 %v1719, %v1720
    %v1722 = vand.u32 %v1721, 4294901760
    %1723 = vmatpush1.msra.mxu0 %v1722
    %v1724 = vand.u32 %v1463, 4294901760
    %v1725 = vsub.f32 %v1463, %v1724
    %v1726 = vand.u32 %v1725, 4294901760
    %v1727 = vsub.f32 %v1725, %v1726
    %v1728 = vand.u32 %v1727, 4294901760
    %1729 = vmatprep.subr.mxu0 %v1728
    %v1730 = vand.u32 %v1462, 4294901760
    %v1731 = vsub.f32 %v1462, %v1730
    %v1732 = vand.u32 %v1731, 4294901760
    %v1733 = vsub.f32 %v1731, %v1732
    %v1734 = vand.u32 %v1733, 4294901760
    %1735 = vmatpush1.msra.mxu0 %v1734
    %v1736 = vand.u32 %v1459, 4294901760
    %v1737 = vsub.f32 %v1459, %v1736
    %v1738 = vand.u32 %v1737, 4294901760
    %v1739 = vsub.f32 %v1737, %v1738
    %v1740 = vand.u32 %v1739, 4294901760
    %1741 = vmatprep.subr.mxu0 %v1740
    %v1742 = vand.u32 %v1458, 4294901760
    %v1743 = vsub.f32 %v1458, %v1742
    %v1744 = vand.u32 %v1743, 4294901760
    %v1745 = vsub.f32 %v1743, %v1744
    %v1746 = vand.u32 %v1745, 4294901760
    %1747 = vmatpush1.msra.mxu0 %v1746
    %v1748 = vand.u32 %v1455, 4294901760
    %v1749 = vsub.f32 %v1455, %v1748
    %v1750 = vand.u32 %v1749, 4294901760
    %v1751 = vsub.f32 %v1749, %v1750
    %v1752 = vand.u32 %v1751, 4294901760
    %1753 = vmatprep.subr.mxu0 %v1752
    %v1754 = vand.u32 %v1454, 4294901760
    %v1755 = vsub.f32 %v1454, %v1754
    %v1756 = vand.u32 %v1755, 4294901760
    %v1757 = vsub.f32 %v1755, %v1756
    %v1758 = vand.u32 %v1757, 4294901760
    %1759 = vmatpush1.msra.mxu0 %v1758
    %v1760 = vand.u32 %v1451, 4294901760
    %v1761 = vsub.f32 %v1451, %v1760
    %v1762 = vand.u32 %v1761, 4294901760
    %v1763 = vsub.f32 %v1761, %v1762
    %v1764 = vand.u32 %v1763, 4294901760
    %1765 = vmatprep.subr.mxu0 %v1764
    %v1766 = vand.u32 %v1450, 4294901760
    %v1767 = vsub.f32 %v1450, %v1766
    %v1768 = vand.u32 %v1767, 4294901760
    %v1769 = vsub.f32 %v1767, %v1768
    %v1770 = vand.u32 %v1769, 4294901760
    %1771 = vmatpush1.msra.mxu0 %v1770
    %v1772 = vand.u32 %v1447, 4294901760
    %v1773 = vsub.f32 %v1447, %v1772
    %v1774 = vand.u32 %v1773, 4294901760
    %v1775 = vsub.f32 %v1773, %v1774
    %v1776 = vand.u32 %v1775, 4294901760
    %1777 = vmatprep.subr.mxu0 %v1776
    %v1778 = vand.u32 %v1446, 4294901760
    %v1779 = vsub.f32 %v1446, %v1778
    %v1780 = vand.u32 %v1779, 4294901760
    %v1781 = vsub.f32 %v1779, %v1780
    %v1782 = vand.u32 %v1781, 4294901760
    %1783 = vmatpush1.msra.mxu0 %v1782
    %v1784 = vand.u32 %v1443, 4294901760
    %v1785 = vsub.f32 %v1443, %v1784
    %v1786 = vand.u32 %v1785, 4294901760
    %v1787 = vsub.f32 %v1785, %v1786
    %v1788 = vand.u32 %v1787, 4294901760
    %1789 = vmatprep.subr.mxu0 %v1788
    %v1790 = vand.u32 %v1442, 4294901760
    %v1791 = vsub.f32 %v1442, %v1790
    %v1792 = vand.u32 %v1791, 4294901760
    %v1793 = vsub.f32 %v1791, %v1792
    %v1794 = vand.u32 %v1793, 4294901760
    %1795 = vmatpush1.msra.mxu0 %v1794
    %v1796 = vand.u32 %v1439, 4294901760
    %v1797 = vsub.f32 %v1439, %v1796
    %v1798 = vand.u32 %v1797, 4294901760
    %v1799 = vsub.f32 %v1797, %v1798
    %v1800 = vand.u32 %v1799, 4294901760
    %1801 = vmatprep.subr.mxu0 %v1800
    %v1802 = vand.u32 %v1438, 4294901760
    %v1803 = vsub.f32 %v1438, %v1802
    %v1804 = vand.u32 %v1803, 4294901760
    %v1805 = vsub.f32 %v1803, %v1804
    %v1806 = vand.u32 %v1805, 4294901760
    %1807 = vmatpush1.msra.mxu0 %v1806
    %v1808 = vand.u32 %v1435, 4294901760
    %v1809 = vsub.f32 %v1435, %v1808
    %v1810 = vand.u32 %v1809, 4294901760
    %v1811 = vsub.f32 %v1809, %v1810
    %v1812 = vand.u32 %v1811, 4294901760
    %1813 = vmatprep.subr.mxu0 %v1812
    %v1814 = vand.u32 %v1434, 4294901760
    %v1815 = vsub.f32 %v1434, %v1814
    %v1816 = vand.u32 %v1815, 4294901760
    %v1817 = vsub.f32 %v1815, %v1816
    %v1818 = vand.u32 %v1817, 4294901760
    %1819 = vmatpush1.msra.mxu0 %v1818
    %1820 = vmatprep.subr.mxu0 0.0
    %1821 = vmatpush2.msra.mxu0 0.0
    %1822 = vmatprep.subr.mxu0 0.0
    %1823 = vmatpush2.msra.mxu0 0.0
    %1824 = vmatprep.subr.mxu0 0.0
    %1825 = vmatpush2.msra.mxu0 0.0
    %1826 = vmatprep.subr.mxu0 0.0
    %1827 = vmatpush2.msra.mxu0 0.0
    %1828 = vmatprep.subr.mxu0 0.0
    %1829 = vmatpush2.msra.mxu0 0.0
    %1830 = vmatprep.subr.mxu0 0.0
    %1831 = vmatpush2.msra.mxu0 0.0
    %1832 = vmatprep.subr.mxu0 0.0
    %1833 = vmatpush2.msra.mxu0 0.0
    %1834 = vmatprep.subr.mxu0 0.0
    %1835 = vmatpush2.msra.mxu0 0.0
    %1836 = vmatprep.subr.mxu0 0.0
    %1837 = vmatpush2.msra.mxu0 0.0
    %1838 = vmatprep.subr.mxu0 0.0
    %1839 = vmatpush2.msra.mxu0 0.0
    %1840 = vmatprep.subr.mxu0 0.0
    %1841 = vmatpush2.msra.mxu0 0.0
    %1842 = vmatprep.subr.mxu0 0.0
    %1843 = vmatpush2.msra.mxu0 0.0
    %1844 = vmatprep.subr.mxu0 0.0
    %1845 = vmatpush2.msra.mxu0 0.0
    %1846 = vmatprep.subr.mxu0 0.0
    %1847 = vmatpush2.msra.mxu0 0.0
    %1848 = vmatprep.subr.mxu0 0.0
    %1849 = vmatpush2.msra.mxu0 0.0
    %1850 = vmatprep.subr.mxu0 0.0
    %1851 = vmatpush2.msra.mxu0 0.0
    %1852 = vmatprep.mubr.f32.mxu0 0.0
    %v1853 = vand.u32 %v1433, 4294901760
    %1854 = vmatmul.mubr.f32.gmra.mxu0 %v1853
    %v1855 = vpop.f32.mrf.mxu0
    %v1856 = vadd.f32 %v1624, %v1855
    %v1857 = vpop.f32.mrf.mxu0
    %v1858 = vadd.f32 %v1626, %v1857
    %1859 = vdwg.mxu0
    %v1860 = vand.u32 %v1495, 4294901760
    %v1861 = vsub.f32 %v1495, %v1860
    %1862 = vmatprep.subr.mxu0 %v1861
    %v1863 = vand.u32 %v1494, 4294901760
    %v1864 = vsub.f32 %v1494, %v1863
    %1865 = vmatpush1.msra.mxu0 %v1864
    %v1866 = vand.u32 %v1491, 4294901760
    %v1867 = vsub.f32 %v1491, %v1866
    %1868 = vmatprep.subr.mxu0 %v1867
    %v1869 = vand.u32 %v1490, 4294901760
    %v1870 = vsub.f32 %v1490, %v1869
    %1871 = vmatpush1.msra.mxu0 %v1870
    %v1872 = vand.u32 %v1487, 4294901760
    %v1873 = vsub.f32 %v1487, %v1872
    %1874 = vmatprep.subr.mxu0 %v1873
    %v1875 = vand.u32 %v1486, 4294901760
    %v1876 = vsub.f32 %v1486, %v1875
    %1877 = vmatpush1.msra.mxu0 %v1876
    %v1878 = vand.u32 %v1483, 4294901760
    %v1879 = vsub.f32 %v1483, %v1878
    %1880 = vmatprep.subr.mxu0 %v1879
    %v1881 = vand.u32 %v1482, 4294901760
    %v1882 = vsub.f32 %v1482, %v1881
    %1883 = vmatpush1.msra.mxu0 %v1882
    %v1884 = vand.u32 %v1479, 4294901760
    %v1885 = vsub.f32 %v1479, %v1884
    %1886 = vmatprep.subr.mxu0 %v1885
    %v1887 = vand.u32 %v1478, 4294901760
    %v1888 = vsub.f32 %v1478, %v1887
    %1889 = vmatpush1.msra.mxu0 %v1888
    %v1890 = vand.u32 %v1475, 4294901760
    %v1891 = vsub.f32 %v1475, %v1890
    %1892 = vmatprep.subr.mxu0 %v1891
    %v1893 = vand.u32 %v1474, 4294901760
    %v1894 = vsub.f32 %v1474, %v1893
    %1895 = vmatpush1.msra.mxu0 %v1894
    %v1896 = vand.u32 %v1471, 4294901760
    %v1897 = vsub.f32 %v1471, %v1896
    %1898 = vmatprep.subr.mxu0 %v1897
    %v1899 = vand.u32 %v1470, 4294901760
    %v1900 = vsub.f32 %v1470, %v1899
    %1901 = vmatpush1.msra.mxu0 %v1900
    %v1902 = vand.u32 %v1467, 4294901760
    %v1903 = vsub.f32 %v1467, %v1902
    %1904 = vmatprep.subr.mxu0 %v1903
    %v1905 = vand.u32 %v1466, 4294901760
    %v1906 = vsub.f32 %v1466, %v1905
    %1907 = vmatpush1.msra.mxu0 %v1906
    %v1908 = vand.u32 %v1463, 4294901760
    %v1909 = vsub.f32 %v1463, %v1908
    %1910 = vmatprep.subr.mxu0 %v1909
    %v1911 = vand.u32 %v1462, 4294901760
    %v1912 = vsub.f32 %v1462, %v1911
    %1913 = vmatpush1.msra.mxu0 %v1912
    %v1914 = vand.u32 %v1459, 4294901760
    %v1915 = vsub.f32 %v1459, %v1914
    %1916 = vmatprep.subr.mxu0 %v1915
    %v1917 = vand.u32 %v1458, 4294901760
    %v1918 = vsub.f32 %v1458, %v1917
    %1919 = vmatpush1.msra.mxu0 %v1918
    %v1920 = vand.u32 %v1455, 4294901760
    %v1921 = vsub.f32 %v1455, %v1920
    %1922 = vmatprep.subr.mxu0 %v1921
    %v1923 = vand.u32 %v1454, 4294901760
    %v1924 = vsub.f32 %v1454, %v1923
    %1925 = vmatpush1.msra.mxu0 %v1924
    %v1926 = vand.u32 %v1451, 4294901760
    %v1927 = vsub.f32 %v1451, %v1926
    %1928 = vmatprep.subr.mxu0 %v1927
    %v1929 = vand.u32 %v1450, 4294901760
    %v1930 = vsub.f32 %v1450, %v1929
    %1931 = vmatpush1.msra.mxu0 %v1930
    %v1932 = vand.u32 %v1447, 4294901760
    %v1933 = vsub.f32 %v1447, %v1932
    %1934 = vmatprep.subr.mxu0 %v1933
    %v1935 = vand.u32 %v1446, 4294901760
    %v1936 = vsub.f32 %v1446, %v1935
    %1937 = vmatpush1.msra.mxu0 %v1936
    %v1938 = vand.u32 %v1443, 4294901760
    %v1939 = vsub.f32 %v1443, %v1938
    %1940 = vmatprep.subr.mxu0 %v1939
    %v1941 = vand.u32 %v1442, 4294901760
    %v1942 = vsub.f32 %v1442, %v1941
    %1943 = vmatpush1.msra.mxu0 %v1942
    %v1944 = vand.u32 %v1439, 4294901760
    %v1945 = vsub.f32 %v1439, %v1944
    %1946 = vmatprep.subr.mxu0 %v1945
    %v1947 = vand.u32 %v1438, 4294901760
    %v1948 = vsub.f32 %v1438, %v1947
    %1949 = vmatpush1.msra.mxu0 %v1948
    %v1950 = vand.u32 %v1435, 4294901760
    %v1951 = vsub.f32 %v1435, %v1950
    %1952 = vmatprep.subr.mxu0 %v1951
    %v1953 = vand.u32 %v1434, 4294901760
    %v1954 = vsub.f32 %v1434, %v1953
    %1955 = vmatpush1.msra.mxu0 %v1954
    %1956 = vmatprep.subr.mxu0 0.0
    %1957 = vmatpush2.msra.mxu0 0.0
    %1958 = vmatprep.subr.mxu0 0.0
    %1959 = vmatpush2.msra.mxu0 0.0
    %1960 = vmatprep.subr.mxu0 0.0
    %1961 = vmatpush2.msra.mxu0 0.0
    %1962 = vmatprep.subr.mxu0 0.0
    %1963 = vmatpush2.msra.mxu0 0.0
    %1964 = vmatprep.subr.mxu0 0.0
    %1965 = vmatpush2.msra.mxu0 0.0
    %1966 = vmatprep.subr.mxu0 0.0
    %1967 = vmatpush2.msra.mxu0 0.0
    %1968 = vmatprep.subr.mxu0 0.0
    %1969 = vmatpush2.msra.mxu0 0.0
    %1970 = vmatprep.subr.mxu0 0.0
    %1971 = vmatpush2.msra.mxu0 0.0
    %1972 = vmatprep.subr.mxu0 0.0
    %1973 = vmatpush2.msra.mxu0 0.0
    %1974 = vmatprep.subr.mxu0 0.0
    %1975 = vmatpush2.msra.mxu0 0.0
    %1976 = vmatprep.subr.mxu0 0.0
    %1977 = vmatpush2.msra.mxu0 0.0
    %1978 = vmatprep.subr.mxu0 0.0
    %1979 = vmatpush2.msra.mxu0 0.0
    %1980 = vmatprep.subr.mxu0 0.0
    %1981 = vmatpush2.msra.mxu0 0.0
    %1982 = vmatprep.subr.mxu0 0.0
    %1983 = vmatpush2.msra.mxu0 0.0
    %1984 = vmatprep.subr.mxu0 0.0
    %1985 = vmatpush2.msra.mxu0 0.0
    %1986 = vmatprep.subr.mxu0 0.0
    %1987 = vmatpush2.msra.mxu0 0.0
    %1988 = vmatprep.mubr.f32.mxu0 0.0
    %v1989 = vand.u32 %v1433, 4294901760
    %v1990 = vsub.f32 %v1433, %v1989
    %1991 = vmatmul.mubr.f32.gmra.mxu0 %v1990
    %v1992 = vpop.f32.mrf.mxu0
    %v1993 = vadd.f32 %v1856, %v1992
    %v1994 = vpop.f32.mrf.mxu0
    %v1995 = vadd.f32 %v1858, %v1994
    %1996 = vdwg.mxu0
    %v1997 = vand.u32 %v1495, 4294901760
    %1998 = vmatprep.subr.mxu0 %v1997
    %v1999 = vand.u32 %v1494, 4294901760
    %2000 = vmatpush1.msra.mxu0 %v1999
    %v2001 = vand.u32 %v1491, 4294901760
    %2002 = vmatprep.subr.mxu0 %v2001
    %v2003 = vand.u32 %v1490, 4294901760
    %2004 = vmatpush1.msra.mxu0 %v2003
    %v2005 = vand.u32 %v1487, 4294901760
    %2006 = vmatprep.subr.mxu0 %v2005
    %v2007 = vand.u32 %v1486, 4294901760
    %2008 = vmatpush1.msra.mxu0 %v2007
    %v2009 = vand.u32 %v1483, 4294901760
    %2010 = vmatprep.subr.mxu0 %v2009
    %v2011 = vand.u32 %v1482, 4294901760
    %2012 = vmatpush1.msra.mxu0 %v2011
    %v2013 = vand.u32 %v1479, 4294901760
    %2014 = vmatprep.subr.mxu0 %v2013
    %v2015 = vand.u32 %v1478, 4294901760
    %2016 = vmatpush1.msra.mxu0 %v2015
    %v2017 = vand.u32 %v1475, 4294901760
    %2018 = vmatprep.subr.mxu0 %v2017
    %v2019 = vand.u32 %v1474, 4294901760
    %2020 = vmatpush1.msra.mxu0 %v2019
    %v2021 = vand.u32 %v1471, 4294901760
    %2022 = vmatprep.subr.mxu0 %v2021
    %v2023 = vand.u32 %v1470, 4294901760
    %2024 = vmatpush1.msra.mxu0 %v2023
    %v2025 = vand.u32 %v1467, 4294901760
    %2026 = vmatprep.subr.mxu0 %v2025
    %v2027 = vand.u32 %v1466, 4294901760
    %2028 = vmatpush1.msra.mxu0 %v2027
    %v2029 = vand.u32 %v1463, 4294901760
    %2030 = vmatprep.subr.mxu0 %v2029
    %v2031 = vand.u32 %v1462, 4294901760
    %2032 = vmatpush1.msra.mxu0 %v2031
    %v2033 = vand.u32 %v1459, 4294901760
    %2034 = vmatprep.subr.mxu0 %v2033
    %v2035 = vand.u32 %v1458, 4294901760
    %2036 = vmatpush1.msra.mxu0 %v2035
    %v2037 = vand.u32 %v1455, 4294901760
    %2038 = vmatprep.subr.mxu0 %v2037
    %v2039 = vand.u32 %v1454, 4294901760
    %2040 = vmatpush1.msra.mxu0 %v2039
    %v2041 = vand.u32 %v1451, 4294901760
    %2042 = vmatprep.subr.mxu0 %v2041
    %v2043 = vand.u32 %v1450, 4294901760
    %2044 = vmatpush1.msra.mxu0 %v2043
    %v2045 = vand.u32 %v1447, 4294901760
    %2046 = vmatprep.subr.mxu0 %v2045
    %v2047 = vand.u32 %v1446, 4294901760
    %2048 = vmatpush1.msra.mxu0 %v2047
    %v2049 = vand.u32 %v1443, 4294901760
    %2050 = vmatprep.subr.mxu0 %v2049
    %v2051 = vand.u32 %v1442, 4294901760
    %2052 = vmatpush1.msra.mxu0 %v2051
    %v2053 = vand.u32 %v1439, 4294901760
    %2054 = vmatprep.subr.mxu0 %v2053
    %v2055 = vand.u32 %v1438, 4294901760
    %2056 = vmatpush1.msra.mxu0 %v2055
    %v2057 = vand.u32 %v1435, 4294901760
    %2058 = vmatprep.subr.mxu0 %v2057
    %v2059 = vand.u32 %v1434, 4294901760
    %2060 = vmatpush1.msra.mxu0 %v2059
    %2061 = vmatprep.subr.mxu0 0.0
    %2062 = vmatpush2.msra.mxu0 0.0
    %2063 = vmatprep.subr.mxu0 0.0
    %2064 = vmatpush2.msra.mxu0 0.0
    %2065 = vmatprep.subr.mxu0 0.0
    %2066 = vmatpush2.msra.mxu0 0.0
    %2067 = vmatprep.subr.mxu0 0.0
    %2068 = vmatpush2.msra.mxu0 0.0
    %2069 = vmatprep.subr.mxu0 0.0
    %2070 = vmatpush2.msra.mxu0 0.0
    %2071 = vmatprep.subr.mxu0 0.0
    %2072 = vmatpush2.msra.mxu0 0.0
    %2073 = vmatprep.subr.mxu0 0.0
    %2074 = vmatpush2.msra.mxu0 0.0
    %2075 = vmatprep.subr.mxu0 0.0
    %2076 = vmatpush2.msra.mxu0 0.0
    %2077 = vmatprep.subr.mxu0 0.0
    %2078 = vmatpush2.msra.mxu0 0.0
    %2079 = vmatprep.subr.mxu0 0.0
    %2080 = vmatpush2.msra.mxu0 0.0
    %2081 = vmatprep.subr.mxu0 0.0
    %2082 = vmatpush2.msra.mxu0 0.0
    %2083 = vmatprep.subr.mxu0 0.0
    %2084 = vmatpush2.msra.mxu0 0.0
    %2085 = vmatprep.subr.mxu0 0.0
    %2086 = vmatpush2.msra.mxu0 0.0
    %2087 = vmatprep.subr.mxu0 0.0
    %2088 = vmatpush2.msra.mxu0 0.0
    %2089 = vmatprep.subr.mxu0 0.0
    %2090 = vmatpush2.msra.mxu0 0.0
    %2091 = vmatprep.subr.mxu0 0.0
    %2092 = vmatpush2.msra.mxu0 0.0
    %2093 = vmatprep.mubr.f32.mxu0 0.0
    %v2094 = vand.u32 %v1433, 4294901760
    %v2095 = vsub.f32 %v1433, %v2094
    %v2096 = vand.u32 %v2095, 4294901760
    %2097 = vmatmul.mubr.f32.gmra.mxu0 %v2096
    %v2098 = vpop.f32.mrf.mxu0
    %v2099 = vadd.f32 %v1993, %v2098
    %v2100 = vpop.f32.mrf.mxu0
    %v2101 = vadd.f32 %v1995, %v2100
    %2102 = vdwg.mxu0
    %v2103 = vand.u32 %v1495, 4294901760
    %v2104 = vsub.f32 %v1495, %v2103
    %v2105 = vand.u32 %v2104, 4294901760
    %2106 = vmatprep.subr.mxu0 %v2105
    %v2107 = vand.u32 %v1494, 4294901760
    %v2108 = vsub.f32 %v1494, %v2107
    %v2109 = vand.u32 %v2108, 4294901760
    %2110 = vmatpush1.msra.mxu0 %v2109
    %v2111 = vand.u32 %v1491, 4294901760
    %v2112 = vsub.f32 %v1491, %v2111
    %v2113 = vand.u32 %v2112, 4294901760
    %2114 = vmatprep.subr.mxu0 %v2113
    %v2115 = vand.u32 %v1490, 4294901760
    %v2116 = vsub.f32 %v1490, %v2115
    %v2117 = vand.u32 %v2116, 4294901760
    %2118 = vmatpush1.msra.mxu0 %v2117
    %v2119 = vand.u32 %v1487, 4294901760
    %v2120 = vsub.f32 %v1487, %v2119
    %v2121 = vand.u32 %v2120, 4294901760
    %2122 = vmatprep.subr.mxu0 %v2121
    %v2123 = vand.u32 %v1486, 4294901760
    %v2124 = vsub.f32 %v1486, %v2123
    %v2125 = vand.u32 %v2124, 4294901760
    %2126 = vmatpush1.msra.mxu0 %v2125
    %v2127 = vand.u32 %v1483, 4294901760
    %v2128 = vsub.f32 %v1483, %v2127
    %v2129 = vand.u32 %v2128, 4294901760
    %2130 = vmatprep.subr.mxu0 %v2129
    %v2131 = vand.u32 %v1482, 4294901760
    %v2132 = vsub.f32 %v1482, %v2131
    %v2133 = vand.u32 %v2132, 4294901760
    %2134 = vmatpush1.msra.mxu0 %v2133
    %v2135 = vand.u32 %v1479, 4294901760
    %v2136 = vsub.f32 %v1479, %v2135
    %v2137 = vand.u32 %v2136, 4294901760
    %2138 = vmatprep.subr.mxu0 %v2137
    %v2139 = vand.u32 %v1478, 4294901760
    %v2140 = vsub.f32 %v1478, %v2139
    %v2141 = vand.u32 %v2140, 4294901760
    %2142 = vmatpush1.msra.mxu0 %v2141
    %v2143 = vand.u32 %v1475, 4294901760
    %v2144 = vsub.f32 %v1475, %v2143
    %v2145 = vand.u32 %v2144, 4294901760
    %2146 = vmatprep.subr.mxu0 %v2145
    %v2147 = vand.u32 %v1474, 4294901760
    %v2148 = vsub.f32 %v1474, %v2147
    %v2149 = vand.u32 %v2148, 4294901760
    %2150 = vmatpush1.msra.mxu0 %v2149
    %v2151 = vand.u32 %v1471, 4294901760
    %v2152 = vsub.f32 %v1471, %v2151
    %v2153 = vand.u32 %v2152, 4294901760
    %2154 = vmatprep.subr.mxu0 %v2153
    %v2155 = vand.u32 %v1470, 4294901760
    %v2156 = vsub.f32 %v1470, %v2155
    %v2157 = vand.u32 %v2156, 4294901760
    %2158 = vmatpush1.msra.mxu0 %v2157
    %v2159 = vand.u32 %v1467, 4294901760
    %v2160 = vsub.f32 %v1467, %v2159
    %v2161 = vand.u32 %v2160, 4294901760
    %2162 = vmatprep.subr.mxu0 %v2161
    %v2163 = vand.u32 %v1466, 4294901760
    %v2164 = vsub.f32 %v1466, %v2163
    %v2165 = vand.u32 %v2164, 4294901760
    %2166 = vmatpush1.msra.mxu0 %v2165
    %v2167 = vand.u32 %v1463, 4294901760
    %v2168 = vsub.f32 %v1463, %v2167
    %v2169 = vand.u32 %v2168, 4294901760
    %2170 = vmatprep.subr.mxu0 %v2169
    %v2171 = vand.u32 %v1462, 4294901760
    %v2172 = vsub.f32 %v1462, %v2171
    %v2173 = vand.u32 %v2172, 4294901760
    %2174 = vmatpush1.msra.mxu0 %v2173
    %v2175 = vand.u32 %v1459, 4294901760
    %v2176 = vsub.f32 %v1459, %v2175
    %v2177 = vand.u32 %v2176, 4294901760
    %2178 = vmatprep.subr.mxu0 %v2177
    %v2179 = vand.u32 %v1458, 4294901760
    %v2180 = vsub.f32 %v1458, %v2179
    %v2181 = vand.u32 %v2180, 4294901760
    %2182 = vmatpush1.msra.mxu0 %v2181
    %v2183 = vand.u32 %v1455, 4294901760
    %v2184 = vsub.f32 %v1455, %v2183
    %v2185 = vand.u32 %v2184, 4294901760
    %2186 = vmatprep.subr.mxu0 %v2185
    %v2187 = vand.u32 %v1454, 4294901760
    %v2188 = vsub.f32 %v1454, %v2187
    %v2189 = vand.u32 %v2188, 4294901760
    %2190 = vmatpush1.msra.mxu0 %v2189
    %v2191 = vand.u32 %v1451, 4294901760
    %v2192 = vsub.f32 %v1451, %v2191
    %v2193 = vand.u32 %v2192, 4294901760
    %2194 = vmatprep.subr.mxu0 %v2193
    %v2195 = vand.u32 %v1450, 4294901760
    %v2196 = vsub.f32 %v1450, %v2195
    %v2197 = vand.u32 %v2196, 4294901760
    %2198 = vmatpush1.msra.mxu0 %v2197
    %v2199 = vand.u32 %v1447, 4294901760
    %v2200 = vsub.f32 %v1447, %v2199
    %v2201 = vand.u32 %v2200, 4294901760
    %2202 = vmatprep.subr.mxu0 %v2201
    %v2203 = vand.u32 %v1446, 4294901760
    %v2204 = vsub.f32 %v1446, %v2203
    %v2205 = vand.u32 %v2204, 4294901760
    %2206 = vmatpush1.msra.mxu0 %v2205
    %v2207 = vand.u32 %v1443, 4294901760
    %v2208 = vsub.f32 %v1443, %v2207
    %v2209 = vand.u32 %v2208, 4294901760
    %2210 = vmatprep.subr.mxu0 %v2209
    %v2211 = vand.u32 %v1442, 4294901760
    %v2212 = vsub.f32 %v1442, %v2211
    %v2213 = vand.u32 %v2212, 4294901760
    %2214 = vmatpush1.msra.mxu0 %v2213
    %v2215 = vand.u32 %v1439, 4294901760
    %v2216 = vsub.f32 %v1439, %v2215
    %v2217 = vand.u32 %v2216, 4294901760
    %2218 = vmatprep.subr.mxu0 %v2217
    %v2219 = vand.u32 %v1438, 4294901760
    %v2220 = vsub.f32 %v1438, %v2219
    %v2221 = vand.u32 %v2220, 4294901760
    %2222 = vmatpush1.msra.mxu0 %v2221
    %v2223 = vand.u32 %v1435, 4294901760
    %v2224 = vsub.f32 %v1435, %v2223
    %v2225 = vand.u32 %v2224, 4294901760
    %2226 = vmatprep.subr.mxu0 %v2225
    %v2227 = vand.u32 %v1434, 4294901760
    %v2228 = vsub.f32 %v1434, %v2227
    %v2229 = vand.u32 %v2228, 4294901760
    %2230 = vmatpush1.msra.mxu0 %v2229
    %2231 = vmatprep.subr.mxu0 0.0
    %2232 = vmatpush2.msra.mxu0 0.0
    %2233 = vmatprep.subr.mxu0 0.0
    %2234 = vmatpush2.msra.mxu0 0.0
    %2235 = vmatprep.subr.mxu0 0.0
    %2236 = vmatpush2.msra.mxu0 0.0
    %2237 = vmatprep.subr.mxu0 0.0
    %2238 = vmatpush2.msra.mxu0 0.0
    %2239 = vmatprep.subr.mxu0 0.0
    %2240 = vmatpush2.msra.mxu0 0.0
    %2241 = vmatprep.subr.mxu0 0.0
    %2242 = vmatpush2.msra.mxu0 0.0
    %2243 = vmatprep.subr.mxu0 0.0
    %2244 = vmatpush2.msra.mxu0 0.0
    %2245 = vmatprep.subr.mxu0 0.0
    %2246 = vmatpush2.msra.mxu0 0.0
    %2247 = vmatprep.subr.mxu0 0.0
    %2248 = vmatpush2.msra.mxu0 0.0
    %2249 = vmatprep.subr.mxu0 0.0
    %2250 = vmatpush2.msra.mxu0 0.0
    %2251 = vmatprep.subr.mxu0 0.0
    %2252 = vmatpush2.msra.mxu0 0.0
    %2253 = vmatprep.subr.mxu0 0.0
    %2254 = vmatpush2.msra.mxu0 0.0
    %2255 = vmatprep.subr.mxu0 0.0
    %2256 = vmatpush2.msra.mxu0 0.0
    %2257 = vmatprep.subr.mxu0 0.0
    %2258 = vmatpush2.msra.mxu0 0.0
    %2259 = vmatprep.subr.mxu0 0.0
    %2260 = vmatpush2.msra.mxu0 0.0
    %2261 = vmatprep.subr.mxu0 0.0
    %2262 = vmatpush2.msra.mxu0 0.0
    %2263 = vmatprep.mubr.f32.mxu0 0.0
    %v2264 = vand.u32 %v1433, 4294901760
    %2265 = vmatmul.mubr.f32.gmra.mxu0 %v2264
    %v2266 = vpop.f32.mrf.mxu0
    %v2267 = vadd.f32 %v2099, %v2266
    %v2268 = vpop.f32.mrf.mxu0
    %v2269 = vadd.f32 %v2101, %v2268
    %2270 = vdwg.mxu0
    %v2271 = vand.u32 %v1495, 4294901760
    %2272 = vmatprep.subr.mxu0 %v2271
    %v2273 = vand.u32 %v1494, 4294901760
    %2274 = vmatpush1.msra.mxu0 %v2273
    %v2275 = vand.u32 %v1491, 4294901760
    %2276 = vmatprep.subr.mxu0 %v2275
    %v2277 = vand.u32 %v1490, 4294901760
    %2278 = vmatpush1.msra.mxu0 %v2277
    %v2279 = vand.u32 %v1487, 4294901760
    %2280 = vmatprep.subr.mxu0 %v2279
    %v2281 = vand.u32 %v1486, 4294901760
    %2282 = vmatpush1.msra.mxu0 %v2281
    %v2283 = vand.u32 %v1483, 4294901760
    %2284 = vmatprep.subr.mxu0 %v2283
    %v2285 = vand.u32 %v1482, 4294901760
    %2286 = vmatpush1.msra.mxu0 %v2285
    %v2287 = vand.u32 %v1479, 4294901760
    %2288 = vmatprep.subr.mxu0 %v2287
    %v2289 = vand.u32 %v1478, 4294901760
    %2290 = vmatpush1.msra.mxu0 %v2289
    %v2291 = vand.u32 %v1475, 4294901760
    %2292 = vmatprep.subr.mxu0 %v2291
    %v2293 = vand.u32 %v1474, 4294901760
    %2294 = vmatpush1.msra.mxu0 %v2293
    %v2295 = vand.u32 %v1471, 4294901760
    %2296 = vmatprep.subr.mxu0 %v2295
    %v2297 = vand.u32 %v1470, 4294901760
    %2298 = vmatpush1.msra.mxu0 %v2297
    %v2299 = vand.u32 %v1467, 4294901760
    %2300 = vmatprep.subr.mxu0 %v2299
    %v2301 = vand.u32 %v1466, 4294901760
    %2302 = vmatpush1.msra.mxu0 %v2301
    %v2303 = vand.u32 %v1463, 4294901760
    %2304 = vmatprep.subr.mxu0 %v2303
    %v2305 = vand.u32 %v1462, 4294901760
    %2306 = vmatpush1.msra.mxu0 %v2305
    %v2307 = vand.u32 %v1459, 4294901760
    %2308 = vmatprep.subr.mxu0 %v2307
    %v2309 = vand.u32 %v1458, 4294901760
    %2310 = vmatpush1.msra.mxu0 %v2309
    %v2311 = vand.u32 %v1455, 4294901760
    %2312 = vmatprep.subr.mxu0 %v2311
    %v2313 = vand.u32 %v1454, 4294901760
    %2314 = vmatpush1.msra.mxu0 %v2313
    %v2315 = vand.u32 %v1451, 4294901760
    %2316 = vmatprep.subr.mxu0 %v2315
    %v2317 = vand.u32 %v1450, 4294901760
    %2318 = vmatpush1.msra.mxu0 %v2317
    %v2319 = vand.u32 %v1447, 4294901760
    %2320 = vmatprep.subr.mxu0 %v2319
    %v2321 = vand.u32 %v1446, 4294901760
    %2322 = vmatpush1.msra.mxu0 %v2321
    %v2323 = vand.u32 %v1443, 4294901760
    %2324 = vmatprep.subr.mxu0 %v2323
    %v2325 = vand.u32 %v1442, 4294901760
    %2326 = vmatpush1.msra.mxu0 %v2325
    %v2327 = vand.u32 %v1439, 4294901760
    %2328 = vmatprep.subr.mxu0 %v2327
    %v2329 = vand.u32 %v1438, 4294901760
    %2330 = vmatpush1.msra.mxu0 %v2329
    %v2331 = vand.u32 %v1435, 4294901760
    %2332 = vmatprep.subr.mxu0 %v2331
    %v2333 = vand.u32 %v1434, 4294901760
    %2334 = vmatpush1.msra.mxu0 %v2333
    %2335 = vmatprep.subr.mxu0 0.0
    %2336 = vmatpush2.msra.mxu0 0.0
    %2337 = vmatprep.subr.mxu0 0.0
    %2338 = vmatpush2.msra.mxu0 0.0
    %2339 = vmatprep.subr.mxu0 0.0
    %2340 = vmatpush2.msra.mxu0 0.0
    %2341 = vmatprep.subr.mxu0 0.0
    %2342 = vmatpush2.msra.mxu0 0.0
    %2343 = vmatprep.subr.mxu0 0.0
    %2344 = vmatpush2.msra.mxu0 0.0
    %2345 = vmatprep.subr.mxu0 0.0
    %2346 = vmatpush2.msra.mxu0 0.0
    %2347 = vmatprep.subr.mxu0 0.0
    %2348 = vmatpush2.msra.mxu0 0.0
    %2349 = vmatprep.subr.mxu0 0.0
    %2350 = vmatpush2.msra.mxu0 0.0
    %2351 = vmatprep.subr.mxu0 0.0
    %2352 = vmatpush2.msra.mxu0 0.0
    %2353 = vmatprep.subr.mxu0 0.0
    %2354 = vmatpush2.msra.mxu0 0.0
    %2355 = vmatprep.subr.mxu0 0.0
    %2356 = vmatpush2.msra.mxu0 0.0
    %2357 = vmatprep.subr.mxu0 0.0
    %2358 = vmatpush2.msra.mxu0 0.0
    %2359 = vmatprep.subr.mxu0 0.0
    %2360 = vmatpush2.msra.mxu0 0.0
    %2361 = vmatprep.subr.mxu0 0.0
    %2362 = vmatpush2.msra.mxu0 0.0
    %2363 = vmatprep.subr.mxu0 0.0
    %2364 = vmatpush2.msra.mxu0 0.0
    %2365 = vmatprep.subr.mxu0 0.0
    %2366 = vmatpush2.msra.mxu0 0.0
    %2367 = vmatprep.mubr.f32.mxu0 0.0
    %v2368 = vand.u32 %v1433, 4294901760
    %2369 = vmatmul.mubr.f32.gmra.mxu0 %v2368
    %v2370 = vpop.f32.mrf.mxu0
    %v2371 = vadd.f32 %v2267, %v2370
    %v2372 = vpop.f32.mrf.mxu0
    %v2373 = vadd.f32 %v2269, %v2372
    %2374 = vdwg.mxu0
    %v2375 = vand.u32 %v1497, 4294901760
    %2376 = vmatprep.subr.mxu0 %v2375
    %v2377 = vand.u32 %v1496, 4294901760
    %2378 = vmatpush1.msra.mxu0 %v2377
    %v2379 = vand.u32 %v1493, 4294901760
    %2380 = vmatprep.subr.mxu0 %v2379
    %v2381 = vand.u32 %v1492, 4294901760
    %2382 = vmatpush1.msra.mxu0 %v2381
    %v2383 = vand.u32 %v1489, 4294901760
    %2384 = vmatprep.subr.mxu0 %v2383
    %v2385 = vand.u32 %v1488, 4294901760
    %2386 = vmatpush1.msra.mxu0 %v2385
    %v2387 = vand.u32 %v1485, 4294901760
    %2388 = vmatprep.subr.mxu0 %v2387
    %v2389 = vand.u32 %v1484, 4294901760
    %2390 = vmatpush1.msra.mxu0 %v2389
    %v2391 = vand.u32 %v1481, 4294901760
    %2392 = vmatprep.subr.mxu0 %v2391
    %v2393 = vand.u32 %v1480, 4294901760
    %2394 = vmatpush1.msra.mxu0 %v2393
    %v2395 = vand.u32 %v1477, 4294901760
    %2396 = vmatprep.subr.mxu0 %v2395
    %v2397 = vand.u32 %v1476, 4294901760
    %2398 = vmatpush1.msra.mxu0 %v2397
    %v2399 = vand.u32 %v1473, 4294901760
    %2400 = vmatprep.subr.mxu0 %v2399
    %v2401 = vand.u32 %v1472, 4294901760
    %2402 = vmatpush1.msra.mxu0 %v2401
    %v2403 = vand.u32 %v1469, 4294901760
    %2404 = vmatprep.subr.mxu0 %v2403
    %v2405 = vand.u32 %v1468, 4294901760
    %2406 = vmatpush1.msra.mxu0 %v2405
    %v2407 = vand.u32 %v1465, 4294901760
    %2408 = vmatprep.subr.mxu0 %v2407
    %v2409 = vand.u32 %v1464, 4294901760
    %2410 = vmatpush1.msra.mxu0 %v2409
    %v2411 = vand.u32 %v1461, 4294901760
    %2412 = vmatprep.subr.mxu0 %v2411
    %v2413 = vand.u32 %v1460, 4294901760
    %2414 = vmatpush1.msra.mxu0 %v2413
    %v2415 = vand.u32 %v1457, 4294901760
    %2416 = vmatprep.subr.mxu0 %v2415
    %v2417 = vand.u32 %v1456, 4294901760
    %2418 = vmatpush1.msra.mxu0 %v2417
    %v2419 = vand.u32 %v1453, 4294901760
    %2420 = vmatprep.subr.mxu0 %v2419
    %v2421 = vand.u32 %v1452, 4294901760
    %2422 = vmatpush1.msra.mxu0 %v2421
    %v2423 = vand.u32 %v1449, 4294901760
    %2424 = vmatprep.subr.mxu0 %v2423
    %v2425 = vand.u32 %v1448, 4294901760
    %2426 = vmatpush1.msra.mxu0 %v2425
    %v2427 = vand.u32 %v1445, 4294901760
    %2428 = vmatprep.subr.mxu0 %v2427
    %v2429 = vand.u32 %v1444, 4294901760
    %2430 = vmatpush1.msra.mxu0 %v2429
    %v2431 = vand.u32 %v1441, 4294901760
    %2432 = vmatprep.subr.mxu0 %v2431
    %v2433 = vand.u32 %v1440, 4294901760
    %2434 = vmatpush1.msra.mxu0 %v2433
    %v2435 = vand.u32 %v1437, 4294901760
    %2436 = vmatprep.subr.mxu0 %v2435
    %v2437 = vand.u32 %v1436, 4294901760
    %2438 = vmatpush1.msra.mxu0 %v2437
    %2439 = vmatprep.subr.mxu0 0.0
    %2440 = vmatpush2.msra.mxu0 0.0
    %2441 = vmatprep.subr.mxu0 0.0
    %2442 = vmatpush2.msra.mxu0 0.0
    %2443 = vmatprep.subr.mxu0 0.0
    %2444 = vmatpush2.msra.mxu0 0.0
    %2445 = vmatprep.subr.mxu0 0.0
    %2446 = vmatpush2.msra.mxu0 0.0
    %2447 = vmatprep.subr.mxu0 0.0
    %2448 = vmatpush2.msra.mxu0 0.0
    %2449 = vmatprep.subr.mxu0 0.0
    %2450 = vmatpush2.msra.mxu0 0.0
    %2451 = vmatprep.subr.mxu0 0.0
    %2452 = vmatpush2.msra.mxu0 0.0
    %2453 = vmatprep.subr.mxu0 0.0
    %2454 = vmatpush2.msra.mxu0 0.0
    %2455 = vmatprep.subr.mxu0 0.0
    %2456 = vmatpush2.msra.mxu0 0.0
    %2457 = vmatprep.subr.mxu0 0.0
    %2458 = vmatpush2.msra.mxu0 0.0
    %2459 = vmatprep.subr.mxu0 0.0
    %2460 = vmatpush2.msra.mxu0 0.0
    %2461 = vmatprep.subr.mxu0 0.0
    %2462 = vmatpush2.msra.mxu0 0.0
    %2463 = vmatprep.subr.mxu0 0.0
    %2464 = vmatpush2.msra.mxu0 0.0
    %2465 = vmatprep.subr.mxu0 0.0
    %2466 = vmatpush2.msra.mxu0 0.0
    %2467 = vmatprep.subr.mxu0 0.0
    %2468 = vmatpush2.msra.mxu0 0.0
    %2469 = vmatprep.subr.mxu0 0.0
    %2470 = vmatpush2.msra.mxu0 0.0
    %2471 = vmatprep.mubr.f32.mxu0 0.0
    %v2472 = vand.u32 %v1433, 4294901760
    %v2473 = vsub.f32 %v1433, %v2472
    %v2474 = vand.u32 %v2473, 4294901760
    %v2475 = vsub.f32 %v2473, %v2474
    %v2476 = vand.u32 %v2475, 4294901760
    %2477 = vmatmul.mubr.f32.gmra.mxu0 %v2476
    %v2478 = vpop.f32.mrf.mxu0
    %v2479 = vadd.f32 %v1511, %v2478
    %v2480 = vpop.f32.mrf.mxu0
    %v2481 = vadd.f32 %v1515, %v2480
    %2482 = vdwg.mxu0
    %v2483 = vand.u32 %v1497, 4294901760
    %v2484 = vsub.f32 %v1497, %v2483
    %v2485 = vand.u32 %v2484, 4294901760
    %v2486 = vsub.f32 %v2484, %v2485
    %v2487 = vand.u32 %v2486, 4294901760
    %2488 = vmatprep.subr.mxu0 %v2487
    %v2489 = vand.u32 %v1496, 4294901760
    %v2490 = vsub.f32 %v1496, %v2489
    %v2491 = vand.u32 %v2490, 4294901760
    %v2492 = vsub.f32 %v2490, %v2491
    %v2493 = vand.u32 %v2492, 4294901760
    %2494 = vmatpush1.msra.mxu0 %v2493
    %v2495 = vand.u32 %v1493, 4294901760
    %v2496 = vsub.f32 %v1493, %v2495
    %v2497 = vand.u32 %v2496, 4294901760
    %v2498 = vsub.f32 %v2496, %v2497
    %v2499 = vand.u32 %v2498, 4294901760
    %2500 = vmatprep.subr.mxu0 %v2499
    %v2501 = vand.u32 %v1492, 4294901760
    %v2502 = vsub.f32 %v1492, %v2501
    %v2503 = vand.u32 %v2502, 4294901760
    %v2504 = vsub.f32 %v2502, %v2503
    %v2505 = vand.u32 %v2504, 4294901760
    %2506 = vmatpush1.msra.mxu0 %v2505
    %v2507 = vand.u32 %v1489, 4294901760
    %v2508 = vsub.f32 %v1489, %v2507
    %v2509 = vand.u32 %v2508, 4294901760
    %v2510 = vsub.f32 %v2508, %v2509
    %v2511 = vand.u32 %v2510, 4294901760
    %2512 = vmatprep.subr.mxu0 %v2511
    %v2513 = vand.u32 %v1488, 4294901760
    %v2514 = vsub.f32 %v1488, %v2513
    %v2515 = vand.u32 %v2514, 4294901760
    %v2516 = vsub.f32 %v2514, %v2515
    %v2517 = vand.u32 %v2516, 4294901760
    %2518 = vmatpush1.msra.mxu0 %v2517
    %v2519 = vand.u32 %v1485, 4294901760
    %v2520 = vsub.f32 %v1485, %v2519
    %v2521 = vand.u32 %v2520, 4294901760
    %v2522 = vsub.f32 %v2520, %v2521
    %v2523 = vand.u32 %v2522, 4294901760
    %2524 = vmatprep.subr.mxu0 %v2523
    %v2525 = vand.u32 %v1484, 4294901760
    %v2526 = vsub.f32 %v1484, %v2525
    %v2527 = vand.u32 %v2526, 4294901760
    %v2528 = vsub.f32 %v2526, %v2527
    %v2529 = vand.u32 %v2528, 4294901760
    %2530 = vmatpush1.msra.mxu0 %v2529
    %v2531 = vand.u32 %v1481, 4294901760
    %v2532 = vsub.f32 %v1481, %v2531
    %v2533 = vand.u32 %v2532, 4294901760
    %v2534 = vsub.f32 %v2532, %v2533
    %v2535 = vand.u32 %v2534, 4294901760
    %2536 = vmatprep.subr.mxu0 %v2535
    %v2537 = vand.u32 %v1480, 4294901760
    %v2538 = vsub.f32 %v1480, %v2537
    %v2539 = vand.u32 %v2538, 4294901760
    %v2540 = vsub.f32 %v2538, %v2539
    %v2541 = vand.u32 %v2540, 4294901760
    %2542 = vmatpush1.msra.mxu0 %v2541
    %v2543 = vand.u32 %v1477, 4294901760
    %v2544 = vsub.f32 %v1477, %v2543
    %v2545 = vand.u32 %v2544, 4294901760
    %v2546 = vsub.f32 %v2544, %v2545
    %v2547 = vand.u32 %v2546, 4294901760
    %2548 = vmatprep.subr.mxu0 %v2547
    %v2549 = vand.u32 %v1476, 4294901760
    %v2550 = vsub.f32 %v1476, %v2549
    %v2551 = vand.u32 %v2550, 4294901760
    %v2552 = vsub.f32 %v2550, %v2551
    %v2553 = vand.u32 %v2552, 4294901760
    %2554 = vmatpush1.msra.mxu0 %v2553
    %v2555 = vand.u32 %v1473, 4294901760
    %v2556 = vsub.f32 %v1473, %v2555
    %v2557 = vand.u32 %v2556, 4294901760
    %v2558 = vsub.f32 %v2556, %v2557
    %v2559 = vand.u32 %v2558, 4294901760
    %2560 = vmatprep.subr.mxu0 %v2559
    %v2561 = vand.u32 %v1472, 4294901760
    %v2562 = vsub.f32 %v1472, %v2561
    %v2563 = vand.u32 %v2562, 4294901760
    %v2564 = vsub.f32 %v2562, %v2563
    %v2565 = vand.u32 %v2564, 4294901760
    %2566 = vmatpush1.msra.mxu0 %v2565
    %v2567 = vand.u32 %v1469, 4294901760
    %v2568 = vsub.f32 %v1469, %v2567
    %v2569 = vand.u32 %v2568, 4294901760
    %v2570 = vsub.f32 %v2568, %v2569
    %v2571 = vand.u32 %v2570, 4294901760
    %2572 = vmatprep.subr.mxu0 %v2571
    %v2573 = vand.u32 %v1468, 4294901760
    %v2574 = vsub.f32 %v1468, %v2573
    %v2575 = vand.u32 %v2574, 4294901760
    %v2576 = vsub.f32 %v2574, %v2575
    %v2577 = vand.u32 %v2576, 4294901760
    %2578 = vmatpush1.msra.mxu0 %v2577
    %v2579 = vand.u32 %v1465, 4294901760
    %v2580 = vsub.f32 %v1465, %v2579
    %v2581 = vand.u32 %v2580, 4294901760
    %v2582 = vsub.f32 %v2580, %v2581
    %v2583 = vand.u32 %v2582, 4294901760
    %2584 = vmatprep.subr.mxu0 %v2583
    %v2585 = vand.u32 %v1464, 4294901760
    %v2586 = vsub.f32 %v1464, %v2585
    %v2587 = vand.u32 %v2586, 4294901760
    %v2588 = vsub.f32 %v2586, %v2587
    %v2589 = vand.u32 %v2588, 4294901760
    %2590 = vmatpush1.msra.mxu0 %v2589
    %v2591 = vand.u32 %v1461, 4294901760
    %v2592 = vsub.f32 %v1461, %v2591
    %v2593 = vand.u32 %v2592, 4294901760
    %v2594 = vsub.f32 %v2592, %v2593
    %v2595 = vand.u32 %v2594, 4294901760
    %2596 = vmatprep.subr.mxu0 %v2595
    %v2597 = vand.u32 %v1460, 4294901760
    %v2598 = vsub.f32 %v1460, %v2597
    %v2599 = vand.u32 %v2598, 4294901760
    %v2600 = vsub.f32 %v2598, %v2599
    %v2601 = vand.u32 %v2600, 4294901760
    %2602 = vmatpush1.msra.mxu0 %v2601
    %v2603 = vand.u32 %v1457, 4294901760
    %v2604 = vsub.f32 %v1457, %v2603
    %v2605 = vand.u32 %v2604, 4294901760
    %v2606 = vsub.f32 %v2604, %v2605
    %v2607 = vand.u32 %v2606, 4294901760
    %2608 = vmatprep.subr.mxu0 %v2607
    %v2609 = vand.u32 %v1456, 4294901760
    %v2610 = vsub.f32 %v1456, %v2609
    %v2611 = vand.u32 %v2610, 4294901760
    %v2612 = vsub.f32 %v2610, %v2611
    %v2613 = vand.u32 %v2612, 4294901760
    %2614 = vmatpush1.msra.mxu0 %v2613
    %v2615 = vand.u32 %v1453, 4294901760
    %v2616 = vsub.f32 %v1453, %v2615
    %v2617 = vand.u32 %v2616, 4294901760
    %v2618 = vsub.f32 %v2616, %v2617
    %v2619 = vand.u32 %v2618, 4294901760
    %2620 = vmatprep.subr.mxu0 %v2619
    %v2621 = vand.u32 %v1452, 4294901760
    %v2622 = vsub.f32 %v1452, %v2621
    %v2623 = vand.u32 %v2622, 4294901760
    %v2624 = vsub.f32 %v2622, %v2623
    %v2625 = vand.u32 %v2624, 4294901760
    %2626 = vmatpush1.msra.mxu0 %v2625
    %v2627 = vand.u32 %v1449, 4294901760
    %v2628 = vsub.f32 %v1449, %v2627
    %v2629 = vand.u32 %v2628, 4294901760
    %v2630 = vsub.f32 %v2628, %v2629
    %v2631 = vand.u32 %v2630, 4294901760
    %2632 = vmatprep.subr.mxu0 %v2631
    %v2633 = vand.u32 %v1448, 4294901760
    %v2634 = vsub.f32 %v1448, %v2633
    %v2635 = vand.u32 %v2634, 4294901760
    %v2636 = vsub.f32 %v2634, %v2635
    %v2637 = vand.u32 %v2636, 4294901760
    %2638 = vmatpush1.msra.mxu0 %v2637
    %v2639 = vand.u32 %v1445, 4294901760
    %v2640 = vsub.f32 %v1445, %v2639
    %v2641 = vand.u32 %v2640, 4294901760
    %v2642 = vsub.f32 %v2640, %v2641
    %v2643 = vand.u32 %v2642, 4294901760
    %2644 = vmatprep.subr.mxu0 %v2643
    %v2645 = vand.u32 %v1444, 4294901760
    %v2646 = vsub.f32 %v1444, %v2645
    %v2647 = vand.u32 %v2646, 4294901760
    %v2648 = vsub.f32 %v2646, %v2647
    %v2649 = vand.u32 %v2648, 4294901760
    %2650 = vmatpush1.msra.mxu0 %v2649
    %v2651 = vand.u32 %v1441, 4294901760
    %v2652 = vsub.f32 %v1441, %v2651
    %v2653 = vand.u32 %v2652, 4294901760
    %v2654 = vsub.f32 %v2652, %v2653
    %v2655 = vand.u32 %v2654, 4294901760
    %2656 = vmatprep.subr.mxu0 %v2655
    %v2657 = vand.u32 %v1440, 4294901760
    %v2658 = vsub.f32 %v1440, %v2657
    %v2659 = vand.u32 %v2658, 4294901760
    %v2660 = vsub.f32 %v2658, %v2659
    %v2661 = vand.u32 %v2660, 4294901760
    %2662 = vmatpush1.msra.mxu0 %v2661
    %v2663 = vand.u32 %v1437, 4294901760
    %v2664 = vsub.f32 %v1437, %v2663
    %v2665 = vand.u32 %v2664, 4294901760
    %v2666 = vsub.f32 %v2664, %v2665
    %v2667 = vand.u32 %v2666, 4294901760
    %2668 = vmatprep.subr.mxu0 %v2667
    %v2669 = vand.u32 %v1436, 4294901760
    %v2670 = vsub.f32 %v1436, %v2669
    %v2671 = vand.u32 %v2670, 4294901760
    %v2672 = vsub.f32 %v2670, %v2671
    %v2673 = vand.u32 %v2672, 4294901760
    %2674 = vmatpush1.msra.mxu0 %v2673
    %2675 = vmatprep.subr.mxu0 0.0
    %2676 = vmatpush2.msra.mxu0 0.0
    %2677 = vmatprep.subr.mxu0 0.0
    %2678 = vmatpush2.msra.mxu0 0.0
    %2679 = vmatprep.subr.mxu0 0.0
    %2680 = vmatpush2.msra.mxu0 0.0
    %2681 = vmatprep.subr.mxu0 0.0
    %2682 = vmatpush2.msra.mxu0 0.0
    %2683 = vmatprep.subr.mxu0 0.0
    %2684 = vmatpush2.msra.mxu0 0.0
    %2685 = vmatprep.subr.mxu0 0.0
    %2686 = vmatpush2.msra.mxu0 0.0
    %2687 = vmatprep.subr.mxu0 0.0
    %2688 = vmatpush2.msra.mxu0 0.0
    %2689 = vmatprep.subr.mxu0 0.0
    %2690 = vmatpush2.msra.mxu0 0.0
    %2691 = vmatprep.subr.mxu0 0.0
    %2692 = vmatpush2.msra.mxu0 0.0
    %2693 = vmatprep.subr.mxu0 0.0
    %2694 = vmatpush2.msra.mxu0 0.0
    %2695 = vmatprep.subr.mxu0 0.0
    %2696 = vmatpush2.msra.mxu0 0.0
    %2697 = vmatprep.subr.mxu0 0.0
    %2698 = vmatpush2.msra.mxu0 0.0
    %2699 = vmatprep.subr.mxu0 0.0
    %2700 = vmatpush2.msra.mxu0 0.0
    %2701 = vmatprep.subr.mxu0 0.0
    %2702 = vmatpush2.msra.mxu0 0.0
    %2703 = vmatprep.subr.mxu0 0.0
    %2704 = vmatpush2.msra.mxu0 0.0
    %2705 = vmatprep.subr.mxu0 0.0
    %2706 = vmatpush2.msra.mxu0 0.0
    %2707 = vmatprep.mubr.f32.mxu0 0.0
    %v2708 = vand.u32 %v1433, 4294901760
    %2709 = vmatmul.mubr.f32.gmra.mxu0 %v2708
    %v2710 = vpop.f32.mrf.mxu0
    %v2711 = vadd.f32 %v2479, %v2710
    %v2712 = vpop.f32.mrf.mxu0
    %v2713 = vadd.f32 %v2481, %v2712
    %2714 = vdwg.mxu0
    %v2715 = vand.u32 %v1497, 4294901760
    %v2716 = vsub.f32 %v1497, %v2715
    %2717 = vmatprep.subr.mxu0 %v2716
    %v2718 = vand.u32 %v1496, 4294901760
    %v2719 = vsub.f32 %v1496, %v2718
    %2720 = vmatpush1.msra.mxu0 %v2719
    %v2721 = vand.u32 %v1493, 4294901760
    %v2722 = vsub.f32 %v1493, %v2721
    %2723 = vmatprep.subr.mxu0 %v2722
    %v2724 = vand.u32 %v1492, 4294901760
    %v2725 = vsub.f32 %v1492, %v2724
    %2726 = vmatpush1.msra.mxu0 %v2725
    %v2727 = vand.u32 %v1489, 4294901760
    %v2728 = vsub.f32 %v1489, %v2727
    %2729 = vmatprep.subr.mxu0 %v2728
    %v2730 = vand.u32 %v1488, 4294901760
    %v2731 = vsub.f32 %v1488, %v2730
    %2732 = vmatpush1.msra.mxu0 %v2731
    %v2733 = vand.u32 %v1485, 4294901760
    %v2734 = vsub.f32 %v1485, %v2733
    %2735 = vmatprep.subr.mxu0 %v2734
    %v2736 = vand.u32 %v1484, 4294901760
    %v2737 = vsub.f32 %v1484, %v2736
    %2738 = vmatpush1.msra.mxu0 %v2737
    %v2739 = vand.u32 %v1481, 4294901760
    %v2740 = vsub.f32 %v1481, %v2739
    %2741 = vmatprep.subr.mxu0 %v2740
    %v2742 = vand.u32 %v1480, 4294901760
    %v2743 = vsub.f32 %v1480, %v2742
    %2744 = vmatpush1.msra.mxu0 %v2743
    %v2745 = vand.u32 %v1477, 4294901760
    %v2746 = vsub.f32 %v1477, %v2745
    %2747 = vmatprep.subr.mxu0 %v2746
    %v2748 = vand.u32 %v1476, 4294901760
    %v2749 = vsub.f32 %v1476, %v2748
    %2750 = vmatpush1.msra.mxu0 %v2749
    %v2751 = vand.u32 %v1473, 4294901760
    %v2752 = vsub.f32 %v1473, %v2751
    %2753 = vmatprep.subr.mxu0 %v2752
    %v2754 = vand.u32 %v1472, 4294901760
    %v2755 = vsub.f32 %v1472, %v2754
    %2756 = vmatpush1.msra.mxu0 %v2755
    %v2757 = vand.u32 %v1469, 4294901760
    %v2758 = vsub.f32 %v1469, %v2757
    %2759 = vmatprep.subr.mxu0 %v2758
    %v2760 = vand.u32 %v1468, 4294901760
    %v2761 = vsub.f32 %v1468, %v2760
    %2762 = vmatpush1.msra.mxu0 %v2761
    %v2763 = vand.u32 %v1465, 4294901760
    %v2764 = vsub.f32 %v1465, %v2763
    %2765 = vmatprep.subr.mxu0 %v2764
    %v2766 = vand.u32 %v1464, 4294901760
    %v2767 = vsub.f32 %v1464, %v2766
    %2768 = vmatpush1.msra.mxu0 %v2767
    %v2769 = vand.u32 %v1461, 4294901760
    %v2770 = vsub.f32 %v1461, %v2769
    %2771 = vmatprep.subr.mxu0 %v2770
    %v2772 = vand.u32 %v1460, 4294901760
    %v2773 = vsub.f32 %v1460, %v2772
    %2774 = vmatpush1.msra.mxu0 %v2773
    %v2775 = vand.u32 %v1457, 4294901760
    %v2776 = vsub.f32 %v1457, %v2775
    %2777 = vmatprep.subr.mxu0 %v2776
    %v2778 = vand.u32 %v1456, 4294901760
    %v2779 = vsub.f32 %v1456, %v2778
    %2780 = vmatpush1.msra.mxu0 %v2779
    %v2781 = vand.u32 %v1453, 4294901760
    %v2782 = vsub.f32 %v1453, %v2781
    %2783 = vmatprep.subr.mxu0 %v2782
    %v2784 = vand.u32 %v1452, 4294901760
    %v2785 = vsub.f32 %v1452, %v2784
    %2786 = vmatpush1.msra.mxu0 %v2785
    %v2787 = vand.u32 %v1449, 4294901760
    %v2788 = vsub.f32 %v1449, %v2787
    %2789 = vmatprep.subr.mxu0 %v2788
    %v2790 = vand.u32 %v1448, 4294901760
    %v2791 = vsub.f32 %v1448, %v2790
    %2792 = vmatpush1.msra.mxu0 %v2791
    %v2793 = vand.u32 %v1445, 4294901760
    %v2794 = vsub.f32 %v1445, %v2793
    %2795 = vmatprep.subr.mxu0 %v2794
    %v2796 = vand.u32 %v1444, 4294901760
    %v2797 = vsub.f32 %v1444, %v2796
    %2798 = vmatpush1.msra.mxu0 %v2797
    %v2799 = vand.u32 %v1441, 4294901760
    %v2800 = vsub.f32 %v1441, %v2799
    %2801 = vmatprep.subr.mxu0 %v2800
    %v2802 = vand.u32 %v1440, 4294901760
    %v2803 = vsub.f32 %v1440, %v2802
    %2804 = vmatpush1.msra.mxu0 %v2803
    %v2805 = vand.u32 %v1437, 4294901760
    %v2806 = vsub.f32 %v1437, %v2805
    %2807 = vmatprep.subr.mxu0 %v2806
    %v2808 = vand.u32 %v1436, 4294901760
    %v2809 = vsub.f32 %v1436, %v2808
    %2810 = vmatpush1.msra.mxu0 %v2809
    %2811 = vmatprep.subr.mxu0 0.0
    %2812 = vmatpush2.msra.mxu0 0.0
    %2813 = vmatprep.subr.mxu0 0.0
    %2814 = vmatpush2.msra.mxu0 0.0
    %2815 = vmatprep.subr.mxu0 0.0
    %2816 = vmatpush2.msra.mxu0 0.0
    %2817 = vmatprep.subr.mxu0 0.0
    %2818 = vmatpush2.msra.mxu0 0.0
    %2819 = vmatprep.subr.mxu0 0.0
    %2820 = vmatpush2.msra.mxu0 0.0
    %2821 = vmatprep.subr.mxu0 0.0
    %2822 = vmatpush2.msra.mxu0 0.0
    %2823 = vmatprep.subr.mxu0 0.0
    %2824 = vmatpush2.msra.mxu0 0.0
    %2825 = vmatprep.subr.mxu0 0.0
    %2826 = vmatpush2.msra.mxu0 0.0
    %2827 = vmatprep.subr.mxu0 0.0
    %2828 = vmatpush2.msra.mxu0 0.0
    %2829 = vmatprep.subr.mxu0 0.0
    %2830 = vmatpush2.msra.mxu0 0.0
    %2831 = vmatprep.subr.mxu0 0.0
    %2832 = vmatpush2.msra.mxu0 0.0
    %2833 = vmatprep.subr.mxu0 0.0
    %2834 = vmatpush2.msra.mxu0 0.0
    %2835 = vmatprep.subr.mxu0 0.0
    %2836 = vmatpush2.msra.mxu0 0.0
    %2837 = vmatprep.subr.mxu0 0.0
    %2838 = vmatpush2.msra.mxu0 0.0
    %2839 = vmatprep.subr.mxu0 0.0
    %2840 = vmatpush2.msra.mxu0 0.0
    %2841 = vmatprep.subr.mxu0 0.0
    %2842 = vmatpush2.msra.mxu0 0.0
    %2843 = vmatprep.mubr.f32.mxu0 0.0
    %v2844 = vand.u32 %v1433, 4294901760
    %v2845 = vsub.f32 %v1433, %v2844
    %2846 = vmatmul.mubr.f32.gmra.mxu0 %v2845
    %v2847 = vpop.f32.mrf.mxu0
    %v2848 = vadd.f32 %v2711, %v2847
    %v2849 = vpop.f32.mrf.mxu0
    %v2850 = vadd.f32 %v2713, %v2849
    %2851 = vdwg.mxu0
    %v2852 = vand.u32 %v1497, 4294901760
    %2853 = vmatprep.subr.mxu0 %v2852
    %v2854 = vand.u32 %v1496, 4294901760
    %2855 = vmatpush1.msra.mxu0 %v2854
    %v2856 = vand.u32 %v1493, 4294901760
    %2857 = vmatprep.subr.mxu0 %v2856
    %v2858 = vand.u32 %v1492, 4294901760
    %2859 = vmatpush1.msra.mxu0 %v2858
    %v2860 = vand.u32 %v1489, 4294901760
    %2861 = vmatprep.subr.mxu0 %v2860
    %v2862 = vand.u32 %v1488, 4294901760
    %2863 = vmatpush1.msra.mxu0 %v2862
    %v2864 = vand.u32 %v1485, 4294901760
    %2865 = vmatprep.subr.mxu0 %v2864
    %v2866 = vand.u32 %v1484, 4294901760
    %2867 = vmatpush1.msra.mxu0 %v2866
    %v2868 = vand.u32 %v1481, 4294901760
    %2869 = vmatprep.subr.mxu0 %v2868
    %v2870 = vand.u32 %v1480, 4294901760
    %2871 = vmatpush1.msra.mxu0 %v2870
    %v2872 = vand.u32 %v1477, 4294901760
    %2873 = vmatprep.subr.mxu0 %v2872
    %v2874 = vand.u32 %v1476, 4294901760
    %2875 = vmatpush1.msra.mxu0 %v2874
    %v2876 = vand.u32 %v1473, 4294901760
    %2877 = vmatprep.subr.mxu0 %v2876
    %v2878 = vand.u32 %v1472, 4294901760
    %2879 = vmatpush1.msra.mxu0 %v2878
    %v2880 = vand.u32 %v1469, 4294901760
    %2881 = vmatprep.subr.mxu0 %v2880
    %v2882 = vand.u32 %v1468, 4294901760
    %2883 = vmatpush1.msra.mxu0 %v2882
    %v2884 = vand.u32 %v1465, 4294901760
    %2885 = vmatprep.subr.mxu0 %v2884
    %v2886 = vand.u32 %v1464, 4294901760
    %2887 = vmatpush1.msra.mxu0 %v2886
    %v2888 = vand.u32 %v1461, 4294901760
    %2889 = vmatprep.subr.mxu0 %v2888
    %v2890 = vand.u32 %v1460, 4294901760
    %2891 = vmatpush1.msra.mxu0 %v2890
    %v2892 = vand.u32 %v1457, 4294901760
    %2893 = vmatprep.subr.mxu0 %v2892
    %v2894 = vand.u32 %v1456, 4294901760
    %2895 = vmatpush1.msra.mxu0 %v2894
    %v2896 = vand.u32 %v1453, 4294901760
    %2897 = vmatprep.subr.mxu0 %v2896
    %v2898 = vand.u32 %v1452, 4294901760
    %2899 = vmatpush1.msra.mxu0 %v2898
    %v2900 = vand.u32 %v1449, 4294901760
    %2901 = vmatprep.subr.mxu0 %v2900
    %v2902 = vand.u32 %v1448, 4294901760
    %2903 = vmatpush1.msra.mxu0 %v2902
    %v2904 = vand.u32 %v1445, 4294901760
    %2905 = vmatprep.subr.mxu0 %v2904
    %v2906 = vand.u32 %v1444, 4294901760
    %2907 = vmatpush1.msra.mxu0 %v2906
    %v2908 = vand.u32 %v1441, 4294901760
    %2909 = vmatprep.subr.mxu0 %v2908
    %v2910 = vand.u32 %v1440, 4294901760
    %2911 = vmatpush1.msra.mxu0 %v2910
    %v2912 = vand.u32 %v1437, 4294901760
    %2913 = vmatprep.subr.mxu0 %v2912
    %v2914 = vand.u32 %v1436, 4294901760
    %2915 = vmatpush1.msra.mxu0 %v2914
    %2916 = vmatprep.subr.mxu0 0.0
    %2917 = vmatpush2.msra.mxu0 0.0
    %2918 = vmatprep.subr.mxu0 0.0
    %2919 = vmatpush2.msra.mxu0 0.0
    %2920 = vmatprep.subr.mxu0 0.0
    %2921 = vmatpush2.msra.mxu0 0.0
    %2922 = vmatprep.subr.mxu0 0.0
    %2923 = vmatpush2.msra.mxu0 0.0
    %2924 = vmatprep.subr.mxu0 0.0
    %2925 = vmatpush2.msra.mxu0 0.0
    %2926 = vmatprep.subr.mxu0 0.0
    %2927 = vmatpush2.msra.mxu0 0.0
    %2928 = vmatprep.subr.mxu0 0.0
    %2929 = vmatpush2.msra.mxu0 0.0
    %2930 = vmatprep.subr.mxu0 0.0
    %2931 = vmatpush2.msra.mxu0 0.0
    %2932 = vmatprep.subr.mxu0 0.0
    %2933 = vmatpush2.msra.mxu0 0.0
    %2934 = vmatprep.subr.mxu0 0.0
    %2935 = vmatpush2.msra.mxu0 0.0
    %2936 = vmatprep.subr.mxu0 0.0
    %2937 = vmatpush2.msra.mxu0 0.0
    %2938 = vmatprep.subr.mxu0 0.0
    %2939 = vmatpush2.msra.mxu0 0.0
    %2940 = vmatprep.subr.mxu0 0.0
    %2941 = vmatpush2.msra.mxu0 0.0
    %2942 = vmatprep.subr.mxu0 0.0
    %2943 = vmatpush2.msra.mxu0 0.0
    %2944 = vmatprep.subr.mxu0 0.0
    %2945 = vmatpush2.msra.mxu0 0.0
    %2946 = vmatprep.subr.mxu0 0.0
    %2947 = vmatpush2.msra.mxu0 0.0
    %2948 = vmatprep.mubr.f32.mxu0 0.0
    %v2949 = vand.u32 %v1433, 4294901760
    %v2950 = vsub.f32 %v1433, %v2949
    %v2951 = vand.u32 %v2950, 4294901760
    %2952 = vmatmul.mubr.f32.gmra.mxu0 %v2951
    %v2953 = vpop.f32.mrf.mxu0
    %v2954 = vadd.f32 %v2848, %v2953
    %v2955 = vpop.f32.mrf.mxu0
    %v2956 = vadd.f32 %v2850, %v2955
    %2957 = vdwg.mxu0
    %v2958 = vand.u32 %v1497, 4294901760
    %v2959 = vsub.f32 %v1497, %v2958
    %v2960 = vand.u32 %v2959, 4294901760
    %2961 = vmatprep.subr.mxu0 %v2960
    %v2962 = vand.u32 %v1496, 4294901760
    %v2963 = vsub.f32 %v1496, %v2962
    %v2964 = vand.u32 %v2963, 4294901760
    %2965 = vmatpush1.msra.mxu0 %v2964
    %v2966 = vand.u32 %v1493, 4294901760
    %v2967 = vsub.f32 %v1493, %v2966
    %v2968 = vand.u32 %v2967, 4294901760
    %2969 = vmatprep.subr.mxu0 %v2968
    %v2970 = vand.u32 %v1492, 4294901760
    %v2971 = vsub.f32 %v1492, %v2970
    %v2972 = vand.u32 %v2971, 4294901760
    %2973 = vmatpush1.msra.mxu0 %v2972
    %v2974 = vand.u32 %v1489, 4294901760
    %v2975 = vsub.f32 %v1489, %v2974
    %v2976 = vand.u32 %v2975, 4294901760
    %2977 = vmatprep.subr.mxu0 %v2976
    %v2978 = vand.u32 %v1488, 4294901760
    %v2979 = vsub.f32 %v1488, %v2978
    %v2980 = vand.u32 %v2979, 4294901760
    %2981 = vmatpush1.msra.mxu0 %v2980
    %v2982 = vand.u32 %v1485, 4294901760
    %v2983 = vsub.f32 %v1485, %v2982
    %v2984 = vand.u32 %v2983, 4294901760
    %2985 = vmatprep.subr.mxu0 %v2984
    %v2986 = vand.u32 %v1484, 4294901760
    %v2987 = vsub.f32 %v1484, %v2986
    %v2988 = vand.u32 %v2987, 4294901760
    %2989 = vmatpush1.msra.mxu0 %v2988
    %v2990 = vand.u32 %v1481, 4294901760
    %v2991 = vsub.f32 %v1481, %v2990
    %v2992 = vand.u32 %v2991, 4294901760
    %2993 = vmatprep.subr.mxu0 %v2992
    %v2994 = vand.u32 %v1480, 4294901760
    %v2995 = vsub.f32 %v1480, %v2994
    %v2996 = vand.u32 %v2995, 4294901760
    %2997 = vmatpush1.msra.mxu0 %v2996
    %v2998 = vand.u32 %v1477, 4294901760
    %v2999 = vsub.f32 %v1477, %v2998
    %v3000 = vand.u32 %v2999, 4294901760
    %3001 = vmatprep.subr.mxu0 %v3000
    %v3002 = vand.u32 %v1476, 4294901760
    %v3003 = vsub.f32 %v1476, %v3002
    %v3004 = vand.u32 %v3003, 4294901760
    %3005 = vmatpush1.msra.mxu0 %v3004
    %v3006 = vand.u32 %v1473, 4294901760
    %v3007 = vsub.f32 %v1473, %v3006
    %v3008 = vand.u32 %v3007, 4294901760
    %3009 = vmatprep.subr.mxu0 %v3008
    %v3010 = vand.u32 %v1472, 4294901760
    %v3011 = vsub.f32 %v1472, %v3010
    %v3012 = vand.u32 %v3011, 4294901760
    %3013 = vmatpush1.msra.mxu0 %v3012
    %v3014 = vand.u32 %v1469, 4294901760
    %v3015 = vsub.f32 %v1469, %v3014
    %v3016 = vand.u32 %v3015, 4294901760
    %3017 = vmatprep.subr.mxu0 %v3016
    %v3018 = vand.u32 %v1468, 4294901760
    %v3019 = vsub.f32 %v1468, %v3018
    %v3020 = vand.u32 %v3019, 4294901760
    %3021 = vmatpush1.msra.mxu0 %v3020
    %v3022 = vand.u32 %v1465, 4294901760
    %v3023 = vsub.f32 %v1465, %v3022
    %v3024 = vand.u32 %v3023, 4294901760
    %3025 = vmatprep.subr.mxu0 %v3024
    %v3026 = vand.u32 %v1464, 4294901760
    %v3027 = vsub.f32 %v1464, %v3026
    %v3028 = vand.u32 %v3027, 4294901760
    %3029 = vmatpush1.msra.mxu0 %v3028
    %v3030 = vand.u32 %v1461, 4294901760
    %v3031 = vsub.f32 %v1461, %v3030
    %v3032 = vand.u32 %v3031, 4294901760
    %3033 = vmatprep.subr.mxu0 %v3032
    %v3034 = vand.u32 %v1460, 4294901760
    %v3035 = vsub.f32 %v1460, %v3034
    %v3036 = vand.u32 %v3035, 4294901760
    %3037 = vmatpush1.msra.mxu0 %v3036
    %v3038 = vand.u32 %v1457, 4294901760
    %v3039 = vsub.f32 %v1457, %v3038
    %v3040 = vand.u32 %v3039, 4294901760
    %3041 = vmatprep.subr.mxu0 %v3040
    %v3042 = vand.u32 %v1456, 4294901760
    %v3043 = vsub.f32 %v1456, %v3042
    %v3044 = vand.u32 %v3043, 4294901760
    %3045 = vmatpush1.msra.mxu0 %v3044
    %v3046 = vand.u32 %v1453, 4294901760
    %v3047 = vsub.f32 %v1453, %v3046
    %v3048 = vand.u32 %v3047, 4294901760
    %3049 = vmatprep.subr.mxu0 %v3048
    %v3050 = vand.u32 %v1452, 4294901760
    %v3051 = vsub.f32 %v1452, %v3050
    %v3052 = vand.u32 %v3051, 4294901760
    %3053 = vmatpush1.msra.mxu0 %v3052
    %v3054 = vand.u32 %v1449, 4294901760
    %v3055 = vsub.f32 %v1449, %v3054
    %v3056 = vand.u32 %v3055, 4294901760
    %3057 = vmatprep.subr.mxu0 %v3056
    %v3058 = vand.u32 %v1448, 4294901760
    %v3059 = vsub.f32 %v1448, %v3058
    %v3060 = vand.u32 %v3059, 4294901760
    %3061 = vmatpush1.msra.mxu0 %v3060
    %v3062 = vand.u32 %v1445, 4294901760
    %v3063 = vsub.f32 %v1445, %v3062
    %v3064 = vand.u32 %v3063, 4294901760
    %3065 = vmatprep.subr.mxu0 %v3064
    %v3066 = vand.u32 %v1444, 4294901760
    %v3067 = vsub.f32 %v1444, %v3066
    %v3068 = vand.u32 %v3067, 4294901760
    %3069 = vmatpush1.msra.mxu0 %v3068
    %v3070 = vand.u32 %v1441, 4294901760
    %v3071 = vsub.f32 %v1441, %v3070
    %v3072 = vand.u32 %v3071, 4294901760
    %3073 = vmatprep.subr.mxu0 %v3072
    %v3074 = vand.u32 %v1440, 4294901760
    %v3075 = vsub.f32 %v1440, %v3074
    %v3076 = vand.u32 %v3075, 4294901760
    %3077 = vmatpush1.msra.mxu0 %v3076
    %v3078 = vand.u32 %v1437, 4294901760
    %v3079 = vsub.f32 %v1437, %v3078
    %v3080 = vand.u32 %v3079, 4294901760
    %3081 = vmatprep.subr.mxu0 %v3080
    %v3082 = vand.u32 %v1436, 4294901760
    %v3083 = vsub.f32 %v1436, %v3082
    %v3084 = vand.u32 %v3083, 4294901760
    %3085 = vmatpush1.msra.mxu0 %v3084
    %3086 = vmatprep.subr.mxu0 0.0
    %3087 = vmatpush2.msra.mxu0 0.0
    %3088 = vmatprep.subr.mxu0 0.0
    %3089 = vmatpush2.msra.mxu0 0.0
    %3090 = vmatprep.subr.mxu0 0.0
    %3091 = vmatpush2.msra.mxu0 0.0
    %3092 = vmatprep.subr.mxu0 0.0
    %3093 = vmatpush2.msra.mxu0 0.0
    %3094 = vmatprep.subr.mxu0 0.0
    %3095 = vmatpush2.msra.mxu0 0.0
    %3096 = vmatprep.subr.mxu0 0.0
    %3097 = vmatpush2.msra.mxu0 0.0
    %3098 = vmatprep.subr.mxu0 0.0
    %3099 = vmatpush2.msra.mxu0 0.0
    %3100 = vmatprep.subr.mxu0 0.0
    %3101 = vmatpush2.msra.mxu0 0.0
    %3102 = vmatprep.subr.mxu0 0.0
    %3103 = vmatpush2.msra.mxu0 0.0
    %3104 = vmatprep.subr.mxu0 0.0
    %3105 = vmatpush2.msra.mxu0 0.0
    %3106 = vmatprep.subr.mxu0 0.0
    %3107 = vmatpush2.msra.mxu0 0.0
    %3108 = vmatprep.subr.mxu0 0.0
    %3109 = vmatpush2.msra.mxu0 0.0
    %3110 = vmatprep.subr.mxu0 0.0
    %3111 = vmatpush2.msra.mxu0 0.0
    %3112 = vmatprep.subr.mxu0 0.0
    %3113 = vmatpush2.msra.mxu0 0.0
    %3114 = vmatprep.subr.mxu0 0.0
    %3115 = vmatpush2.msra.mxu0 0.0
    %3116 = vmatprep.subr.mxu0 0.0
    %3117 = vmatpush2.msra.mxu0 0.0
    %3118 = vmatprep.mubr.f32.mxu0 0.0
    %v3119 = vand.u32 %v1433, 4294901760
    %3120 = vmatmul.mubr.f32.gmra.mxu0 %v3119
    %v3121 = vpop.f32.mrf.mxu0
    %v3122 = vadd.f32 %v2954, %v3121
    %v3123 = vpop.f32.mrf.mxu0
    %v3124 = vadd.f32 %v2956, %v3123
    %3125 = vdwg.mxu0
    %v3126 = vand.u32 %v1497, 4294901760
    %3127 = vmatprep.subr.mxu0 %v3126
    %v3128 = vand.u32 %v1496, 4294901760
    %3129 = vmatpush1.msra.mxu0 %v3128
    %v3130 = vand.u32 %v1493, 4294901760
    %3131 = vmatprep.subr.mxu0 %v3130
    %v3132 = vand.u32 %v1492, 4294901760
    %3133 = vmatpush1.msra.mxu0 %v3132
    %v3134 = vand.u32 %v1489, 4294901760
    %3135 = vmatprep.subr.mxu0 %v3134
    %v3136 = vand.u32 %v1488, 4294901760
    %3137 = vmatpush1.msra.mxu0 %v3136
    %v3138 = vand.u32 %v1485, 4294901760
    %3139 = vmatprep.subr.mxu0 %v3138
    %v3140 = vand.u32 %v1484, 4294901760
    %3141 = vmatpush1.msra.mxu0 %v3140
    %v3142 = vand.u32 %v1481, 4294901760
    %3143 = vmatprep.subr.mxu0 %v3142
    %v3144 = vand.u32 %v1480, 4294901760
    %3145 = vmatpush1.msra.mxu0 %v3144
    %v3146 = vand.u32 %v1477, 4294901760
    %3147 = vmatprep.subr.mxu0 %v3146
    %v3148 = vand.u32 %v1476, 4294901760
    %3149 = vmatpush1.msra.mxu0 %v3148
    %v3150 = vand.u32 %v1473, 4294901760
    %3151 = vmatprep.subr.mxu0 %v3150
    %v3152 = vand.u32 %v1472, 4294901760
    %3153 = vmatpush1.msra.mxu0 %v3152
    %v3154 = vand.u32 %v1469, 4294901760
    %3155 = vmatprep.subr.mxu0 %v3154
    %v3156 = vand.u32 %v1468, 4294901760
    %3157 = vmatpush1.msra.mxu0 %v3156
    %v3158 = vand.u32 %v1465, 4294901760
    %3159 = vmatprep.subr.mxu0 %v3158
    %v3160 = vand.u32 %v1464, 4294901760
    %3161 = vmatpush1.msra.mxu0 %v3160
    %v3162 = vand.u32 %v1461, 4294901760
    %3163 = vmatprep.subr.mxu0 %v3162
    %v3164 = vand.u32 %v1460, 4294901760
    %3165 = vmatpush1.msra.mxu0 %v3164
    %v3166 = vand.u32 %v1457, 4294901760
    %3167 = vmatprep.subr.mxu0 %v3166
    %v3168 = vand.u32 %v1456, 4294901760
    %3169 = vmatpush1.msra.mxu0 %v3168
    %v3170 = vand.u32 %v1453, 4294901760
    %3171 = vmatprep.subr.mxu0 %v3170
    %v3172 = vand.u32 %v1452, 4294901760
    %3173 = vmatpush1.msra.mxu0 %v3172
    %v3174 = vand.u32 %v1449, 4294901760
    %3175 = vmatprep.subr.mxu0 %v3174
    %v3176 = vand.u32 %v1448, 4294901760
    %3177 = vmatpush1.msra.mxu0 %v3176
    %v3178 = vand.u32 %v1445, 4294901760
    %3179 = vmatprep.subr.mxu0 %v3178
    %v3180 = vand.u32 %v1444, 4294901760
    %3181 = vmatpush1.msra.mxu0 %v3180
    %v3182 = vand.u32 %v1441, 4294901760
    %3183 = vmatprep.subr.mxu0 %v3182
    %v3184 = vand.u32 %v1440, 4294901760
    %3185 = vmatpush1.msra.mxu0 %v3184
    %v3186 = vand.u32 %v1437, 4294901760
    %3187 = vmatprep.subr.mxu0 %v3186
    %v3188 = vand.u32 %v1436, 4294901760
    %3189 = vmatpush1.msra.mxu0 %v3188
    %3190 = vmatprep.subr.mxu0 0.0
    %3191 = vmatpush2.msra.mxu0 0.0
    %3192 = vmatprep.subr.mxu0 0.0
    %3193 = vmatpush2.msra.mxu0 0.0
    %3194 = vmatprep.subr.mxu0 0.0
    %3195 = vmatpush2.msra.mxu0 0.0
    %3196 = vmatprep.subr.mxu0 0.0
    %3197 = vmatpush2.msra.mxu0 0.0
    %3198 = vmatprep.subr.mxu0 0.0
    %3199 = vmatpush2.msra.mxu0 0.0
    %3200 = vmatprep.subr.mxu0 0.0
    %3201 = vmatpush2.msra.mxu0 0.0
    %3202 = vmatprep.subr.mxu0 0.0
    %3203 = vmatpush2.msra.mxu0 0.0
    %3204 = vmatprep.subr.mxu0 0.0
    %3205 = vmatpush2.msra.mxu0 0.0
    %3206 = vmatprep.subr.mxu0 0.0
    %3207 = vmatpush2.msra.mxu0 0.0
    %3208 = vmatprep.subr.mxu0 0.0
    %3209 = vmatpush2.msra.mxu0 0.0
    %3210 = vmatprep.subr.mxu0 0.0
    %3211 = vmatpush2.msra.mxu0 0.0
    %3212 = vmatprep.subr.mxu0 0.0
    %3213 = vmatpush2.msra.mxu0 0.0
    %3214 = vmatprep.subr.mxu0 0.0
    %3215 = vmatpush2.msra.mxu0 0.0
    %3216 = vmatprep.subr.mxu0 0.0
    %3217 = vmatpush2.msra.mxu0 0.0
    %3218 = vmatprep.subr.mxu0 0.0
    %3219 = vmatpush2.msra.mxu0 0.0
    %3220 = vmatprep.subr.mxu0 0.0
    %3221 = vmatpush2.msra.mxu0 0.0
    %3222 = vmatprep.mubr.f32.mxu0 0.0
    %v3223 = vand.u32 %v1433, 4294901760
    %3224 = vmatmul.mubr.f32.gmra.mxu0 %v3223
    %v3225 = vpop.f32.mrf.mxu0
    %v3226 = vadd.f32 %v3122, %v3225
    %v3227 = vpop.f32.mrf.mxu0
    %v3228 = vadd.f32 %v3124, %v3227
    %3229 = vdwg.mxu0
    %v3230 = vmul.f32 %v2371, 0.5
    %v3231 = vmul.f32 %v2373, 0.5
    %v3232 = vmul.f32 %v3226, 0.5
    %v3233 = vmul.f32 %v3228, 0.5
    %v3234 = vtanh.pop %v3230
    %v3235 = vtanh.pop %v3231
    %v3236 = vtanh.pop %v3232
    %v3237 = vtanh.pop %v3233
    %v3238 = vmul.f32 %v3234, 0.5
    %v3239 = vmul.f32 %v3235, 0.5
    %v3240 = vmul.f32 %v3236, 0.5
    %v3241 = vmul.f32 %v3237, 0.5
    %v3242 = vadd.f32 %v3238, 0.5
    %v3243 = vadd.f32 %v3239, 0.5
    %v3244 = vadd.f32 %v3240, 0.5
    %v3245 = vadd.f32 %v3241, 0.5
    %v3246 = vmul.f32 %v2371, %v3242
    %v3247 = vmul.f32 %v2373, %v3243
    %v3248 = vmul.f32 %v3226, %v3244
    %v3249 = vmul.f32 %v3228, %v3245
    %v3250 = vld [vmem:[#allocation8] sm:$0xff]
    %v3251 = vld [vmem:[#allocation8 + $0x8] sm:$0xff]
    %v3252 = vld [vmem:[#allocation8 + $0x10] sm:$0xff]
    %v3253 = vld [vmem:[#allocation8 + $0x18] sm:$0xff]
    %v3254 = vld [vmem:[#allocation8 + $0x20] sm:$0xff]
    %v3255 = vld [vmem:[#allocation8 + $0x28] sm:$0xff]
    %v3256 = vld [vmem:[#allocation8 + $0x30] sm:$0xff]
    %v3257 = vld [vmem:[#allocation8 + $0x38] sm:$0xff]
    %v3258 = vld [vmem:[#allocation8 + $0x40] sm:$0xff]
    %v3259 = vld [vmem:[#allocation8 + $0x48] sm:$0xff]
    %v3260 = vld [vmem:[#allocation8 + $0x50] sm:$0xff]
    %v3261 = vld [vmem:[#allocation8 + $0x58] sm:$0xff]
    %v3262 = vld [vmem:[#allocation8 + $0x60] sm:$0xff]
    %v3263 = vld [vmem:[#allocation8 + $0x68] sm:$0xff]
    %v3264 = vld [vmem:[#allocation8 + $0x70] sm:$0xff]
    %v3265 = vld [vmem:[#allocation8 + $0x78] sm:$0xff]
    %v3266 = vld [vmem:[#allocation8 + $0x80] sm:$0xff]
    %v3267 = vld [vmem:[#allocation8 + $0x88] sm:$0xff]
    %v3268 = vld [vmem:[#allocation8 + $0x90] sm:$0xff]
    %v3269 = vld [vmem:[#allocation8 + $0x98] sm:$0xff]
    %v3270 = vld [vmem:[#allocation8 + $0xa0] sm:$0xff]
    %v3271 = vld [vmem:[#allocation8 + $0xa8] sm:$0xff]
    %v3272 = vld [vmem:[#allocation8 + $0xb0] sm:$0xff]
    %v3273 = vld [vmem:[#allocation8 + $0xb8] sm:$0xff]
    %v3274 = vld [vmem:[#allocation8 + $0xc0] sm:$0xff]
    %v3275 = vld [vmem:[#allocation8 + $0xc8] sm:$0xff]
    %v3276 = vld [vmem:[#allocation8 + $0xd0] sm:$0xff]
    %v3277 = vld [vmem:[#allocation8 + $0xd8] sm:$0xff]
    %v3278 = vld [vmem:[#allocation8 + $0xe0] sm:$0xff]
    %v3279 = vld [vmem:[#allocation8 + $0xe8] sm:$0xff]
    %v3280 = vld [vmem:[#allocation8 + $0xf0] sm:$0xff]
    %v3281 = vld [vmem:[#allocation8 + $0xf8] sm:$0xff]
    %v3282 = vld [vmem:[#allocation8 + $0x100] sm:$0xff]
    %v3283 = vld [vmem:[#allocation8 + $0x108] sm:$0xff]
    %v3284 = vld [vmem:[#allocation8 + $0x110] sm:$0xff]
    %v3285 = vld [vmem:[#allocation8 + $0x118] sm:$0xff]
    %v3286 = vld [vmem:[#allocation8 + $0x120] sm:$0xff]
    %v3287 = vld [vmem:[#allocation8 + $0x128] sm:$0xff]
    %v3288 = vld [vmem:[#allocation8 + $0x130] sm:$0xff]
    %v3289 = vld [vmem:[#allocation8 + $0x138] sm:$0xff]
    %v3290 = vld [vmem:[#allocation8 + $0x140] sm:$0xff]
    %v3291 = vld [vmem:[#allocation8 + $0x148] sm:$0xff]
    %v3292 = vld [vmem:[#allocation8 + $0x150] sm:$0xff]
    %v3293 = vld [vmem:[#allocation8 + $0x158] sm:$0xff]
    %v3294 = vld [vmem:[#allocation8 + $0x160] sm:$0xff]
    %v3295 = vld [vmem:[#allocation8 + $0x168] sm:$0xff]
    %v3296 = vld [vmem:[#allocation8 + $0x170] sm:$0xff]
    %v3297 = vld [vmem:[#allocation8 + $0x178] sm:$0xff]
    %v3298 = vld [vmem:[#allocation8 + $0x180] sm:$0xff]
    %v3299 = vld [vmem:[#allocation8 + $0x188] sm:$0xff]
    %v3300 = vld [vmem:[#allocation8 + $0x190] sm:$0xff]
    %v3301 = vld [vmem:[#allocation8 + $0x198] sm:$0xff]
    %v3302 = vld [vmem:[#allocation8 + $0x1a0] sm:$0xff]
    %v3303 = vld [vmem:[#allocation8 + $0x1a8] sm:$0xff]
    %v3304 = vld [vmem:[#allocation8 + $0x1b0] sm:$0xff]
    %v3305 = vld [vmem:[#allocation8 + $0x1b8] sm:$0xff]
    %v3306 = vld [vmem:[#allocation8 + $0x1c0] sm:$0xff]
    %v3307 = vld [vmem:[#allocation8 + $0x1c8] sm:$0xff]
    %v3308 = vld [vmem:[#allocation8 + $0x1d0] sm:$0xff]
    %v3309 = vld [vmem:[#allocation8 + $0x1d8] sm:$0xff]
    %v3310 = vld [vmem:[#allocation8 + $0x1e0] sm:$0xff]
    %v3311 = vld [vmem:[#allocation8 + $0x1e8] sm:$0xff]
    %v3312 = vld [vmem:[#allocation8 + $0x1f0] sm:$0xff]
    %v3313 = vld [vmem:[#allocation8 + $0x1f8] sm:$0xff]
    %v3314 = vld [vmem:[%s5] sm:$0x1]
    %v3316 = vlaneseq
    %v3317 = vshrl.u32 %v3316, 7
    %v3318 = vsub.s32 0, %v3317
    %v3319 = vrot.slane %v3314, %v3318
    %3321 = vmatprep.subr.mxu0 0.0
    %v3322 = vand.u32 %v3265, 4294901760
    %3323 = vmatpush1.msra.mxu0 %v3322
    %3324 = vmatprep.subr.mxu0 0.0
    %v3325 = vand.u32 %v3264, 4294901760
    %3326 = vmatpush1.msra.mxu0 %v3325
    %3327 = vmatprep.subr.mxu0 0.0
    %v3328 = vand.u32 %v3263, 4294901760
    %3329 = vmatpush1.msra.mxu0 %v3328
    %3330 = vmatprep.subr.mxu0 0.0
    %v3331 = vand.u32 %v3262, 4294901760
    %3332 = vmatpush1.msra.mxu0 %v3331
    %3333 = vmatprep.subr.mxu0 0.0
    %v3334 = vand.u32 %v3261, 4294901760
    %3335 = vmatpush1.msra.mxu0 %v3334
    %3336 = vmatprep.subr.mxu0 0.0
    %v3337 = vand.u32 %v3260, 4294901760
    %3338 = vmatpush1.msra.mxu0 %v3337
    %3339 = vmatprep.subr.mxu0 0.0
    %v3340 = vand.u32 %v3259, 4294901760
    %3341 = vmatpush1.msra.mxu0 %v3340
    %3342 = vmatprep.subr.mxu0 0.0
    %v3343 = vand.u32 %v3258, 4294901760
    %3344 = vmatpush1.msra.mxu0 %v3343
    %3345 = vmatprep.subr.mxu0 0.0
    %v3346 = vand.u32 %v3257, 4294901760
    %3347 = vmatpush1.msra.mxu0 %v3346
    %3348 = vmatprep.subr.mxu0 0.0
    %v3349 = vand.u32 %v3256, 4294901760
    %3350 = vmatpush1.msra.mxu0 %v3349
    %3351 = vmatprep.subr.mxu0 0.0
    %v3352 = vand.u32 %v3255, 4294901760
    %3353 = vmatpush1.msra.mxu0 %v3352
    %3354 = vmatprep.subr.mxu0 0.0
    %v3355 = vand.u32 %v3254, 4294901760
    %3356 = vmatpush1.msra.mxu0 %v3355
    %3357 = vmatprep.subr.mxu0 0.0
    %v3358 = vand.u32 %v3253, 4294901760
    %3359 = vmatpush1.msra.mxu0 %v3358
    %3360 = vmatprep.subr.mxu0 0.0
    %v3361 = vand.u32 %v3252, 4294901760
    %3362 = vmatpush1.msra.mxu0 %v3361
    %3363 = vmatprep.subr.mxu0 0.0
    %v3364 = vand.u32 %v3251, 4294901760
    %3365 = vmatpush1.msra.mxu0 %v3364
    %3366 = vmatprep.subr.mxu0 0.0
    %v3367 = vand.u32 %v3250, 4294901760
    %3368 = vmatpush1.msra.mxu0 %v3367
    %3369 = vmatprep.subr.mxu0 0.0
    %v3370 = vand.u32 %v3281, 4294901760
    %3371 = vmatpush2.msra.mxu0 %v3370
    %3372 = vmatprep.subr.mxu0 0.0
    %v3373 = vand.u32 %v3280, 4294901760
    %3374 = vmatpush2.msra.mxu0 %v3373
    %3375 = vmatprep.subr.mxu0 0.0
    %v3376 = vand.u32 %v3279, 4294901760
    %3377 = vmatpush2.msra.mxu0 %v3376
    %3378 = vmatprep.subr.mxu0 0.0
    %v3379 = vand.u32 %v3278, 4294901760
    %3380 = vmatpush2.msra.mxu0 %v3379
    %3381 = vmatprep.subr.mxu0 0.0
    %v3382 = vand.u32 %v3277, 4294901760
    %3383 = vmatpush2.msra.mxu0 %v3382
    %3384 = vmatprep.subr.mxu0 0.0
    %v3385 = vand.u32 %v3276, 4294901760
    %3386 = vmatpush2.msra.mxu0 %v3385
    %3387 = vmatprep.subr.mxu0 0.0
    %v3388 = vand.u32 %v3275, 4294901760
    %3389 = vmatpush2.msra.mxu0 %v3388
    %3390 = vmatprep.subr.mxu0 0.0
    %v3391 = vand.u32 %v3274, 4294901760
    %3392 = vmatpush2.msra.mxu0 %v3391
    %3393 = vmatprep.subr.mxu0 0.0
    %v3394 = vand.u32 %v3273, 4294901760
    %3395 = vmatpush2.msra.mxu0 %v3394
    %3396 = vmatprep.subr.mxu0 0.0
    %v3397 = vand.u32 %v3272, 4294901760
    %3398 = vmatpush2.msra.mxu0 %v3397
    %3399 = vmatprep.subr.mxu0 0.0
    %v3400 = vand.u32 %v3271, 4294901760
    %3401 = vmatpush2.msra.mxu0 %v3400
    %3402 = vmatprep.subr.mxu0 0.0
    %v3403 = vand.u32 %v3270, 4294901760
    %3404 = vmatpush2.msra.mxu0 %v3403
    %3405 = vmatprep.subr.mxu0 0.0
    %v3406 = vand.u32 %v3269, 4294901760
    %3407 = vmatpush2.msra.mxu0 %v3406
    %3408 = vmatprep.subr.mxu0 0.0
    %v3409 = vand.u32 %v3268, 4294901760
    %3410 = vmatpush2.msra.mxu0 %v3409
    %3411 = vmatprep.subr.mxu0 0.0
    %v3412 = vand.u32 %v3267, 4294901760
    %3413 = vmatpush2.msra.mxu0 %v3412
    %3414 = vmatprep.subr.mxu0 0.0
    %v3415 = vand.u32 %v3266, 4294901760
    %3416 = vmatpush2.msra.mxu0 %v3415
    %v3417 = vand.u32 %v3247, 4294901760
    %v3418 = vsub.f32 %v3247, %v3417
    %v3419 = vand.u32 %v3418, 4294901760
    %v3420 = vsub.f32 %v3418, %v3419
    %v3421 = vand.u32 %v3420, 4294901760
    %3422 = vmatprep.mubr.f32.mxu0 %v3421
    %v3423 = vand.u32 %v3246, 4294901760
    %v3424 = vsub.f32 %v3246, %v3423
    %v3425 = vand.u32 %v3424, 4294901760
    %v3426 = vsub.f32 %v3424, %v3425
    %v3427 = vand.u32 %v3426, 4294901760
    %3428 = vmatmul.mubr.f32.gmra.mxu0 %v3427
    %v3429 = vpop.f32.mrf.mxu0
    %v3430 = vadd.f32 %v3319, %v3429
    %v3431 = vpop.f32.mrf.mxu0
    %3432 = vdwg.mxu0
    %3433 = vmatprep.subr.mxu0 0.0
    %v3434 = vand.u32 %v3265, 4294901760
    %v3435 = vsub.f32 %v3265, %v3434
    %v3436 = vand.u32 %v3435, 4294901760
    %v3437 = vsub.f32 %v3435, %v3436
    %v3438 = vand.u32 %v3437, 4294901760
    %3439 = vmatpush1.msra.mxu0 %v3438
    %3440 = vmatprep.subr.mxu0 0.0
    %v3441 = vand.u32 %v3264, 4294901760
    %v3442 = vsub.f32 %v3264, %v3441
    %v3443 = vand.u32 %v3442, 4294901760
    %v3444 = vsub.f32 %v3442, %v3443
    %v3445 = vand.u32 %v3444, 4294901760
    %3446 = vmatpush1.msra.mxu0 %v3445
    %3447 = vmatprep.subr.mxu0 0.0
    %v3448 = vand.u32 %v3263, 4294901760
    %v3449 = vsub.f32 %v3263, %v3448
    %v3450 = vand.u32 %v3449, 4294901760
    %v3451 = vsub.f32 %v3449, %v3450
    %v3452 = vand.u32 %v3451, 4294901760
    %3453 = vmatpush1.msra.mxu0 %v3452
    %3454 = vmatprep.subr.mxu0 0.0
    %v3455 = vand.u32 %v3262, 4294901760
    %v3456 = vsub.f32 %v3262, %v3455
    %v3457 = vand.u32 %v3456, 4294901760
    %v3458 = vsub.f32 %v3456, %v3457
    %v3459 = vand.u32 %v3458, 4294901760
    %3460 = vmatpush1.msra.mxu0 %v3459
    %3461 = vmatprep.subr.mxu0 0.0
    %v3462 = vand.u32 %v3261, 4294901760
    %v3463 = vsub.f32 %v3261, %v3462
    %v3464 = vand.u32 %v3463, 4294901760
    %v3465 = vsub.f32 %v3463, %v3464
    %v3466 = vand.u32 %v3465, 4294901760
    %3467 = vmatpush1.msra.mxu0 %v3466
    %3468 = vmatprep.subr.mxu0 0.0
    %v3469 = vand.u32 %v3260, 4294901760
    %v3470 = vsub.f32 %v3260, %v3469
    %v3471 = vand.u32 %v3470, 4294901760
    %v3472 = vsub.f32 %v3470, %v3471
    %v3473 = vand.u32 %v3472, 4294901760
    %3474 = vmatpush1.msra.mxu0 %v3473
    %3475 = vmatprep.subr.mxu0 0.0
    %v3476 = vand.u32 %v3259, 4294901760
    %v3477 = vsub.f32 %v3259, %v3476
    %v3478 = vand.u32 %v3477, 4294901760
    %v3479 = vsub.f32 %v3477, %v3478
    %v3480 = vand.u32 %v3479, 4294901760
    %3481 = vmatpush1.msra.mxu0 %v3480
    %3482 = vmatprep.subr.mxu0 0.0
    %v3483 = vand.u32 %v3258, 4294901760
    %v3484 = vsub.f32 %v3258, %v3483
    %v3485 = vand.u32 %v3484, 4294901760
    %v3486 = vsub.f32 %v3484, %v3485
    %v3487 = vand.u32 %v3486, 4294901760
    %3488 = vmatpush1.msra.mxu0 %v3487
    %3489 = vmatprep.subr.mxu0 0.0
    %v3490 = vand.u32 %v3257, 4294901760
    %v3491 = vsub.f32 %v3257, %v3490
    %v3492 = vand.u32 %v3491, 4294901760
    %v3493 = vsub.f32 %v3491, %v3492
    %v3494 = vand.u32 %v3493, 4294901760
    %3495 = vmatpush1.msra.mxu0 %v3494
    %3496 = vmatprep.subr.mxu0 0.0
    %v3497 = vand.u32 %v3256, 4294901760
    %v3498 = vsub.f32 %v3256, %v3497
    %v3499 = vand.u32 %v3498, 4294901760
    %v3500 = vsub.f32 %v3498, %v3499
    %v3501 = vand.u32 %v3500, 4294901760
    %3502 = vmatpush1.msra.mxu0 %v3501
    %3503 = vmatprep.subr.mxu0 0.0
    %v3504 = vand.u32 %v3255, 4294901760
    %v3505 = vsub.f32 %v3255, %v3504
    %v3506 = vand.u32 %v3505, 4294901760
    %v3507 = vsub.f32 %v3505, %v3506
    %v3508 = vand.u32 %v3507, 4294901760
    %3509 = vmatpush1.msra.mxu0 %v3508
    %3510 = vmatprep.subr.mxu0 0.0
    %v3511 = vand.u32 %v3254, 4294901760
    %v3512 = vsub.f32 %v3254, %v3511
    %v3513 = vand.u32 %v3512, 4294901760
    %v3514 = vsub.f32 %v3512, %v3513
    %v3515 = vand.u32 %v3514, 4294901760
    %3516 = vmatpush1.msra.mxu0 %v3515
    %3517 = vmatprep.subr.mxu0 0.0
    %v3518 = vand.u32 %v3253, 4294901760
    %v3519 = vsub.f32 %v3253, %v3518
    %v3520 = vand.u32 %v3519, 4294901760
    %v3521 = vsub.f32 %v3519, %v3520
    %v3522 = vand.u32 %v3521, 4294901760
    %3523 = vmatpush1.msra.mxu0 %v3522
    %3524 = vmatprep.subr.mxu0 0.0
    %v3525 = vand.u32 %v3252, 4294901760
    %v3526 = vsub.f32 %v3252, %v3525
    %v3527 = vand.u32 %v3526, 4294901760
    %v3528 = vsub.f32 %v3526, %v3527
    %v3529 = vand.u32 %v3528, 4294901760
    %3530 = vmatpush1.msra.mxu0 %v3529
    %3531 = vmatprep.subr.mxu0 0.0
    %v3532 = vand.u32 %v3251, 4294901760
    %v3533 = vsub.f32 %v3251, %v3532
    %v3534 = vand.u32 %v3533, 4294901760
    %v3535 = vsub.f32 %v3533, %v3534
    %v3536 = vand.u32 %v3535, 4294901760
    %3537 = vmatpush1.msra.mxu0 %v3536
    %3538 = vmatprep.subr.mxu0 0.0
    %v3539 = vand.u32 %v3250, 4294901760
    %v3540 = vsub.f32 %v3250, %v3539
    %v3541 = vand.u32 %v3540, 4294901760
    %v3542 = vsub.f32 %v3540, %v3541
    %v3543 = vand.u32 %v3542, 4294901760
    %3544 = vmatpush1.msra.mxu0 %v3543
    %3545 = vmatprep.subr.mxu0 0.0
    %v3546 = vand.u32 %v3281, 4294901760
    %v3547 = vsub.f32 %v3281, %v3546
    %v3548 = vand.u32 %v3547, 4294901760
    %v3549 = vsub.f32 %v3547, %v3548
    %v3550 = vand.u32 %v3549, 4294901760
    %3551 = vmatpush2.msra.mxu0 %v3550
    %3552 = vmatprep.subr.mxu0 0.0
    %v3553 = vand.u32 %v3280, 4294901760
    %v3554 = vsub.f32 %v3280, %v3553
    %v3555 = vand.u32 %v3554, 4294901760
    %v3556 = vsub.f32 %v3554, %v3555
    %v3557 = vand.u32 %v3556, 4294901760
    %3558 = vmatpush2.msra.mxu0 %v3557
    %3559 = vmatprep.subr.mxu0 0.0
    %v3560 = vand.u32 %v3279, 4294901760
    %v3561 = vsub.f32 %v3279, %v3560
    %v3562 = vand.u32 %v3561, 4294901760
    %v3563 = vsub.f32 %v3561, %v3562
    %v3564 = vand.u32 %v3563, 4294901760
    %3565 = vmatpush2.msra.mxu0 %v3564
    %3566 = vmatprep.subr.mxu0 0.0
    %v3567 = vand.u32 %v3278, 4294901760
    %v3568 = vsub.f32 %v3278, %v3567
    %v3569 = vand.u32 %v3568, 4294901760
    %v3570 = vsub.f32 %v3568, %v3569
    %v3571 = vand.u32 %v3570, 4294901760
    %3572 = vmatpush2.msra.mxu0 %v3571
    %3573 = vmatprep.subr.mxu0 0.0
    %v3574 = vand.u32 %v3277, 4294901760
    %v3575 = vsub.f32 %v3277, %v3574
    %v3576 = vand.u32 %v3575, 4294901760
    %v3577 = vsub.f32 %v3575, %v3576
    %v3578 = vand.u32 %v3577, 4294901760
    %3579 = vmatpush2.msra.mxu0 %v3578
    %3580 = vmatprep.subr.mxu0 0.0
    %v3581 = vand.u32 %v3276, 4294901760
    %v3582 = vsub.f32 %v3276, %v3581
    %v3583 = vand.u32 %v3582, 4294901760
    %v3584 = vsub.f32 %v3582, %v3583
    %v3585 = vand.u32 %v3584, 4294901760
    %3586 = vmatpush2.msra.mxu0 %v3585
    %3587 = vmatprep.subr.mxu0 0.0
    %v3588 = vand.u32 %v3275, 4294901760
    %v3589 = vsub.f32 %v3275, %v3588
    %v3590 = vand.u32 %v3589, 4294901760
    %v3591 = vsub.f32 %v3589, %v3590
    %v3592 = vand.u32 %v3591, 4294901760
    %3593 = vmatpush2.msra.mxu0 %v3592
    %3594 = vmatprep.subr.mxu0 0.0
    %v3595 = vand.u32 %v3274, 4294901760
    %v3596 = vsub.f32 %v3274, %v3595
    %v3597 = vand.u32 %v3596, 4294901760
    %v3598 = vsub.f32 %v3596, %v3597
    %v3599 = vand.u32 %v3598, 4294901760
    %3600 = vmatpush2.msra.mxu0 %v3599
    %3601 = vmatprep.subr.mxu0 0.0
    %v3602 = vand.u32 %v3273, 4294901760
    %v3603 = vsub.f32 %v3273, %v3602
    %v3604 = vand.u32 %v3603, 4294901760
    %v3605 = vsub.f32 %v3603, %v3604
    %v3606 = vand.u32 %v3605, 4294901760
    %3607 = vmatpush2.msra.mxu0 %v3606
    %3608 = vmatprep.subr.mxu0 0.0
    %v3609 = vand.u32 %v3272, 4294901760
    %v3610 = vsub.f32 %v3272, %v3609
    %v3611 = vand.u32 %v3610, 4294901760
    %v3612 = vsub.f32 %v3610, %v3611
    %v3613 = vand.u32 %v3612, 4294901760
    %3614 = vmatpush2.msra.mxu0 %v3613
    %3615 = vmatprep.subr.mxu0 0.0
    %v3616 = vand.u32 %v3271, 4294901760
    %v3617 = vsub.f32 %v3271, %v3616
    %v3618 = vand.u32 %v3617, 4294901760
    %v3619 = vsub.f32 %v3617, %v3618
    %v3620 = vand.u32 %v3619, 4294901760
    %3621 = vmatpush2.msra.mxu0 %v3620
    %3622 = vmatprep.subr.mxu0 0.0
    %v3623 = vand.u32 %v3270, 4294901760
    %v3624 = vsub.f32 %v3270, %v3623
    %v3625 = vand.u32 %v3624, 4294901760
    %v3626 = vsub.f32 %v3624, %v3625
    %v3627 = vand.u32 %v3626, 4294901760
    %3628 = vmatpush2.msra.mxu0 %v3627
    %3629 = vmatprep.subr.mxu0 0.0
    %v3630 = vand.u32 %v3269, 4294901760
    %v3631 = vsub.f32 %v3269, %v3630
    %v3632 = vand.u32 %v3631, 4294901760
    %v3633 = vsub.f32 %v3631, %v3632
    %v3634 = vand.u32 %v3633, 4294901760
    %3635 = vmatpush2.msra.mxu0 %v3634
    %3636 = vmatprep.subr.mxu0 0.0
    %v3637 = vand.u32 %v3268, 4294901760
    %v3638 = vsub.f32 %v3268, %v3637
    %v3639 = vand.u32 %v3638, 4294901760
    %v3640 = vsub.f32 %v3638, %v3639
    %v3641 = vand.u32 %v3640, 4294901760
    %3642 = vmatpush2.msra.mxu0 %v3641
    %3643 = vmatprep.subr.mxu0 0.0
    %v3644 = vand.u32 %v3267, 4294901760
    %v3645 = vsub.f32 %v3267, %v3644
    %v3646 = vand.u32 %v3645, 4294901760
    %v3647 = vsub.f32 %v3645, %v3646
    %v3648 = vand.u32 %v3647, 4294901760
    %3649 = vmatpush2.msra.mxu0 %v3648
    %3650 = vmatprep.subr.mxu0 0.0
    %v3651 = vand.u32 %v3266, 4294901760
    %v3652 = vsub.f32 %v3266, %v3651
    %v3653 = vand.u32 %v3652, 4294901760
    %v3654 = vsub.f32 %v3652, %v3653
    %v3655 = vand.u32 %v3654, 4294901760
    %3656 = vmatpush2.msra.mxu0 %v3655
    %v3657 = vand.u32 %v3247, 4294901760
    %3658 = vmatprep.mubr.f32.mxu0 %v3657
    %v3659 = vand.u32 %v3246, 4294901760
    %3660 = vmatmul.mubr.f32.gmra.mxu0 %v3659
    %v3661 = vpop.f32.mrf.mxu0
    %v3662 = vadd.f32 %v3430, %v3661
    %v3663 = vpop.f32.mrf.mxu0
    %3664 = vdwg.mxu0
    %3665 = vmatprep.subr.mxu0 0.0
    %v3666 = vand.u32 %v3265, 4294901760
    %v3667 = vsub.f32 %v3265, %v3666
    %3668 = vmatpush1.msra.mxu0 %v3667
    %3669 = vmatprep.subr.mxu0 0.0
    %v3670 = vand.u32 %v3264, 4294901760
    %v3671 = vsub.f32 %v3264, %v3670
    %3672 = vmatpush1.msra.mxu0 %v3671
    %3673 = vmatprep.subr.mxu0 0.0
    %v3674 = vand.u32 %v3263, 4294901760
    %v3675 = vsub.f32 %v3263, %v3674
    %3676 = vmatpush1.msra.mxu0 %v3675
    %3677 = vmatprep.subr.mxu0 0.0
    %v3678 = vand.u32 %v3262, 4294901760
    %v3679 = vsub.f32 %v3262, %v3678
    %3680 = vmatpush1.msra.mxu0 %v3679
    %3681 = vmatprep.subr.mxu0 0.0
    %v3682 = vand.u32 %v3261, 4294901760
    %v3683 = vsub.f32 %v3261, %v3682
    %3684 = vmatpush1.msra.mxu0 %v3683
    %3685 = vmatprep.subr.mxu0 0.0
    %v3686 = vand.u32 %v3260, 4294901760
    %v3687 = vsub.f32 %v3260, %v3686
    %3688 = vmatpush1.msra.mxu0 %v3687
    %3689 = vmatprep.subr.mxu0 0.0
    %v3690 = vand.u32 %v3259, 4294901760
    %v3691 = vsub.f32 %v3259, %v3690
    %3692 = vmatpush1.msra.mxu0 %v3691
    %3693 = vmatprep.subr.mxu0 0.0
    %v3694 = vand.u32 %v3258, 4294901760
    %v3695 = vsub.f32 %v3258, %v3694
    %3696 = vmatpush1.msra.mxu0 %v3695
    %3697 = vmatprep.subr.mxu0 0.0
    %v3698 = vand.u32 %v3257, 4294901760
    %v3699 = vsub.f32 %v3257, %v3698
    %3700 = vmatpush1.msra.mxu0 %v3699
    %3701 = vmatprep.subr.mxu0 0.0
    %v3702 = vand.u32 %v3256, 4294901760
    %v3703 = vsub.f32 %v3256, %v3702
    %3704 = vmatpush1.msra.mxu0 %v3703
    %3705 = vmatprep.subr.mxu0 0.0
    %v3706 = vand.u32 %v3255, 4294901760
    %v3707 = vsub.f32 %v3255, %v3706
    %3708 = vmatpush1.msra.mxu0 %v3707
    %3709 = vmatprep.subr.mxu0 0.0
    %v3710 = vand.u32 %v3254, 4294901760
    %v3711 = vsub.f32 %v3254, %v3710
    %3712 = vmatpush1.msra.mxu0 %v3711
    %3713 = vmatprep.subr.mxu0 0.0
    %v3714 = vand.u32 %v3253, 4294901760
    %v3715 = vsub.f32 %v3253, %v3714
    %3716 = vmatpush1.msra.mxu0 %v3715
    %3717 = vmatprep.subr.mxu0 0.0
    %v3718 = vand.u32 %v3252, 4294901760
    %v3719 = vsub.f32 %v3252, %v3718
    %3720 = vmatpush1.msra.mxu0 %v3719
    %3721 = vmatprep.subr.mxu0 0.0
    %v3722 = vand.u32 %v3251, 4294901760
    %v3723 = vsub.f32 %v3251, %v3722
    %3724 = vmatpush1.msra.mxu0 %v3723
    %3725 = vmatprep.subr.mxu0 0.0
    %v3726 = vand.u32 %v3250, 4294901760
    %v3727 = vsub.f32 %v3250, %v3726
    %3728 = vmatpush1.msra.mxu0 %v3727
    %3729 = vmatprep.subr.mxu0 0.0
    %v3730 = vand.u32 %v3281, 4294901760
    %v3731 = vsub.f32 %v3281, %v3730
    %3732 = vmatpush2.msra.mxu0 %v3731
    %3733 = vmatprep.subr.mxu0 0.0
    %v3734 = vand.u32 %v3280, 4294901760
    %v3735 = vsub.f32 %v3280, %v3734
    %3736 = vmatpush2.msra.mxu0 %v3735
    %3737 = vmatprep.subr.mxu0 0.0
    %v3738 = vand.u32 %v3279, 4294901760
    %v3739 = vsub.f32 %v3279, %v3738
    %3740 = vmatpush2.msra.mxu0 %v3739
    %3741 = vmatprep.subr.mxu0 0.0
    %v3742 = vand.u32 %v3278, 4294901760
    %v3743 = vsub.f32 %v3278, %v3742
    %3744 = vmatpush2.msra.mxu0 %v3743
    %3745 = vmatprep.subr.mxu0 0.0
    %v3746 = vand.u32 %v3277, 4294901760
    %v3747 = vsub.f32 %v3277, %v3746
    %3748 = vmatpush2.msra.mxu0 %v3747
    %3749 = vmatprep.subr.mxu0 0.0
    %v3750 = vand.u32 %v3276, 4294901760
    %v3751 = vsub.f32 %v3276, %v3750
    %3752 = vmatpush2.msra.mxu0 %v3751
    %3753 = vmatprep.subr.mxu0 0.0
    %v3754 = vand.u32 %v3275, 4294901760
    %v3755 = vsub.f32 %v3275, %v3754
    %3756 = vmatpush2.msra.mxu0 %v3755
    %3757 = vmatprep.subr.mxu0 0.0
    %v3758 = vand.u32 %v3274, 4294901760
    %v3759 = vsub.f32 %v3274, %v3758
    %3760 = vmatpush2.msra.mxu0 %v3759
    %3761 = vmatprep.subr.mxu0 0.0
    %v3762 = vand.u32 %v3273, 4294901760
    %v3763 = vsub.f32 %v3273, %v3762
    %3764 = vmatpush2.msra.mxu0 %v3763
    %3765 = vmatprep.subr.mxu0 0.0
    %v3766 = vand.u32 %v3272, 4294901760
    %v3767 = vsub.f32 %v3272, %v3766
    %3768 = vmatpush2.msra.mxu0 %v3767
    %3769 = vmatprep.subr.mxu0 0.0
    %v3770 = vand.u32 %v3271, 4294901760
    %v3771 = vsub.f32 %v3271, %v3770
    %3772 = vmatpush2.msra.mxu0 %v3771
    %3773 = vmatprep.subr.mxu0 0.0
    %v3774 = vand.u32 %v3270, 4294901760
    %v3775 = vsub.f32 %v3270, %v3774
    %3776 = vmatpush2.msra.mxu0 %v3775
    %3777 = vmatprep.subr.mxu0 0.0
    %v3778 = vand.u32 %v3269, 4294901760
    %v3779 = vsub.f32 %v3269, %v3778
    %3780 = vmatpush2.msra.mxu0 %v3779
    %3781 = vmatprep.subr.mxu0 0.0
    %v3782 = vand.u32 %v3268, 4294901760
    %v3783 = vsub.f32 %v3268, %v3782
    %3784 = vmatpush2.msra.mxu0 %v3783
    %3785 = vmatprep.subr.mxu0 0.0
    %v3786 = vand.u32 %v3267, 4294901760
    %v3787 = vsub.f32 %v3267, %v3786
    %3788 = vmatpush2.msra.mxu0 %v3787
    %3789 = vmatprep.subr.mxu0 0.0
    %v3790 = vand.u32 %v3266, 4294901760
    %v3791 = vsub.f32 %v3266, %v3790
    %3792 = vmatpush2.msra.mxu0 %v3791
    %v3793 = vand.u32 %v3247, 4294901760
    %v3794 = vsub.f32 %v3247, %v3793
    %3795 = vmatprep.mubr.f32.mxu0 %v3794
    %v3796 = vand.u32 %v3246, 4294901760
    %v3797 = vsub.f32 %v3246, %v3796
    %3798 = vmatmul.mubr.f32.gmra.mxu0 %v3797
    %v3799 = vpop.f32.mrf.mxu0
    %v3800 = vadd.f32 %v3662, %v3799
    %v3801 = vpop.f32.mrf.mxu0
    %3802 = vdwg.mxu0
    %3803 = vmatprep.subr.mxu0 0.0
    %v3804 = vand.u32 %v3265, 4294901760
    %3805 = vmatpush1.msra.mxu0 %v3804
    %3806 = vmatprep.subr.mxu0 0.0
    %v3807 = vand.u32 %v3264, 4294901760
    %3808 = vmatpush1.msra.mxu0 %v3807
    %3809 = vmatprep.subr.mxu0 0.0
    %v3810 = vand.u32 %v3263, 4294901760
    %3811 = vmatpush1.msra.mxu0 %v3810
    %3812 = vmatprep.subr.mxu0 0.0
    %v3813 = vand.u32 %v3262, 4294901760
    %3814 = vmatpush1.msra.mxu0 %v3813
    %3815 = vmatprep.subr.mxu0 0.0
    %v3816 = vand.u32 %v3261, 4294901760
    %3817 = vmatpush1.msra.mxu0 %v3816
    %3818 = vmatprep.subr.mxu0 0.0
    %v3819 = vand.u32 %v3260, 4294901760
    %3820 = vmatpush1.msra.mxu0 %v3819
    %3821 = vmatprep.subr.mxu0 0.0
    %v3822 = vand.u32 %v3259, 4294901760
    %3823 = vmatpush1.msra.mxu0 %v3822
    %3824 = vmatprep.subr.mxu0 0.0
    %v3825 = vand.u32 %v3258, 4294901760
    %3826 = vmatpush1.msra.mxu0 %v3825
    %3827 = vmatprep.subr.mxu0 0.0
    %v3828 = vand.u32 %v3257, 4294901760
    %3829 = vmatpush1.msra.mxu0 %v3828
    %3830 = vmatprep.subr.mxu0 0.0
    %v3831 = vand.u32 %v3256, 4294901760
    %3832 = vmatpush1.msra.mxu0 %v3831
    %3833 = vmatprep.subr.mxu0 0.0
    %v3834 = vand.u32 %v3255, 4294901760
    %3835 = vmatpush1.msra.mxu0 %v3834
    %3836 = vmatprep.subr.mxu0 0.0
    %v3837 = vand.u32 %v3254, 4294901760
    %3838 = vmatpush1.msra.mxu0 %v3837
    %3839 = vmatprep.subr.mxu0 0.0
    %v3840 = vand.u32 %v3253, 4294901760
    %3841 = vmatpush1.msra.mxu0 %v3840
    %3842 = vmatprep.subr.mxu0 0.0
    %v3843 = vand.u32 %v3252, 4294901760
    %3844 = vmatpush1.msra.mxu0 %v3843
    %3845 = vmatprep.subr.mxu0 0.0
    %v3846 = vand.u32 %v3251, 4294901760
    %3847 = vmatpush1.msra.mxu0 %v3846
    %3848 = vmatprep.subr.mxu0 0.0
    %v3849 = vand.u32 %v3250, 4294901760
    %3850 = vmatpush1.msra.mxu0 %v3849
    %3851 = vmatprep.subr.mxu0 0.0
    %v3852 = vand.u32 %v3281, 4294901760
    %3853 = vmatpush2.msra.mxu0 %v3852
    %3854 = vmatprep.subr.mxu0 0.0
    %v3855 = vand.u32 %v3280, 4294901760
    %3856 = vmatpush2.msra.mxu0 %v3855
    %3857 = vmatprep.subr.mxu0 0.0
    %v3858 = vand.u32 %v3279, 4294901760
    %3859 = vmatpush2.msra.mxu0 %v3858
    %3860 = vmatprep.subr.mxu0 0.0
    %v3861 = vand.u32 %v3278, 4294901760
    %3862 = vmatpush2.msra.mxu0 %v3861
    %3863 = vmatprep.subr.mxu0 0.0
    %v3864 = vand.u32 %v3277, 4294901760
    %3865 = vmatpush2.msra.mxu0 %v3864
    %3866 = vmatprep.subr.mxu0 0.0
    %v3867 = vand.u32 %v3276, 4294901760
    %3868 = vmatpush2.msra.mxu0 %v3867
    %3869 = vmatprep.subr.mxu0 0.0
    %v3870 = vand.u32 %v3275, 4294901760
    %3871 = vmatpush2.msra.mxu0 %v3870
    %3872 = vmatprep.subr.mxu0 0.0
    %v3873 = vand.u32 %v3274, 4294901760
    %3874 = vmatpush2.msra.mxu0 %v3873
    %3875 = vmatprep.subr.mxu0 0.0
    %v3876 = vand.u32 %v3273, 4294901760
    %3877 = vmatpush2.msra.mxu0 %v3876
    %3878 = vmatprep.subr.mxu0 0.0
    %v3879 = vand.u32 %v3272, 4294901760
    %3880 = vmatpush2.msra.mxu0 %v3879
    %3881 = vmatprep.subr.mxu0 0.0
    %v3882 = vand.u32 %v3271, 4294901760
    %3883 = vmatpush2.msra.mxu0 %v3882
    %3884 = vmatprep.subr.mxu0 0.0
    %v3885 = vand.u32 %v3270, 4294901760
    %3886 = vmatpush2.msra.mxu0 %v3885
    %3887 = vmatprep.subr.mxu0 0.0
    %v3888 = vand.u32 %v3269, 4294901760
    %3889 = vmatpush2.msra.mxu0 %v3888
    %3890 = vmatprep.subr.mxu0 0.0
    %v3891 = vand.u32 %v3268, 4294901760
    %3892 = vmatpush2.msra.mxu0 %v3891
    %3893 = vmatprep.subr.mxu0 0.0
    %v3894 = vand.u32 %v3267, 4294901760
    %3895 = vmatpush2.msra.mxu0 %v3894
    %3896 = vmatprep.subr.mxu0 0.0
    %v3897 = vand.u32 %v3266, 4294901760
    %3898 = vmatpush2.msra.mxu0 %v3897
    %v3899 = vand.u32 %v3247, 4294901760
    %v3900 = vsub.f32 %v3247, %v3899
    %v3901 = vand.u32 %v3900, 4294901760
    %3902 = vmatprep.mubr.f32.mxu0 %v3901
    %v3903 = vand.u32 %v3246, 4294901760
    %v3904 = vsub.f32 %v3246, %v3903
    %v3905 = vand.u32 %v3904, 4294901760
    %3906 = vmatmul.mubr.f32.gmra.mxu0 %v3905
    %v3907 = vpop.f32.mrf.mxu0
    %v3908 = vadd.f32 %v3800, %v3907
    %v3909 = vpop.f32.mrf.mxu0
    %3910 = vdwg.mxu0
    %3911 = vmatprep.subr.mxu0 0.0
    %v3912 = vand.u32 %v3265, 4294901760
    %v3913 = vsub.f32 %v3265, %v3912
    %v3914 = vand.u32 %v3913, 4294901760
    %3915 = vmatpush1.msra.mxu0 %v3914
    %3916 = vmatprep.subr.mxu0 0.0
    %v3917 = vand.u32 %v3264, 4294901760
    %v3918 = vsub.f32 %v3264, %v3917
    %v3919 = vand.u32 %v3918, 4294901760
    %3920 = vmatpush1.msra.mxu0 %v3919
    %3921 = vmatprep.subr.mxu0 0.0
    %v3922 = vand.u32 %v3263, 4294901760
    %v3923 = vsub.f32 %v3263, %v3922
    %v3924 = vand.u32 %v3923, 4294901760
    %3925 = vmatpush1.msra.mxu0 %v3924
    %3926 = vmatprep.subr.mxu0 0.0
    %v3927 = vand.u32 %v3262, 4294901760
    %v3928 = vsub.f32 %v3262, %v3927
    %v3929 = vand.u32 %v3928, 4294901760
    %3930 = vmatpush1.msra.mxu0 %v3929
    %3931 = vmatprep.subr.mxu0 0.0
    %v3932 = vand.u32 %v3261, 4294901760
    %v3933 = vsub.f32 %v3261, %v3932
    %v3934 = vand.u32 %v3933, 4294901760
    %3935 = vmatpush1.msra.mxu0 %v3934
    %3936 = vmatprep.subr.mxu0 0.0
    %v3937 = vand.u32 %v3260, 4294901760
    %v3938 = vsub.f32 %v3260, %v3937
    %v3939 = vand.u32 %v3938, 4294901760
    %3940 = vmatpush1.msra.mxu0 %v3939
    %3941 = vmatprep.subr.mxu0 0.0
    %v3942 = vand.u32 %v3259, 4294901760
    %v3943 = vsub.f32 %v3259, %v3942
    %v3944 = vand.u32 %v3943, 4294901760
    %3945 = vmatpush1.msra.mxu0 %v3944
    %3946 = vmatprep.subr.mxu0 0.0
    %v3947 = vand.u32 %v3258, 4294901760
    %v3948 = vsub.f32 %v3258, %v3947
    %v3949 = vand.u32 %v3948, 4294901760
    %3950 = vmatpush1.msra.mxu0 %v3949
    %3951 = vmatprep.subr.mxu0 0.0
    %v3952 = vand.u32 %v3257, 4294901760
    %v3953 = vsub.f32 %v3257, %v3952
    %v3954 = vand.u32 %v3953, 4294901760
    %3955 = vmatpush1.msra.mxu0 %v3954
    %3956 = vmatprep.subr.mxu0 0.0
    %v3957 = vand.u32 %v3256, 4294901760
    %v3958 = vsub.f32 %v3256, %v3957
    %v3959 = vand.u32 %v3958, 4294901760
    %3960 = vmatpush1.msra.mxu0 %v3959
    %3961 = vmatprep.subr.mxu0 0.0
    %v3962 = vand.u32 %v3255, 4294901760
    %v3963 = vsub.f32 %v3255, %v3962
    %v3964 = vand.u32 %v3963, 4294901760
    %3965 = vmatpush1.msra.mxu0 %v3964
    %3966 = vmatprep.subr.mxu0 0.0
    %v3967 = vand.u32 %v3254, 4294901760
    %v3968 = vsub.f32 %v3254, %v3967
    %v3969 = vand.u32 %v3968, 4294901760
    %3970 = vmatpush1.msra.mxu0 %v3969
    %3971 = vmatprep.subr.mxu0 0.0
    %v3972 = vand.u32 %v3253, 4294901760
    %v3973 = vsub.f32 %v3253, %v3972
    %v3974 = vand.u32 %v3973, 4294901760
    %3975 = vmatpush1.msra.mxu0 %v3974
    %3976 = vmatprep.subr.mxu0 0.0
    %v3977 = vand.u32 %v3252, 4294901760
    %v3978 = vsub.f32 %v3252, %v3977
    %v3979 = vand.u32 %v3978, 4294901760
    %3980 = vmatpush1.msra.mxu0 %v3979
    %3981 = vmatprep.subr.mxu0 0.0
    %v3982 = vand.u32 %v3251, 4294901760
    %v3983 = vsub.f32 %v3251, %v3982
    %v3984 = vand.u32 %v3983, 4294901760
    %3985 = vmatpush1.msra.mxu0 %v3984
    %3986 = vmatprep.subr.mxu0 0.0
    %v3987 = vand.u32 %v3250, 4294901760
    %v3988 = vsub.f32 %v3250, %v3987
    %v3989 = vand.u32 %v3988, 4294901760
    %3990 = vmatpush1.msra.mxu0 %v3989
    %3991 = vmatprep.subr.mxu0 0.0
    %v3992 = vand.u32 %v3281, 4294901760
    %v3993 = vsub.f32 %v3281, %v3992
    %v3994 = vand.u32 %v3993, 4294901760
    %3995 = vmatpush2.msra.mxu0 %v3994
    %3996 = vmatprep.subr.mxu0 0.0
    %v3997 = vand.u32 %v3280, 4294901760
    %v3998 = vsub.f32 %v3280, %v3997
    %v3999 = vand.u32 %v3998, 4294901760
    %4000 = vmatpush2.msra.mxu0 %v3999
    %4001 = vmatprep.subr.mxu0 0.0
    %v4002 = vand.u32 %v3279, 4294901760
    %v4003 = vsub.f32 %v3279, %v4002
    %v4004 = vand.u32 %v4003, 4294901760
    %4005 = vmatpush2.msra.mxu0 %v4004
    %4006 = vmatprep.subr.mxu0 0.0
    %v4007 = vand.u32 %v3278, 4294901760
    %v4008 = vsub.f32 %v3278, %v4007
    %v4009 = vand.u32 %v4008, 4294901760
    %4010 = vmatpush2.msra.mxu0 %v4009
    %4011 = vmatprep.subr.mxu0 0.0
    %v4012 = vand.u32 %v3277, 4294901760
    %v4013 = vsub.f32 %v3277, %v4012
    %v4014 = vand.u32 %v4013, 4294901760
    %4015 = vmatpush2.msra.mxu0 %v4014
    %4016 = vmatprep.subr.mxu0 0.0
    %v4017 = vand.u32 %v3276, 4294901760
    %v4018 = vsub.f32 %v3276, %v4017
    %v4019 = vand.u32 %v4018, 4294901760
    %4020 = vmatpush2.msra.mxu0 %v4019
    %4021 = vmatprep.subr.mxu0 0.0
    %v4022 = vand.u32 %v3275, 4294901760
    %v4023 = vsub.f32 %v3275, %v4022
    %v4024 = vand.u32 %v4023, 4294901760
    %4025 = vmatpush2.msra.mxu0 %v4024
    %4026 = vmatprep.subr.mxu0 0.0
    %v4027 = vand.u32 %v3274, 4294901760
    %v4028 = vsub.f32 %v3274, %v4027
    %v4029 = vand.u32 %v4028, 4294901760
    %4030 = vmatpush2.msra.mxu0 %v4029
    %4031 = vmatprep.subr.mxu0 0.0
    %v4032 = vand.u32 %v3273, 4294901760
    %v4033 = vsub.f32 %v3273, %v4032
    %v4034 = vand.u32 %v4033, 4294901760
    %4035 = vmatpush2.msra.mxu0 %v4034
    %4036 = vmatprep.subr.mxu0 0.0
    %v4037 = vand.u32 %v3272, 4294901760
    %v4038 = vsub.f32 %v3272, %v4037
    %v4039 = vand.u32 %v4038, 4294901760
    %4040 = vmatpush2.msra.mxu0 %v4039
    %4041 = vmatprep.subr.mxu0 0.0
    %v4042 = vand.u32 %v3271, 4294901760
    %v4043 = vsub.f32 %v3271, %v4042
    %v4044 = vand.u32 %v4043, 4294901760
    %4045 = vmatpush2.msra.mxu0 %v4044
    %4046 = vmatprep.subr.mxu0 0.0
    %v4047 = vand.u32 %v3270, 4294901760
    %v4048 = vsub.f32 %v3270, %v4047
    %v4049 = vand.u32 %v4048, 4294901760
    %4050 = vmatpush2.msra.mxu0 %v4049
    %4051 = vmatprep.subr.mxu0 0.0
    %v4052 = vand.u32 %v3269, 4294901760
    %v4053 = vsub.f32 %v3269, %v4052
    %v4054 = vand.u32 %v4053, 4294901760
    %4055 = vmatpush2.msra.mxu0 %v4054
    %4056 = vmatprep.subr.mxu0 0.0
    %v4057 = vand.u32 %v3268, 4294901760
    %v4058 = vsub.f32 %v3268, %v4057
    %v4059 = vand.u32 %v4058, 4294901760
    %4060 = vmatpush2.msra.mxu0 %v4059
    %4061 = vmatprep.subr.mxu0 0.0
    %v4062 = vand.u32 %v3267, 4294901760
    %v4063 = vsub.f32 %v3267, %v4062
    %v4064 = vand.u32 %v4063, 4294901760
    %4065 = vmatpush2.msra.mxu0 %v4064
    %4066 = vmatprep.subr.mxu0 0.0
    %v4067 = vand.u32 %v3266, 4294901760
    %v4068 = vsub.f32 %v3266, %v4067
    %v4069 = vand.u32 %v4068, 4294901760
    %4070 = vmatpush2.msra.mxu0 %v4069
    %v4071 = vand.u32 %v3247, 4294901760
    %4072 = vmatprep.mubr.f32.mxu0 %v4071
    %v4073 = vand.u32 %v3246, 4294901760
    %4074 = vmatmul.mubr.f32.gmra.mxu0 %v4073
    %v4075 = vpop.f32.mrf.mxu0
    %v4076 = vadd.f32 %v3908, %v4075
    %v4077 = vpop.f32.mrf.mxu0
    %4078 = vdwg.mxu0
    %4079 = vmatprep.subr.mxu0 0.0
    %v4080 = vand.u32 %v3265, 4294901760
    %4081 = vmatpush1.msra.mxu0 %v4080
    %4082 = vmatprep.subr.mxu0 0.0
    %v4083 = vand.u32 %v3264, 4294901760
    %4084 = vmatpush1.msra.mxu0 %v4083
    %4085 = vmatprep.subr.mxu0 0.0
    %v4086 = vand.u32 %v3263, 4294901760
    %4087 = vmatpush1.msra.mxu0 %v4086
    %4088 = vmatprep.subr.mxu0 0.0
    %v4089 = vand.u32 %v3262, 4294901760
    %4090 = vmatpush1.msra.mxu0 %v4089
    %4091 = vmatprep.subr.mxu0 0.0
    %v4092 = vand.u32 %v3261, 4294901760
    %4093 = vmatpush1.msra.mxu0 %v4092
    %4094 = vmatprep.subr.mxu0 0.0
    %v4095 = vand.u32 %v3260, 4294901760
    %4096 = vmatpush1.msra.mxu0 %v4095
    %4097 = vmatprep.subr.mxu0 0.0
    %v4098 = vand.u32 %v3259, 4294901760
    %4099 = vmatpush1.msra.mxu0 %v4098
    %4100 = vmatprep.subr.mxu0 0.0
    %v4101 = vand.u32 %v3258, 4294901760
    %4102 = vmatpush1.msra.mxu0 %v4101
    %4103 = vmatprep.subr.mxu0 0.0
    %v4104 = vand.u32 %v3257, 4294901760
    %4105 = vmatpush1.msra.mxu0 %v4104
    %4106 = vmatprep.subr.mxu0 0.0
    %v4107 = vand.u32 %v3256, 4294901760
    %4108 = vmatpush1.msra.mxu0 %v4107
    %4109 = vmatprep.subr.mxu0 0.0
    %v4110 = vand.u32 %v3255, 4294901760
    %4111 = vmatpush1.msra.mxu0 %v4110
    %4112 = vmatprep.subr.mxu0 0.0
    %v4113 = vand.u32 %v3254, 4294901760
    %4114 = vmatpush1.msra.mxu0 %v4113
    %4115 = vmatprep.subr.mxu0 0.0
    %v4116 = vand.u32 %v3253, 4294901760
    %4117 = vmatpush1.msra.mxu0 %v4116
    %4118 = vmatprep.subr.mxu0 0.0
    %v4119 = vand.u32 %v3252, 4294901760
    %4120 = vmatpush1.msra.mxu0 %v4119
    %4121 = vmatprep.subr.mxu0 0.0
    %v4122 = vand.u32 %v3251, 4294901760
    %4123 = vmatpush1.msra.mxu0 %v4122
    %4124 = vmatprep.subr.mxu0 0.0
    %v4125 = vand.u32 %v3250, 4294901760
    %4126 = vmatpush1.msra.mxu0 %v4125
    %4127 = vmatprep.subr.mxu0 0.0
    %v4128 = vand.u32 %v3281, 4294901760
    %4129 = vmatpush2.msra.mxu0 %v4128
    %4130 = vmatprep.subr.mxu0 0.0
    %v4131 = vand.u32 %v3280, 4294901760
    %4132 = vmatpush2.msra.mxu0 %v4131
    %4133 = vmatprep.subr.mxu0 0.0
    %v4134 = vand.u32 %v3279, 4294901760
    %4135 = vmatpush2.msra.mxu0 %v4134
    %4136 = vmatprep.subr.mxu0 0.0
    %v4137 = vand.u32 %v3278, 4294901760
    %4138 = vmatpush2.msra.mxu0 %v4137
    %4139 = vmatprep.subr.mxu0 0.0
    %v4140 = vand.u32 %v3277, 4294901760
    %4141 = vmatpush2.msra.mxu0 %v4140
    %4142 = vmatprep.subr.mxu0 0.0
    %v4143 = vand.u32 %v3276, 4294901760
    %4144 = vmatpush2.msra.mxu0 %v4143
    %4145 = vmatprep.subr.mxu0 0.0
    %v4146 = vand.u32 %v3275, 4294901760
    %4147 = vmatpush2.msra.mxu0 %v4146
    %4148 = vmatprep.subr.mxu0 0.0
    %v4149 = vand.u32 %v3274, 4294901760
    %4150 = vmatpush2.msra.mxu0 %v4149
    %4151 = vmatprep.subr.mxu0 0.0
    %v4152 = vand.u32 %v3273, 4294901760
    %4153 = vmatpush2.msra.mxu0 %v4152
    %4154 = vmatprep.subr.mxu0 0.0
    %v4155 = vand.u32 %v3272, 4294901760
    %4156 = vmatpush2.msra.mxu0 %v4155
    %4157 = vmatprep.subr.mxu0 0.0
    %v4158 = vand.u32 %v3271, 4294901760
    %4159 = vmatpush2.msra.mxu0 %v4158
    %4160 = vmatprep.subr.mxu0 0.0
    %v4161 = vand.u32 %v3270, 4294901760
    %4162 = vmatpush2.msra.mxu0 %v4161
    %4163 = vmatprep.subr.mxu0 0.0
    %v4164 = vand.u32 %v3269, 4294901760
    %4165 = vmatpush2.msra.mxu0 %v4164
    %4166 = vmatprep.subr.mxu0 0.0
    %v4167 = vand.u32 %v3268, 4294901760
    %4168 = vmatpush2.msra.mxu0 %v4167
    %4169 = vmatprep.subr.mxu0 0.0
    %v4170 = vand.u32 %v3267, 4294901760
    %4171 = vmatpush2.msra.mxu0 %v4170
    %4172 = vmatprep.subr.mxu0 0.0
    %v4173 = vand.u32 %v3266, 4294901760
    %4174 = vmatpush2.msra.mxu0 %v4173
    %v4175 = vand.u32 %v3247, 4294901760
    %4176 = vmatprep.mubr.f32.mxu0 %v4175
    %v4177 = vand.u32 %v3246, 4294901760
    %4178 = vmatmul.mubr.f32.gmra.mxu0 %v4177
    %v4179 = vpop.f32.mrf.mxu0
    %v4180 = vadd.f32 %v4076, %v4179
    %v4181 = vpop.f32.mrf.mxu0
    %4182 = vdwg.mxu0
    %4183 = vmatprep.subr.mxu0 0.0
    %v4184 = vand.u32 %v3297, 4294901760
    %4185 = vmatpush1.msra.mxu0 %v4184
    %4186 = vmatprep.subr.mxu0 0.0
    %v4187 = vand.u32 %v3296, 4294901760
    %4188 = vmatpush1.msra.mxu0 %v4187
    %4189 = vmatprep.subr.mxu0 0.0
    %v4190 = vand.u32 %v3295, 4294901760
    %4191 = vmatpush1.msra.mxu0 %v4190
    %4192 = vmatprep.subr.mxu0 0.0
    %v4193 = vand.u32 %v3294, 4294901760
    %4194 = vmatpush1.msra.mxu0 %v4193
    %4195 = vmatprep.subr.mxu0 0.0
    %v4196 = vand.u32 %v3293, 4294901760
    %4197 = vmatpush1.msra.mxu0 %v4196
    %4198 = vmatprep.subr.mxu0 0.0
    %v4199 = vand.u32 %v3292, 4294901760
    %4200 = vmatpush1.msra.mxu0 %v4199
    %4201 = vmatprep.subr.mxu0 0.0
    %v4202 = vand.u32 %v3291, 4294901760
    %4203 = vmatpush1.msra.mxu0 %v4202
    %4204 = vmatprep.subr.mxu0 0.0
    %v4205 = vand.u32 %v3290, 4294901760
    %4206 = vmatpush1.msra.mxu0 %v4205
    %4207 = vmatprep.subr.mxu0 0.0
    %v4208 = vand.u32 %v3289, 4294901760
    %4209 = vmatpush1.msra.mxu0 %v4208
    %4210 = vmatprep.subr.mxu0 0.0
    %v4211 = vand.u32 %v3288, 4294901760
    %4212 = vmatpush1.msra.mxu0 %v4211
    %4213 = vmatprep.subr.mxu0 0.0
    %v4214 = vand.u32 %v3287, 4294901760
    %4215 = vmatpush1.msra.mxu0 %v4214
    %4216 = vmatprep.subr.mxu0 0.0
    %v4217 = vand.u32 %v3286, 4294901760
    %4218 = vmatpush1.msra.mxu0 %v4217
    %4219 = vmatprep.subr.mxu0 0.0
    %v4220 = vand.u32 %v3285, 4294901760
    %4221 = vmatpush1.msra.mxu0 %v4220
    %4222 = vmatprep.subr.mxu0 0.0
    %v4223 = vand.u32 %v3284, 4294901760
    %4224 = vmatpush1.msra.mxu0 %v4223
    %4225 = vmatprep.subr.mxu0 0.0
    %v4226 = vand.u32 %v3283, 4294901760
    %4227 = vmatpush1.msra.mxu0 %v4226
    %4228 = vmatprep.subr.mxu0 0.0
    %v4229 = vand.u32 %v3282, 4294901760
    %4230 = vmatpush1.msra.mxu0 %v4229
    %4231 = vmatprep.subr.mxu0 0.0
    %v4232 = vand.u32 %v3313, 4294901760
    %4233 = vmatpush2.msra.mxu0 %v4232
    %4234 = vmatprep.subr.mxu0 0.0
    %v4235 = vand.u32 %v3312, 4294901760
    %4236 = vmatpush2.msra.mxu0 %v4235
    %4237 = vmatprep.subr.mxu0 0.0
    %v4238 = vand.u32 %v3311, 4294901760
    %4239 = vmatpush2.msra.mxu0 %v4238
    %4240 = vmatprep.subr.mxu0 0.0
    %v4241 = vand.u32 %v3310, 4294901760
    %4242 = vmatpush2.msra.mxu0 %v4241
    %4243 = vmatprep.subr.mxu0 0.0
    %v4244 = vand.u32 %v3309, 4294901760
    %4245 = vmatpush2.msra.mxu0 %v4244
    %4246 = vmatprep.subr.mxu0 0.0
    %v4247 = vand.u32 %v3308, 4294901760
    %4248 = vmatpush2.msra.mxu0 %v4247
    %4249 = vmatprep.subr.mxu0 0.0
    %v4250 = vand.u32 %v3307, 4294901760
    %4251 = vmatpush2.msra.mxu0 %v4250
    %4252 = vmatprep.subr.mxu0 0.0
    %v4253 = vand.u32 %v3306, 4294901760
    %4254 = vmatpush2.msra.mxu0 %v4253
    %4255 = vmatprep.subr.mxu0 0.0
    %v4256 = vand.u32 %v3305, 4294901760
    %4257 = vmatpush2.msra.mxu0 %v4256
    %4258 = vmatprep.subr.mxu0 0.0
    %v4259 = vand.u32 %v3304, 4294901760
    %4260 = vmatpush2.msra.mxu0 %v4259
    %4261 = vmatprep.subr.mxu0 0.0
    %v4262 = vand.u32 %v3303, 4294901760
    %4263 = vmatpush2.msra.mxu0 %v4262
    %4264 = vmatprep.subr.mxu0 0.0
    %v4265 = vand.u32 %v3302, 4294901760
    %4266 = vmatpush2.msra.mxu0 %v4265
    %4267 = vmatprep.subr.mxu0 0.0
    %v4268 = vand.u32 %v3301, 4294901760
    %4269 = vmatpush2.msra.mxu0 %v4268
    %4270 = vmatprep.subr.mxu0 0.0
    %v4271 = vand.u32 %v3300, 4294901760
    %4272 = vmatpush2.msra.mxu0 %v4271
    %4273 = vmatprep.subr.mxu0 0.0
    %v4274 = vand.u32 %v3299, 4294901760
    %4275 = vmatpush2.msra.mxu0 %v4274
    %4276 = vmatprep.subr.mxu0 0.0
    %v4277 = vand.u32 %v3298, 4294901760
    %4278 = vmatpush2.msra.mxu0 %v4277
    %v4279 = vand.u32 %v3249, 4294901760
    %v4280 = vsub.f32 %v3249, %v4279
    %v4281 = vand.u32 %v4280, 4294901760
    %v4282 = vsub.f32 %v4280, %v4281
    %v4283 = vand.u32 %v4282, 4294901760
    %4284 = vmatprep.mubr.f32.mxu0 %v4283
    %v4285 = vand.u32 %v3248, 4294901760
    %v4286 = vsub.f32 %v3248, %v4285
    %v4287 = vand.u32 %v4286, 4294901760
    %v4288 = vsub.f32 %v4286, %v4287
    %v4289 = vand.u32 %v4288, 4294901760
    %4290 = vmatmul.mubr.f32.gmra.mxu0 %v4289
    %v4291 = vpop.f32.mrf.mxu0
    %v4292 = vadd.f32 %v4180, %v4291
    %v4293 = vpop.f32.mrf.mxu0
    %4294 = vdwg.mxu0
    %4295 = vmatprep.subr.mxu0 0.0
    %v4296 = vand.u32 %v3297, 4294901760
    %v4297 = vsub.f32 %v3297, %v4296
    %v4298 = vand.u32 %v4297, 4294901760
    %v4299 = vsub.f32 %v4297, %v4298
    %v4300 = vand.u32 %v4299, 4294901760
    %4301 = vmatpush1.msra.mxu0 %v4300
    %4302 = vmatprep.subr.mxu0 0.0
    %v4303 = vand.u32 %v3296, 4294901760
    %v4304 = vsub.f32 %v3296, %v4303
    %v4305 = vand.u32 %v4304, 4294901760
    %v4306 = vsub.f32 %v4304, %v4305
    %v4307 = vand.u32 %v4306, 4294901760
    %4308 = vmatpush1.msra.mxu0 %v4307
    %4309 = vmatprep.subr.mxu0 0.0
    %v4310 = vand.u32 %v3295, 4294901760
    %v4311 = vsub.f32 %v3295, %v4310
    %v4312 = vand.u32 %v4311, 4294901760
    %v4313 = vsub.f32 %v4311, %v4312
    %v4314 = vand.u32 %v4313, 4294901760
    %4315 = vmatpush1.msra.mxu0 %v4314
    %4316 = vmatprep.subr.mxu0 0.0
    %v4317 = vand.u32 %v3294, 4294901760
    %v4318 = vsub.f32 %v3294, %v4317
    %v4319 = vand.u32 %v4318, 4294901760
    %v4320 = vsub.f32 %v4318, %v4319
    %v4321 = vand.u32 %v4320, 4294901760
    %4322 = vmatpush1.msra.mxu0 %v4321
    %4323 = vmatprep.subr.mxu0 0.0
    %v4324 = vand.u32 %v3293, 4294901760
    %v4325 = vsub.f32 %v3293, %v4324
    %v4326 = vand.u32 %v4325, 4294901760
    %v4327 = vsub.f32 %v4325, %v4326
    %v4328 = vand.u32 %v4327, 4294901760
    %4329 = vmatpush1.msra.mxu0 %v4328
    %4330 = vmatprep.subr.mxu0 0.0
    %v4331 = vand.u32 %v3292, 4294901760
    %v4332 = vsub.f32 %v3292, %v4331
    %v4333 = vand.u32 %v4332, 4294901760
    %v4334 = vsub.f32 %v4332, %v4333
    %v4335 = vand.u32 %v4334, 4294901760
    %4336 = vmatpush1.msra.mxu0 %v4335
    %4337 = vmatprep.subr.mxu0 0.0
    %v4338 = vand.u32 %v3291, 4294901760
    %v4339 = vsub.f32 %v3291, %v4338
    %v4340 = vand.u32 %v4339, 4294901760
    %v4341 = vsub.f32 %v4339, %v4340
    %v4342 = vand.u32 %v4341, 4294901760
    %4343 = vmatpush1.msra.mxu0 %v4342
    %4344 = vmatprep.subr.mxu0 0.0
    %v4345 = vand.u32 %v3290, 4294901760
    %v4346 = vsub.f32 %v3290, %v4345
    %v4347 = vand.u32 %v4346, 4294901760
    %v4348 = vsub.f32 %v4346, %v4347
    %v4349 = vand.u32 %v4348, 4294901760
    %4350 = vmatpush1.msra.mxu0 %v4349
    %4351 = vmatprep.subr.mxu0 0.0
    %v4352 = vand.u32 %v3289, 4294901760
    %v4353 = vsub.f32 %v3289, %v4352
    %v4354 = vand.u32 %v4353, 4294901760
    %v4355 = vsub.f32 %v4353, %v4354
    %v4356 = vand.u32 %v4355, 4294901760
    %4357 = vmatpush1.msra.mxu0 %v4356
    %4358 = vmatprep.subr.mxu0 0.0
    %v4359 = vand.u32 %v3288, 4294901760
    %v4360 = vsub.f32 %v3288, %v4359
    %v4361 = vand.u32 %v4360, 4294901760
    %v4362 = vsub.f32 %v4360, %v4361
    %v4363 = vand.u32 %v4362, 4294901760
    %4364 = vmatpush1.msra.mxu0 %v4363
    %4365 = vmatprep.subr.mxu0 0.0
    %v4366 = vand.u32 %v3287, 4294901760
    %v4367 = vsub.f32 %v3287, %v4366
    %v4368 = vand.u32 %v4367, 4294901760
    %v4369 = vsub.f32 %v4367, %v4368
    %v4370 = vand.u32 %v4369, 4294901760
    %4371 = vmatpush1.msra.mxu0 %v4370
    %4372 = vmatprep.subr.mxu0 0.0
    %v4373 = vand.u32 %v3286, 4294901760
    %v4374 = vsub.f32 %v3286, %v4373
    %v4375 = vand.u32 %v4374, 4294901760
    %v4376 = vsub.f32 %v4374, %v4375
    %v4377 = vand.u32 %v4376, 4294901760
    %4378 = vmatpush1.msra.mxu0 %v4377
    %4379 = vmatprep.subr.mxu0 0.0
    %v4380 = vand.u32 %v3285, 4294901760
    %v4381 = vsub.f32 %v3285, %v4380
    %v4382 = vand.u32 %v4381, 4294901760
    %v4383 = vsub.f32 %v4381, %v4382
    %v4384 = vand.u32 %v4383, 4294901760
    %4385 = vmatpush1.msra.mxu0 %v4384
    %4386 = vmatprep.subr.mxu0 0.0
    %v4387 = vand.u32 %v3284, 4294901760
    %v4388 = vsub.f32 %v3284, %v4387
    %v4389 = vand.u32 %v4388, 4294901760
    %v4390 = vsub.f32 %v4388, %v4389
    %v4391 = vand.u32 %v4390, 4294901760
    %4392 = vmatpush1.msra.mxu0 %v4391
    %4393 = vmatprep.subr.mxu0 0.0
    %v4394 = vand.u32 %v3283, 4294901760
    %v4395 = vsub.f32 %v3283, %v4394
    %v4396 = vand.u32 %v4395, 4294901760
    %v4397 = vsub.f32 %v4395, %v4396
    %v4398 = vand.u32 %v4397, 4294901760
    %4399 = vmatpush1.msra.mxu0 %v4398
    %4400 = vmatprep.subr.mxu0 0.0
    %v4401 = vand.u32 %v3282, 4294901760
    %v4402 = vsub.f32 %v3282, %v4401
    %v4403 = vand.u32 %v4402, 4294901760
    %v4404 = vsub.f32 %v4402, %v4403
    %v4405 = vand.u32 %v4404, 4294901760
    %4406 = vmatpush1.msra.mxu0 %v4405
    %4407 = vmatprep.subr.mxu0 0.0
    %v4408 = vand.u32 %v3313, 4294901760
    %v4409 = vsub.f32 %v3313, %v4408
    %v4410 = vand.u32 %v4409, 4294901760
    %v4411 = vsub.f32 %v4409, %v4410
    %v4412 = vand.u32 %v4411, 4294901760
    %4413 = vmatpush2.msra.mxu0 %v4412
    %4414 = vmatprep.subr.mxu0 0.0
    %v4415 = vand.u32 %v3312, 4294901760
    %v4416 = vsub.f32 %v3312, %v4415
    %v4417 = vand.u32 %v4416, 4294901760
    %v4418 = vsub.f32 %v4416, %v4417
    %v4419 = vand.u32 %v4418, 4294901760
    %4420 = vmatpush2.msra.mxu0 %v4419
    %4421 = vmatprep.subr.mxu0 0.0
    %v4422 = vand.u32 %v3311, 4294901760
    %v4423 = vsub.f32 %v3311, %v4422
    %v4424 = vand.u32 %v4423, 4294901760
    %v4425 = vsub.f32 %v4423, %v4424
    %v4426 = vand.u32 %v4425, 4294901760
    %4427 = vmatpush2.msra.mxu0 %v4426
    %4428 = vmatprep.subr.mxu0 0.0
    %v4429 = vand.u32 %v3310, 4294901760
    %v4430 = vsub.f32 %v3310, %v4429
    %v4431 = vand.u32 %v4430, 4294901760
    %v4432 = vsub.f32 %v4430, %v4431
    %v4433 = vand.u32 %v4432, 4294901760
    %4434 = vmatpush2.msra.mxu0 %v4433
    %4435 = vmatprep.subr.mxu0 0.0
    %v4436 = vand.u32 %v3309, 4294901760
    %v4437 = vsub.f32 %v3309, %v4436
    %v4438 = vand.u32 %v4437, 4294901760
    %v4439 = vsub.f32 %v4437, %v4438
    %v4440 = vand.u32 %v4439, 4294901760
    %4441 = vmatpush2.msra.mxu0 %v4440
    %4442 = vmatprep.subr.mxu0 0.0
    %v4443 = vand.u32 %v3308, 4294901760
    %v4444 = vsub.f32 %v3308, %v4443
    %v4445 = vand.u32 %v4444, 4294901760
    %v4446 = vsub.f32 %v4444, %v4445
    %v4447 = vand.u32 %v4446, 4294901760
    %4448 = vmatpush2.msra.mxu0 %v4447
    %4449 = vmatprep.subr.mxu0 0.0
    %v4450 = vand.u32 %v3307, 4294901760
    %v4451 = vsub.f32 %v3307, %v4450
    %v4452 = vand.u32 %v4451, 4294901760
    %v4453 = vsub.f32 %v4451, %v4452
    %v4454 = vand.u32 %v4453, 4294901760
    %4455 = vmatpush2.msra.mxu0 %v4454
    %4456 = vmatprep.subr.mxu0 0.0
    %v4457 = vand.u32 %v3306, 4294901760
    %v4458 = vsub.f32 %v3306, %v4457
    %v4459 = vand.u32 %v4458, 4294901760
    %v4460 = vsub.f32 %v4458, %v4459
    %v4461 = vand.u32 %v4460, 4294901760
    %4462 = vmatpush2.msra.mxu0 %v4461
    %4463 = vmatprep.subr.mxu0 0.0
    %v4464 = vand.u32 %v3305, 4294901760
    %v4465 = vsub.f32 %v3305, %v4464
    %v4466 = vand.u32 %v4465, 4294901760
    %v4467 = vsub.f32 %v4465, %v4466
    %v4468 = vand.u32 %v4467, 4294901760
    %4469 = vmatpush2.msra.mxu0 %v4468
    %4470 = vmatprep.subr.mxu0 0.0
    %v4471 = vand.u32 %v3304, 4294901760
    %v4472 = vsub.f32 %v3304, %v4471
    %v4473 = vand.u32 %v4472, 4294901760
    %v4474 = vsub.f32 %v4472, %v4473
    %v4475 = vand.u32 %v4474, 4294901760
    %4476 = vmatpush2.msra.mxu0 %v4475
    %4477 = vmatprep.subr.mxu0 0.0
    %v4478 = vand.u32 %v3303, 4294901760
    %v4479 = vsub.f32 %v3303, %v4478
    %v4480 = vand.u32 %v4479, 4294901760
    %v4481 = vsub.f32 %v4479, %v4480
    %v4482 = vand.u32 %v4481, 4294901760
    %4483 = vmatpush2.msra.mxu0 %v4482
    %4484 = vmatprep.subr.mxu0 0.0
    %v4485 = vand.u32 %v3302, 4294901760
    %v4486 = vsub.f32 %v3302, %v4485
    %v4487 = vand.u32 %v4486, 4294901760
    %v4488 = vsub.f32 %v4486, %v4487
    %v4489 = vand.u32 %v4488, 4294901760
    %4490 = vmatpush2.msra.mxu0 %v4489
    %4491 = vmatprep.subr.mxu0 0.0
    %v4492 = vand.u32 %v3301, 4294901760
    %v4493 = vsub.f32 %v3301, %v4492
    %v4494 = vand.u32 %v4493, 4294901760
    %v4495 = vsub.f32 %v4493, %v4494
    %v4496 = vand.u32 %v4495, 4294901760
    %4497 = vmatpush2.msra.mxu0 %v4496
    %4498 = vmatprep.subr.mxu0 0.0
    %v4499 = vand.u32 %v3300, 4294901760
    %v4500 = vsub.f32 %v3300, %v4499
    %v4501 = vand.u32 %v4500, 4294901760
    %v4502 = vsub.f32 %v4500, %v4501
    %v4503 = vand.u32 %v4502, 4294901760
    %4504 = vmatpush2.msra.mxu0 %v4503
    %4505 = vmatprep.subr.mxu0 0.0
    %v4506 = vand.u32 %v3299, 4294901760
    %v4507 = vsub.f32 %v3299, %v4506
    %v4508 = vand.u32 %v4507, 4294901760
    %v4509 = vsub.f32 %v4507, %v4508
    %v4510 = vand.u32 %v4509, 4294901760
    %4511 = vmatpush2.msra.mxu0 %v4510
    %4512 = vmatprep.subr.mxu0 0.0
    %v4513 = vand.u32 %v3298, 4294901760
    %v4514 = vsub.f32 %v3298, %v4513
    %v4515 = vand.u32 %v4514, 4294901760
    %v4516 = vsub.f32 %v4514, %v4515
    %v4517 = vand.u32 %v4516, 4294901760
    %4518 = vmatpush2.msra.mxu0 %v4517
    %v4519 = vand.u32 %v3249, 4294901760
    %4520 = vmatprep.mubr.f32.mxu0 %v4519
    %v4521 = vand.u32 %v3248, 4294901760
    %4522 = vmatmul.mubr.f32.gmra.mxu0 %v4521
    %v4523 = vpop.f32.mrf.mxu0
    %v4524 = vadd.f32 %v4292, %v4523
    %v4525 = vpop.f32.mrf.mxu0
    %4526 = vdwg.mxu0
    %4527 = vmatprep.subr.mxu0 0.0
    %v4528 = vand.u32 %v3297, 4294901760
    %v4529 = vsub.f32 %v3297, %v4528
    %4530 = vmatpush1.msra.mxu0 %v4529
    %4531 = vmatprep.subr.mxu0 0.0
    %v4532 = vand.u32 %v3296, 4294901760
    %v4533 = vsub.f32 %v3296, %v4532
    %4534 = vmatpush1.msra.mxu0 %v4533
    %4535 = vmatprep.subr.mxu0 0.0
    %v4536 = vand.u32 %v3295, 4294901760
    %v4537 = vsub.f32 %v3295, %v4536
    %4538 = vmatpush1.msra.mxu0 %v4537
    %4539 = vmatprep.subr.mxu0 0.0
    %v4540 = vand.u32 %v3294, 4294901760
    %v4541 = vsub.f32 %v3294, %v4540
    %4542 = vmatpush1.msra.mxu0 %v4541
    %4543 = vmatprep.subr.mxu0 0.0
    %v4544 = vand.u32 %v3293, 4294901760
    %v4545 = vsub.f32 %v3293, %v4544
    %4546 = vmatpush1.msra.mxu0 %v4545
    %4547 = vmatprep.subr.mxu0 0.0
    %v4548 = vand.u32 %v3292, 4294901760
    %v4549 = vsub.f32 %v3292, %v4548
    %4550 = vmatpush1.msra.mxu0 %v4549
    %4551 = vmatprep.subr.mxu0 0.0
    %v4552 = vand.u32 %v3291, 4294901760
    %v4553 = vsub.f32 %v3291, %v4552
    %4554 = vmatpush1.msra.mxu0 %v4553
    %4555 = vmatprep.subr.mxu0 0.0
    %v4556 = vand.u32 %v3290, 4294901760
    %v4557 = vsub.f32 %v3290, %v4556
    %4558 = vmatpush1.msra.mxu0 %v4557
    %4559 = vmatprep.subr.mxu0 0.0
    %v4560 = vand.u32 %v3289, 4294901760
    %v4561 = vsub.f32 %v3289, %v4560
    %4562 = vmatpush1.msra.mxu0 %v4561
    %4563 = vmatprep.subr.mxu0 0.0
    %v4564 = vand.u32 %v3288, 4294901760
    %v4565 = vsub.f32 %v3288, %v4564
    %4566 = vmatpush1.msra.mxu0 %v4565
    %4567 = vmatprep.subr.mxu0 0.0
    %v4568 = vand.u32 %v3287, 4294901760
    %v4569 = vsub.f32 %v3287, %v4568
    %4570 = vmatpush1.msra.mxu0 %v4569
    %4571 = vmatprep.subr.mxu0 0.0
    %v4572 = vand.u32 %v3286, 4294901760
    %v4573 = vsub.f32 %v3286, %v4572
    %4574 = vmatpush1.msra.mxu0 %v4573
    %4575 = vmatprep.subr.mxu0 0.0
    %v4576 = vand.u32 %v3285, 4294901760
    %v4577 = vsub.f32 %v3285, %v4576
    %4578 = vmatpush1.msra.mxu0 %v4577
    %4579 = vmatprep.subr.mxu0 0.0
    %v4580 = vand.u32 %v3284, 4294901760
    %v4581 = vsub.f32 %v3284, %v4580
    %4582 = vmatpush1.msra.mxu0 %v4581
    %4583 = vmatprep.subr.mxu0 0.0
    %v4584 = vand.u32 %v3283, 4294901760
    %v4585 = vsub.f32 %v3283, %v4584
    %4586 = vmatpush1.msra.mxu0 %v4585
    %4587 = vmatprep.subr.mxu0 0.0
    %v4588 = vand.u32 %v3282, 4294901760
    %v4589 = vsub.f32 %v3282, %v4588
    %4590 = vmatpush1.msra.mxu0 %v4589
    %4591 = vmatprep.subr.mxu0 0.0
    %v4592 = vand.u32 %v3313, 4294901760
    %v4593 = vsub.f32 %v3313, %v4592
    %4594 = vmatpush2.msra.mxu0 %v4593
    %4595 = vmatprep.subr.mxu0 0.0
    %v4596 = vand.u32 %v3312, 4294901760
    %v4597 = vsub.f32 %v3312, %v4596
    %4598 = vmatpush2.msra.mxu0 %v4597
    %4599 = vmatprep.subr.mxu0 0.0
    %v4600 = vand.u32 %v3311, 4294901760
    %v4601 = vsub.f32 %v3311, %v4600
    %4602 = vmatpush2.msra.mxu0 %v4601
    %4603 = vmatprep.subr.mxu0 0.0
    %v4604 = vand.u32 %v3310, 4294901760
    %v4605 = vsub.f32 %v3310, %v4604
    %4606 = vmatpush2.msra.mxu0 %v4605
    %4607 = vmatprep.subr.mxu0 0.0
    %v4608 = vand.u32 %v3309, 4294901760
    %v4609 = vsub.f32 %v3309, %v4608
    %4610 = vmatpush2.msra.mxu0 %v4609
    %4611 = vmatprep.subr.mxu0 0.0
    %v4612 = vand.u32 %v3308, 4294901760
    %v4613 = vsub.f32 %v3308, %v4612
    %4614 = vmatpush2.msra.mxu0 %v4613
    %4615 = vmatprep.subr.mxu0 0.0
    %v4616 = vand.u32 %v3307, 4294901760
    %v4617 = vsub.f32 %v3307, %v4616
    %4618 = vmatpush2.msra.mxu0 %v4617
    %4619 = vmatprep.subr.mxu0 0.0
    %v4620 = vand.u32 %v3306, 4294901760
    %v4621 = vsub.f32 %v3306, %v4620
    %4622 = vmatpush2.msra.mxu0 %v4621
    %4623 = vmatprep.subr.mxu0 0.0
    %v4624 = vand.u32 %v3305, 4294901760
    %v4625 = vsub.f32 %v3305, %v4624
    %4626 = vmatpush2.msra.mxu0 %v4625
    %4627 = vmatprep.subr.mxu0 0.0
    %v4628 = vand.u32 %v3304, 4294901760
    %v4629 = vsub.f32 %v3304, %v4628
    %4630 = vmatpush2.msra.mxu0 %v4629
    %4631 = vmatprep.subr.mxu0 0.0
    %v4632 = vand.u32 %v3303, 4294901760
    %v4633 = vsub.f32 %v3303, %v4632
    %4634 = vmatpush2.msra.mxu0 %v4633
    %4635 = vmatprep.subr.mxu0 0.0
    %v4636 = vand.u32 %v3302, 4294901760
    %v4637 = vsub.f32 %v3302, %v4636
    %4638 = vmatpush2.msra.mxu0 %v4637
    %4639 = vmatprep.subr.mxu0 0.0
    %v4640 = vand.u32 %v3301, 4294901760
    %v4641 = vsub.f32 %v3301, %v4640
    %4642 = vmatpush2.msra.mxu0 %v4641
    %4643 = vmatprep.subr.mxu0 0.0
    %v4644 = vand.u32 %v3300, 4294901760
    %v4645 = vsub.f32 %v3300, %v4644
    %4646 = vmatpush2.msra.mxu0 %v4645
    %4647 = vmatprep.subr.mxu0 0.0
    %v4648 = vand.u32 %v3299, 4294901760
    %v4649 = vsub.f32 %v3299, %v4648
    %4650 = vmatpush2.msra.mxu0 %v4649
    %4651 = vmatprep.subr.mxu0 0.0
    %v4652 = vand.u32 %v3298, 4294901760
    %v4653 = vsub.f32 %v3298, %v4652
    %4654 = vmatpush2.msra.mxu0 %v4653
    %v4655 = vand.u32 %v3249, 4294901760
    %v4656 = vsub.f32 %v3249, %v4655
    %4657 = vmatprep.mubr.f32.mxu0 %v4656
    %v4658 = vand.u32 %v3248, 4294901760
    %v4659 = vsub.f32 %v3248, %v4658
    %4660 = vmatmul.mubr.f32.gmra.mxu0 %v4659
    %v4661 = vpop.f32.mrf.mxu0
    %v4662 = vadd.f32 %v4524, %v4661
    %v4663 = vpop.f32.mrf.mxu0
    %4664 = vdwg.mxu0
    %4665 = vmatprep.subr.mxu0 0.0
    %v4666 = vand.u32 %v3297, 4294901760
    %4667 = vmatpush1.msra.mxu0 %v4666
    %4668 = vmatprep.subr.mxu0 0.0
    %v4669 = vand.u32 %v3296, 4294901760
    %4670 = vmatpush1.msra.mxu0 %v4669
    %4671 = vmatprep.subr.mxu0 0.0
    %v4672 = vand.u32 %v3295, 4294901760
    %4673 = vmatpush1.msra.mxu0 %v4672
    %4674 = vmatprep.subr.mxu0 0.0
    %v4675 = vand.u32 %v3294, 4294901760
    %4676 = vmatpush1.msra.mxu0 %v4675
    %4677 = vmatprep.subr.mxu0 0.0
    %v4678 = vand.u32 %v3293, 4294901760
    %4679 = vmatpush1.msra.mxu0 %v4678
    %4680 = vmatprep.subr.mxu0 0.0
    %v4681 = vand.u32 %v3292, 4294901760
    %4682 = vmatpush1.msra.mxu0 %v4681
    %4683 = vmatprep.subr.mxu0 0.0
    %v4684 = vand.u32 %v3291, 4294901760
    %4685 = vmatpush1.msra.mxu0 %v4684
    %4686 = vmatprep.subr.mxu0 0.0
    %v4687 = vand.u32 %v3290, 4294901760
    %4688 = vmatpush1.msra.mxu0 %v4687
    %4689 = vmatprep.subr.mxu0 0.0
    %v4690 = vand.u32 %v3289, 4294901760
    %4691 = vmatpush1.msra.mxu0 %v4690
    %4692 = vmatprep.subr.mxu0 0.0
    %v4693 = vand.u32 %v3288, 4294901760
    %4694 = vmatpush1.msra.mxu0 %v4693
    %4695 = vmatprep.subr.mxu0 0.0
    %v4696 = vand.u32 %v3287, 4294901760
    %4697 = vmatpush1.msra.mxu0 %v4696
    %4698 = vmatprep.subr.mxu0 0.0
    %v4699 = vand.u32 %v3286, 4294901760
    %4700 = vmatpush1.msra.mxu0 %v4699
    %4701 = vmatprep.subr.mxu0 0.0
    %v4702 = vand.u32 %v3285, 4294901760
    %4703 = vmatpush1.msra.mxu0 %v4702
    %4704 = vmatprep.subr.mxu0 0.0
    %v4705 = vand.u32 %v3284, 4294901760
    %4706 = vmatpush1.msra.mxu0 %v4705
    %4707 = vmatprep.subr.mxu0 0.0
    %v4708 = vand.u32 %v3283, 4294901760
    %4709 = vmatpush1.msra.mxu0 %v4708
    %4710 = vmatprep.subr.mxu0 0.0
    %v4711 = vand.u32 %v3282, 4294901760
    %4712 = vmatpush1.msra.mxu0 %v4711
    %4713 = vmatprep.subr.mxu0 0.0
    %v4714 = vand.u32 %v3313, 4294901760
    %4715 = vmatpush2.msra.mxu0 %v4714
    %4716 = vmatprep.subr.mxu0 0.0
    %v4717 = vand.u32 %v3312, 4294901760
    %4718 = vmatpush2.msra.mxu0 %v4717
    %4719 = vmatprep.subr.mxu0 0.0
    %v4720 = vand.u32 %v3311, 4294901760
    %4721 = vmatpush2.msra.mxu0 %v4720
    %4722 = vmatprep.subr.mxu0 0.0
    %v4723 = vand.u32 %v3310, 4294901760
    %4724 = vmatpush2.msra.mxu0 %v4723
    %4725 = vmatprep.subr.mxu0 0.0
    %v4726 = vand.u32 %v3309, 4294901760
    %4727 = vmatpush2.msra.mxu0 %v4726
    %4728 = vmatprep.subr.mxu0 0.0
    %v4729 = vand.u32 %v3308, 4294901760
    %4730 = vmatpush2.msra.mxu0 %v4729
    %4731 = vmatprep.subr.mxu0 0.0
    %v4732 = vand.u32 %v3307, 4294901760
    %4733 = vmatpush2.msra.mxu0 %v4732
    %4734 = vmatprep.subr.mxu0 0.0
    %v4735 = vand.u32 %v3306, 4294901760
    %4736 = vmatpush2.msra.mxu0 %v4735
    %4737 = vmatprep.subr.mxu0 0.0
    %v4738 = vand.u32 %v3305, 4294901760
    %4739 = vmatpush2.msra.mxu0 %v4738
    %4740 = vmatprep.subr.mxu0 0.0
    %v4741 = vand.u32 %v3304, 4294901760
    %4742 = vmatpush2.msra.mxu0 %v4741
    %4743 = vmatprep.subr.mxu0 0.0
    %v4744 = vand.u32 %v3303, 4294901760
    %4745 = vmatpush2.msra.mxu0 %v4744
    %4746 = vmatprep.subr.mxu0 0.0
    %v4747 = vand.u32 %v3302, 4294901760
    %4748 = vmatpush2.msra.mxu0 %v4747
    %4749 = vmatprep.subr.mxu0 0.0
    %v4750 = vand.u32 %v3301, 4294901760
    %4751 = vmatpush2.msra.mxu0 %v4750
    %4752 = vmatprep.subr.mxu0 0.0
    %v4753 = vand.u32 %v3300, 4294901760
    %4754 = vmatpush2.msra.mxu0 %v4753
    %4755 = vmatprep.subr.mxu0 0.0
    %v4756 = vand.u32 %v3299, 4294901760
    %4757 = vmatpush2.msra.mxu0 %v4756
    %4758 = vmatprep.subr.mxu0 0.0
    %v4759 = vand.u32 %v3298, 4294901760
    %4760 = vmatpush2.msra.mxu0 %v4759
    %v4761 = vand.u32 %v3249, 4294901760
    %v4762 = vsub.f32 %v3249, %v4761
    %v4763 = vand.u32 %v4762, 4294901760
    %4764 = vmatprep.mubr.f32.mxu0 %v4763
    %v4765 = vand.u32 %v3248, 4294901760
    %v4766 = vsub.f32 %v3248, %v4765
    %v4767 = vand.u32 %v4766, 4294901760
    %4768 = vmatmul.mubr.f32.gmra.mxu0 %v4767
    %v4769 = vpop.f32.mrf.mxu0
    %v4770 = vadd.f32 %v4662, %v4769
    %v4771 = vpop.f32.mrf.mxu0
    %4772 = vdwg.mxu0
    %4773 = vmatprep.subr.mxu0 0.0
    %v4774 = vand.u32 %v3297, 4294901760
    %v4775 = vsub.f32 %v3297, %v4774
    %v4776 = vand.u32 %v4775, 4294901760
    %4777 = vmatpush1.msra.mxu0 %v4776
    %4778 = vmatprep.subr.mxu0 0.0
    %v4779 = vand.u32 %v3296, 4294901760
    %v4780 = vsub.f32 %v3296, %v4779
    %v4781 = vand.u32 %v4780, 4294901760
    %4782 = vmatpush1.msra.mxu0 %v4781
    %4783 = vmatprep.subr.mxu0 0.0
    %v4784 = vand.u32 %v3295, 4294901760
    %v4785 = vsub.f32 %v3295, %v4784
    %v4786 = vand.u32 %v4785, 4294901760
    %4787 = vmatpush1.msra.mxu0 %v4786
    %4788 = vmatprep.subr.mxu0 0.0
    %v4789 = vand.u32 %v3294, 4294901760
    %v4790 = vsub.f32 %v3294, %v4789
    %v4791 = vand.u32 %v4790, 4294901760
    %4792 = vmatpush1.msra.mxu0 %v4791
    %4793 = vmatprep.subr.mxu0 0.0
    %v4794 = vand.u32 %v3293, 4294901760
    %v4795 = vsub.f32 %v3293, %v4794
    %v4796 = vand.u32 %v4795, 4294901760
    %4797 = vmatpush1.msra.mxu0 %v4796
    %4798 = vmatprep.subr.mxu0 0.0
    %v4799 = vand.u32 %v3292, 4294901760
    %v4800 = vsub.f32 %v3292, %v4799
    %v4801 = vand.u32 %v4800, 4294901760
    %4802 = vmatpush1.msra.mxu0 %v4801
    %4803 = vmatprep.subr.mxu0 0.0
    %v4804 = vand.u32 %v3291, 4294901760
    %v4805 = vsub.f32 %v3291, %v4804
    %v4806 = vand.u32 %v4805, 4294901760
    %4807 = vmatpush1.msra.mxu0 %v4806
    %4808 = vmatprep.subr.mxu0 0.0
    %v4809 = vand.u32 %v3290, 4294901760
    %v4810 = vsub.f32 %v3290, %v4809
    %v4811 = vand.u32 %v4810, 4294901760
    %4812 = vmatpush1.msra.mxu0 %v4811
    %4813 = vmatprep.subr.mxu0 0.0
    %v4814 = vand.u32 %v3289, 4294901760
    %v4815 = vsub.f32 %v3289, %v4814
    %v4816 = vand.u32 %v4815, 4294901760
    %4817 = vmatpush1.msra.mxu0 %v4816
    %4818 = vmatprep.subr.mxu0 0.0
    %v4819 = vand.u32 %v3288, 4294901760
    %v4820 = vsub.f32 %v3288, %v4819
    %v4821 = vand.u32 %v4820, 4294901760
    %4822 = vmatpush1.msra.mxu0 %v4821
    %4823 = vmatprep.subr.mxu0 0.0
    %v4824 = vand.u32 %v3287, 4294901760
    %v4825 = vsub.f32 %v3287, %v4824
    %v4826 = vand.u32 %v4825, 4294901760
    %4827 = vmatpush1.msra.mxu0 %v4826
    %4828 = vmatprep.subr.mxu0 0.0
    %v4829 = vand.u32 %v3286, 4294901760
    %v4830 = vsub.f32 %v3286, %v4829
    %v4831 = vand.u32 %v4830, 4294901760
    %4832 = vmatpush1.msra.mxu0 %v4831
    %4833 = vmatprep.subr.mxu0 0.0
    %v4834 = vand.u32 %v3285, 4294901760
    %v4835 = vsub.f32 %v3285, %v4834
    %v4836 = vand.u32 %v4835, 4294901760
    %4837 = vmatpush1.msra.mxu0 %v4836
    %4838 = vmatprep.subr.mxu0 0.0
    %v4839 = vand.u32 %v3284, 4294901760
    %v4840 = vsub.f32 %v3284, %v4839
    %v4841 = vand.u32 %v4840, 4294901760
    %4842 = vmatpush1.msra.mxu0 %v4841
    %4843 = vmatprep.subr.mxu0 0.0
    %v4844 = vand.u32 %v3283, 4294901760
    %v4845 = vsub.f32 %v3283, %v4844
    %v4846 = vand.u32 %v4845, 4294901760
    %4847 = vmatpush1.msra.mxu0 %v4846
    %4848 = vmatprep.subr.mxu0 0.0
    %v4849 = vand.u32 %v3282, 4294901760
    %v4850 = vsub.f32 %v3282, %v4849
    %v4851 = vand.u32 %v4850, 4294901760
    %4852 = vmatpush1.msra.mxu0 %v4851
    %4853 = vmatprep.subr.mxu0 0.0
    %v4854 = vand.u32 %v3313, 4294901760
    %v4855 = vsub.f32 %v3313, %v4854
    %v4856 = vand.u32 %v4855, 4294901760
    %4857 = vmatpush2.msra.mxu0 %v4856
    %4858 = vmatprep.subr.mxu0 0.0
    %v4859 = vand.u32 %v3312, 4294901760
    %v4860 = vsub.f32 %v3312, %v4859
    %v4861 = vand.u32 %v4860, 4294901760
    %4862 = vmatpush2.msra.mxu0 %v4861
    %4863 = vmatprep.subr.mxu0 0.0
    %v4864 = vand.u32 %v3311, 4294901760
    %v4865 = vsub.f32 %v3311, %v4864
    %v4866 = vand.u32 %v4865, 4294901760
    %4867 = vmatpush2.msra.mxu0 %v4866
    %4868 = vmatprep.subr.mxu0 0.0
    %v4869 = vand.u32 %v3310, 4294901760
    %v4870 = vsub.f32 %v3310, %v4869
    %v4871 = vand.u32 %v4870, 4294901760
    %4872 = vmatpush2.msra.mxu0 %v4871
    %4873 = vmatprep.subr.mxu0 0.0
    %v4874 = vand.u32 %v3309, 4294901760
    %v4875 = vsub.f32 %v3309, %v4874
    %v4876 = vand.u32 %v4875, 4294901760
    %4877 = vmatpush2.msra.mxu0 %v4876
    %4878 = vmatprep.subr.mxu0 0.0
    %v4879 = vand.u32 %v3308, 4294901760
    %v4880 = vsub.f32 %v3308, %v4879
    %v4881 = vand.u32 %v4880, 4294901760
    %4882 = vmatpush2.msra.mxu0 %v4881
    %4883 = vmatprep.subr.mxu0 0.0
    %v4884 = vand.u32 %v3307, 4294901760
    %v4885 = vsub.f32 %v3307, %v4884
    %v4886 = vand.u32 %v4885, 4294901760
    %4887 = vmatpush2.msra.mxu0 %v4886
    %4888 = vmatprep.subr.mxu0 0.0
    %v4889 = vand.u32 %v3306, 4294901760
    %v4890 = vsub.f32 %v3306, %v4889
    %v4891 = vand.u32 %v4890, 4294901760
    %4892 = vmatpush2.msra.mxu0 %v4891
    %4893 = vmatprep.subr.mxu0 0.0
    %v4894 = vand.u32 %v3305, 4294901760
    %v4895 = vsub.f32 %v3305, %v4894
    %v4896 = vand.u32 %v4895, 4294901760
    %4897 = vmatpush2.msra.mxu0 %v4896
    %4898 = vmatprep.subr.mxu0 0.0
    %v4899 = vand.u32 %v3304, 4294901760
    %v4900 = vsub.f32 %v3304, %v4899
    %v4901 = vand.u32 %v4900, 4294901760
    %4902 = vmatpush2.msra.mxu0 %v4901
    %4903 = vmatprep.subr.mxu0 0.0
    %v4904 = vand.u32 %v3303, 4294901760
    %v4905 = vsub.f32 %v3303, %v4904
    %v4906 = vand.u32 %v4905, 4294901760
    %4907 = vmatpush2.msra.mxu0 %v4906
    %4908 = vmatprep.subr.mxu0 0.0
    %v4909 = vand.u32 %v3302, 4294901760
    %v4910 = vsub.f32 %v3302, %v4909
    %v4911 = vand.u32 %v4910, 4294901760
    %4912 = vmatpush2.msra.mxu0 %v4911
    %4913 = vmatprep.subr.mxu0 0.0
    %v4914 = vand.u32 %v3301, 4294901760
    %v4915 = vsub.f32 %v3301, %v4914
    %v4916 = vand.u32 %v4915, 4294901760
    %4917 = vmatpush2.msra.mxu0 %v4916
    %4918 = vmatprep.subr.mxu0 0.0
    %v4919 = vand.u32 %v3300, 4294901760
    %v4920 = vsub.f32 %v3300, %v4919
    %v4921 = vand.u32 %v4920, 4294901760
    %4922 = vmatpush2.msra.mxu0 %v4921
    %4923 = vmatprep.subr.mxu0 0.0
    %v4924 = vand.u32 %v3299, 4294901760
    %v4925 = vsub.f32 %v3299, %v4924
    %v4926 = vand.u32 %v4925, 4294901760
    %4927 = vmatpush2.msra.mxu0 %v4926
    %4928 = vmatprep.subr.mxu0 0.0
    %v4929 = vand.u32 %v3298, 4294901760
    %v4930 = vsub.f32 %v3298, %v4929
    %v4931 = vand.u32 %v4930, 4294901760
    %4932 = vmatpush2.msra.mxu0 %v4931
    %v4933 = vand.u32 %v3249, 4294901760
    %4934 = vmatprep.mubr.f32.mxu0 %v4933
    %v4935 = vand.u32 %v3248, 4294901760
    %4936 = vmatmul.mubr.f32.gmra.mxu0 %v4935
    %v4937 = vpop.f32.mrf.mxu0
    %v4938 = vadd.f32 %v4770, %v4937
    %v4939 = vpop.f32.mrf.mxu0
    %4940 = vdwg.mxu0
    %4941 = vmatprep.subr.mxu0 0.0
    %v4942 = vand.u32 %v3297, 4294901760
    %4943 = vmatpush1.msra.mxu0 %v4942
    %4944 = vmatprep.subr.mxu0 0.0
    %v4945 = vand.u32 %v3296, 4294901760
    %4946 = vmatpush1.msra.mxu0 %v4945
    %4947 = vmatprep.subr.mxu0 0.0
    %v4948 = vand.u32 %v3295, 4294901760
    %4949 = vmatpush1.msra.mxu0 %v4948
    %4950 = vmatprep.subr.mxu0 0.0
    %v4951 = vand.u32 %v3294, 4294901760
    %4952 = vmatpush1.msra.mxu0 %v4951
    %4953 = vmatprep.subr.mxu0 0.0
    %v4954 = vand.u32 %v3293, 4294901760
    %4955 = vmatpush1.msra.mxu0 %v4954
    %4956 = vmatprep.subr.mxu0 0.0
    %v4957 = vand.u32 %v3292, 4294901760
    %4958 = vmatpush1.msra.mxu0 %v4957
    %4959 = vmatprep.subr.mxu0 0.0
    %v4960 = vand.u32 %v3291, 4294901760
    %4961 = vmatpush1.msra.mxu0 %v4960
    %4962 = vmatprep.subr.mxu0 0.0
    %v4963 = vand.u32 %v3290, 4294901760
    %4964 = vmatpush1.msra.mxu0 %v4963
    %4965 = vmatprep.subr.mxu0 0.0
    %v4966 = vand.u32 %v3289, 4294901760
    %4967 = vmatpush1.msra.mxu0 %v4966
    %4968 = vmatprep.subr.mxu0 0.0
    %v4969 = vand.u32 %v3288, 4294901760
    %4970 = vmatpush1.msra.mxu0 %v4969
    %4971 = vmatprep.subr.mxu0 0.0
    %v4972 = vand.u32 %v3287, 4294901760
    %4973 = vmatpush1.msra.mxu0 %v4972
    %4974 = vmatprep.subr.mxu0 0.0
    %v4975 = vand.u32 %v3286, 4294901760
    %4976 = vmatpush1.msra.mxu0 %v4975
    %4977 = vmatprep.subr.mxu0 0.0
    %v4978 = vand.u32 %v3285, 4294901760
    %4979 = vmatpush1.msra.mxu0 %v4978
    %4980 = vmatprep.subr.mxu0 0.0
    %v4981 = vand.u32 %v3284, 4294901760
    %4982 = vmatpush1.msra.mxu0 %v4981
    %4983 = vmatprep.subr.mxu0 0.0
    %v4984 = vand.u32 %v3283, 4294901760
    %4985 = vmatpush1.msra.mxu0 %v4984
    %4986 = vmatprep.subr.mxu0 0.0
    %v4987 = vand.u32 %v3282, 4294901760
    %4988 = vmatpush1.msra.mxu0 %v4987
    %4989 = vmatprep.subr.mxu0 0.0
    %v4990 = vand.u32 %v3313, 4294901760
    %4991 = vmatpush2.msra.mxu0 %v4990
    %4992 = vmatprep.subr.mxu0 0.0
    %v4993 = vand.u32 %v3312, 4294901760
    %4994 = vmatpush2.msra.mxu0 %v4993
    %4995 = vmatprep.subr.mxu0 0.0
    %v4996 = vand.u32 %v3311, 4294901760
    %4997 = vmatpush2.msra.mxu0 %v4996
    %4998 = vmatprep.subr.mxu0 0.0
    %v4999 = vand.u32 %v3310, 4294901760
    %5000 = vmatpush2.msra.mxu0 %v4999
    %5001 = vmatprep.subr.mxu0 0.0
    %v5002 = vand.u32 %v3309, 4294901760
    %5003 = vmatpush2.msra.mxu0 %v5002
    %5004 = vmatprep.subr.mxu0 0.0
    %v5005 = vand.u32 %v3308, 4294901760
    %5006 = vmatpush2.msra.mxu0 %v5005
    %5007 = vmatprep.subr.mxu0 0.0
    %v5008 = vand.u32 %v3307, 4294901760
    %5009 = vmatpush2.msra.mxu0 %v5008
    %5010 = vmatprep.subr.mxu0 0.0
    %v5011 = vand.u32 %v3306, 4294901760
    %5012 = vmatpush2.msra.mxu0 %v5011
    %5013 = vmatprep.subr.mxu0 0.0
    %v5014 = vand.u32 %v3305, 4294901760
    %5015 = vmatpush2.msra.mxu0 %v5014
    %5016 = vmatprep.subr.mxu0 0.0
    %v5017 = vand.u32 %v3304, 4294901760
    %5018 = vmatpush2.msra.mxu0 %v5017
    %5019 = vmatprep.subr.mxu0 0.0
    %v5020 = vand.u32 %v3303, 4294901760
    %5021 = vmatpush2.msra.mxu0 %v5020
    %5022 = vmatprep.subr.mxu0 0.0
    %v5023 = vand.u32 %v3302, 4294901760
    %5024 = vmatpush2.msra.mxu0 %v5023
    %5025 = vmatprep.subr.mxu0 0.0
    %v5026 = vand.u32 %v3301, 4294901760
    %5027 = vmatpush2.msra.mxu0 %v5026
    %5028 = vmatprep.subr.mxu0 0.0
    %v5029 = vand.u32 %v3300, 4294901760
    %5030 = vmatpush2.msra.mxu0 %v5029
    %5031 = vmatprep.subr.mxu0 0.0
    %v5032 = vand.u32 %v3299, 4294901760
    %5033 = vmatpush2.msra.mxu0 %v5032
    %5034 = vmatprep.subr.mxu0 0.0
    %v5035 = vand.u32 %v3298, 4294901760
    %5036 = vmatpush2.msra.mxu0 %v5035
    %v5037 = vand.u32 %v3249, 4294901760
    %5038 = vmatprep.mubr.f32.mxu0 %v5037
    %v5039 = vand.u32 %v3248, 4294901760
    %5040 = vmatmul.mubr.f32.gmra.mxu0 %v5039
    %v5041 = vpop.f32.mrf.mxu0
    %v5042 = vadd.f32 %v4938, %v5041
    %v5043 = vpop.f32.mrf.mxu0
    %5044 = vdwg.mxu0
    %5045 = vst [vmem:[#allocation10] sm:$0xf] %v5042
    // Predicated region
    $region42: #{tpu_custom_call.1} parent=1 // pred_check
      _
    $region43: #{tpu_custom_call.1} parent=1 // pred_check_branch
      %5047 = sbr.rel (0) target = $region45
    $region44: #{tpu_custom_call.1} parent=1 // pred_region
      %s5049 = ssub.s32 64, 64
      %5050 = vsyncadd [#allocation4], %s5049
      %s5052 = sshll.u32 [#allocation10], 4
      %s5053 = int_to_ptr.vmem [resolvable:$true] %s5052
      %5055 = dma.vmem_to_hbm [thread:$0]  %s5053, 64, %s6, [#allocation4]
    $region45: #{tpu_custom_call.1} parent=1 // pred_fallthru
      _
    // Predicated region
    $region46: #{tpu_custom_call.1} parent=1 // pred_check
      _
    $region47: #{tpu_custom_call.1} parent=1 // pred_check_branch
      %5057 = sbr.rel (0) target = $region49
    $region48: #{tpu_custom_call.1} parent=1 // pred_region
      %5058 = dma.done [#allocation4], 64
    $region49: #{tpu_custom_call.1} parent=1 // pred_fallthru
      _
    %5059 = vsyncpa [#allocation3], 1
    %5060 = vsyncpa [#allocation6], 1
    %5061 = vsyncpa [#allocation9], 1
    %5062 = vsyncpa [#allocation4], 1

</llo_original>
